<compile_context>
chip_gen: v7x
topology: tpu7x:2x2x1
jax: 0.10.0
libtpu: 0.0.40
codegen_flags: <defaults>
</compile_context>

<pallas_src>
import functools

import jax
import jax.numpy as jnp
from jax.experimental import pallas as pl
from jax.experimental.pallas import tpu as pltpu

# ----------------------------- config (small synthetic BERT) -----------------
BATCH = 2
SEQ = 8
HIDDEN = 32
NUM_HEADS = 4
HEAD_DIM = HIDDEN // NUM_HEADS
INTERMEDIATE = 64
NUM_LAYERS = 2
VOCAB = 100
MAX_POS = 64
LN_EPS = 1e-12  # BERT layernorm eps


# ----------------------------- fused encoder kernel --------------------------
def _encoder_kernel(emb_ref, mask_ref, emb_g_ref, emb_b_ref,
                    wqkv_ref, bqkv_ref, wo_ref, bo_ref,
                    ln1_g_ref, ln1_b_ref,
                    w1_ref, b1_ref, w2_ref, b2_ref,
                    ln2_g_ref, ln2_b_ref,
                    cls_ref, x_ref,
                    *, batch, seq, hidden, num_heads, head_dim, scale, eps):
    layer = pl.program_id(0)

    def layernorm(x, g, b):
        mu = jnp.mean(x, axis=-1, keepdims=True)
        var = jnp.mean((x - mu) * (x - mu), axis=-1, keepdims=True)
        return (x - mu) * jax.lax.rsqrt(var + eps) * g + b

    # Layer 0: embedding layernorm into the resident activation scratch.
    @pl.when(layer == 0)
    def _():
        x_ref[...] = layernorm(emb_ref[...], emb_g_ref[...], emb_b_ref[...])

    x = x_ref[...]                        # (B*S, H), persists across layer grid steps
    mask = mask_ref[...]                  # (B, S) additive mask

    # ---- fused QKV projection: one (B*S, H) x (H, 3H) matmul ----
    qkv = jnp.dot(x, wqkv_ref[0], preferred_element_type=jnp.float32) + bqkv_ref[0]
    q = qkv[:, 0 * hidden:1 * hidden]
    k = qkv[:, 1 * hidden:2 * hidden]
    v = qkv[:, 2 * hidden:3 * hidden]

    # ---- attention: all (batch, head) tiles in this single grid step,
    #      heads merged in-kernel back to a (B*S, H) slab ----
    ctx_blocks = []
    for b in range(batch):
        mb = mask[b:b + 1, :]             # (1, S), broadcasts over query rows
        head_blocks = []
        for h in range(num_heads):
            r0, c0 = b * seq, h * head_dim
            qh = q[r0:r0 + seq, c0:c0 + head_dim]
            kh = k[r0:r0 + seq, c0:c0 + head_dim]
            vh = v[r0:r0 + seq, c0:c0 + head_dim]
            s = jnp.dot(qh, kh.T, preferred_element_type=jnp.float32) * scale + mb
            s = s - jnp.max(s, axis=-1, keepdims=True)
            p = jnp.exp(s)
            p = p * pl.reciprocal(jnp.sum(p, axis=-1, keepdims=True), approx=True)
            head_blocks.append(jnp.dot(p, vh, preferred_element_type=jnp.float32))
        ctx_blocks.append(jnp.concatenate(head_blocks, axis=-1))   # (S, H)
    ctx = jnp.concatenate(ctx_blocks, axis=0)                      # (B*S, H)

    # ---- attention output projection + residual layernorm ----
    attn_out = jnp.dot(ctx, wo_ref[0], preferred_element_type=jnp.float32) + bo_ref[0]
    x1 = layernorm(attn_out + x, ln1_g_ref[0], ln1_b_ref[0])

    # ---- FFN + residual layernorm ----
    # TODO(synk): HF BERT uses exact (erf) GELU; tanh approximation used here.
    h1 = jnp.dot(x1, w1_ref[0], preferred_element_type=jnp.float32) + b1_ref[0]
    h1 = jax.nn.gelu(h1, approximate=True)
    h2 = jnp.dot(h1, w2_ref[0], preferred_element_type=jnp.float32) + b2_ref[0]
    x2 = layernorm(h2 + x1, ln2_g_ref[0], ln2_b_ref[0])

    x_ref[...] = x2

    # [CLS] rows only (row b*seq of each sequence); the last layer's write survives.
    cls_ref[...] = jnp.concatenate(
        [x2[b * seq:b * seq + 1, :] for b in range(batch)], axis=0)


# ----------------------------- parameter init --------------------------------
def init_params(key):
    def normal(k, shape, std=0.02):
        return std * jax.random.normal(k, shape, dtype=jnp.float32)

    keys = jax.random.split(key, 3 + NUM_LAYERS)
    params = {
        "word_emb": normal(keys[0], (VOCAB, HIDDEN)),
        "pos_emb": normal(keys[1], (MAX_POS, HIDDEN)),
        "type_emb": normal(keys[2], (2, HIDDEN)),
        "emb_ln_g": jnp.ones((1, HIDDEN), jnp.float32),
        "emb_ln_b": jnp.zeros((1, HIDDEN), jnp.float32),
    }
    wqkv, wo, w1, w2 = [], [], [], []
    for l in range(NUM_LAYERS):
        lk = jax.random.split(keys[3 + l], 6)
        # Q/K/V weights fused along the output dimension -> one (H, 3H) matmul.
        wqkv.append(jnp.concatenate(
            [normal(lk[0], (HIDDEN, HIDDEN)),
             normal(lk[1], (HIDDEN, HIDDEN)),
             normal(lk[2], (HIDDEN, HIDDEN))], axis=1))
        wo.append(normal(lk[3], (HIDDEN, HIDDEN)))
        w1.append(normal(lk[4], (HIDDEN, INTERMEDIATE)))
        w2.append(normal(lk[5], (INTERMEDIATE, HIDDEN)))
    L = NUM_LAYERS
    params.update({
        "wqkv": jnp.stack(wqkv), "bqkv": jnp.zeros((L, 1, 3 * HIDDEN), jnp.float32),
        "wo": jnp.stack(wo), "bo": jnp.zeros((L, 1, HIDDEN), jnp.float32),
        "ln1_g": jnp.ones((L, 1, HIDDEN), jnp.float32),
        "ln1_b": jnp.zeros((L, 1, HIDDEN), jnp.float32),
        "w1": jnp.stack(w1), "b1": jnp.zeros((L, 1, INTERMEDIATE), jnp.float32),
        "w2": jnp.stack(w2), "b2": jnp.zeros((L, 1, HIDDEN), jnp.float32),
        "ln2_g": jnp.ones((L, 1, HIDDEN), jnp.float32),
        "ln2_b": jnp.zeros((L, 1, HIDDEN), jnp.float32),
    })
    return params


# ----------------------------- forward pass -----------------------------------
def bert_dense_retriever_forward(params, input_ids, attention_mask):
    B, S = input_ids.shape
    H, I, L = HIDDEN, INTERMEDIATE, NUM_LAYERS

    # Embedding gathers stay in plain JAX (token_type_ids assumed all zero, as in HF default).
    emb = (params["word_emb"][input_ids]
           + params["pos_emb"][None, :S, :]
           + params["type_emb"][0][None, None, :]).reshape(B * S, H)

    # Extended additive attention mask: (1 - mask) * -10000, shape (B, S).
    ext_mask = (1.0 - attention_mask.astype(jnp.float32)) * -10000.0

    def full(shape):
        return pl.BlockSpec(shape, lambda l: (0,) * len(shape))

    def per_layer(shape):
        return pl.BlockSpec((1,) + shape, lambda l: (l,) + (0,) * len(shape))

    kernel = functools.partial(
        _encoder_kernel, batch=B, seq=S, hidden=H, num_heads=NUM_HEADS,
        head_dim=HEAD_DIM, scale=1.0 / (HEAD_DIM ** 0.5), eps=LN_EPS)

    cls = pl.pallas_call(
        kernel,
        out_shape=jax.ShapeDtypeStruct((B, H), jnp.float32),
        grid=(L,),
        in_specs=[
            full((B * S, H)),        # emb
            full((B, S)),            # ext_mask
            full((1, H)),            # emb_ln_g
            full((1, H)),            # emb_ln_b
            per_layer((H, 3 * H)),   # wqkv
            per_layer((1, 3 * H)),   # bqkv
            per_layer((H, H)),       # wo
            per_layer((1, H)),       # bo
            per_layer((1, H)),       # ln1_g
            per_layer((1, H)),       # ln1_b
            per_layer((H, I)),       # w1
            per_layer((1, I)),       # b1
            per_layer((I, H)),       # w2
            per_layer((1, H)),       # b2
            per_layer((1, H)),       # ln2_g
            per_layer((1, H)),       # ln2_b
        ],
        out_specs=pl.BlockSpec((B, H), lambda l: (0, 0)),
        scratch_shapes=[pltpu.VMEM((B * S, H), jnp.float32)],  # resident activation
        compiler_params=pltpu.CompilerParams(
            dimension_semantics=("arbitrary",)),  # layer axis is sequential (carried state)
    )(emb, ext_mask, params["emb_ln_g"], params["emb_ln_b"],
      params["wqkv"], params["bqkv"], params["wo"], params["bo"],
      params["ln1_g"], params["ln1_b"], params["w1"], params["b1"],
      params["w2"], params["b2"], params["ln2_g"], params["ln2_b"])

    # last_hidden_state[:, 0, :]  -> CLS embedding (already selected in-kernel)
    return cls


# ----------------------------- main -------------------------------------------
if __name__ == "__main__":
    key = jax.random.PRNGKey(0)
    pkey, ikey = jax.random.split(key)
    params = init_params(pkey)

    input_ids = jax.random.randint(ikey, (BATCH, SEQ), 0, VOCAB, dtype=jnp.int32)
    # second sequence has 2 padding tokens to exercise the attention mask
    attention_mask = jnp.array(
        [[1] * SEQ, [1] * (SEQ - 2) + [0, 0]], dtype=jnp.int32)

    cls_emb = bert_dense_retriever_forward(params, input_ids, attention_mask)
    cls_emb = jax.block_until_ready(cls_emb)
    assert cls_emb.shape == (BATCH, HIDDEN)
    assert bool(jnp.all(jnp.isfinite(cls_emb)))
    print("KERNEL_OK")
</pallas_src>

<mosaic_0001>
module attributes {stable_mosaic.version = 11 : i64} {
  func.func @_encoder_kernel(%arg0: i32, %arg1: memref<16x32xf32, #tpu.memory_space<vmem>>, %arg2: memref<2x8xf32, #tpu.memory_space<vmem>>, %arg3: memref<1x32xf32, #tpu.memory_space<vmem>>, %arg4: memref<1x32xf32, #tpu.memory_space<vmem>>, %arg5: memref<1x32x96xf32, #tpu.memory_space<vmem>>, %arg6: memref<1x1x96xf32, #tpu.memory_space<vmem>>, %arg7: memref<1x32x32xf32, #tpu.memory_space<vmem>>, %arg8: memref<1x1x32xf32, #tpu.memory_space<vmem>>, %arg9: memref<1x1x32xf32, #tpu.memory_space<vmem>>, %arg10: memref<1x1x32xf32, #tpu.memory_space<vmem>>, %arg11: memref<1x32x64xf32, #tpu.memory_space<vmem>>, %arg12: memref<1x1x64xf32, #tpu.memory_space<vmem>>, %arg13: memref<1x64x32xf32, #tpu.memory_space<vmem>>, %arg14: memref<1x1x32xf32, #tpu.memory_space<vmem>>, %arg15: memref<1x1x32xf32, #tpu.memory_space<vmem>>, %arg16: memref<1x1x32xf32, #tpu.memory_space<vmem>>, %arg17: memref<2x32xf32, #tpu.memory_space<vmem>>, %arg18: memref<16x32xf32, #tpu.memory_space<vmem>>) attributes {dimension_semantics = [#tpu.dimension_semantics<arbitrary>], iteration_bounds = array<i64: 2>, scalar_prefetch = 0 : i64, scratch_operands = 1 : i64, tpu.core_type = #tpu.core_type<tc>, window_params = [{pipeline_mode = #tpu.pipeline_mode<synchronous>, transform_indices = @transform_0, window_bounds = array<i64: 16, 32>}, {pipeline_mode = #tpu.pipeline_mode<synchronous>, transform_indices = @transform_1, window_bounds = array<i64: 2, 8>}, {pipeline_mode = #tpu.pipeline_mode<synchronous>, transform_indices = @transform_2, window_bounds = array<i64: 1, 32>}, {pipeline_mode = #tpu.pipeline_mode<synchronous>, transform_indices = @transform_3, window_bounds = array<i64: 1, 32>}, {transform_indices = @transform_4, window_bounds = array<i64: 1, 32, 96>}, {transform_indices = @transform_5, window_bounds = array<i64: 1, 1, 96>}, {transform_indices = @transform_6, window_bounds = array<i64: 1, 32, 32>}, {transform_indices = @transform_7, window_bounds = array<i64: 1, 1, 32>}, {transform_indices = @transform_8, window_bounds = array<i64: 1, 1, 32>}, {transform_indices = @transform_9, window_bounds = array<i64: 1, 1, 32>}, {transform_indices = @transform_10, window_bounds = array<i64: 1, 32, 64>}, {transform_indices = @transform_11, window_bounds = array<i64: 1, 1, 64>}, {transform_indices = @transform_12, window_bounds = array<i64: 1, 64, 32>}, {transform_indices = @transform_13, window_bounds = array<i64: 1, 1, 32>}, {transform_indices = @transform_14, window_bounds = array<i64: 1, 1, 32>}, {transform_indices = @transform_15, window_bounds = array<i64: 1, 1, 32>}, {pipeline_mode = #tpu.pipeline_mode<synchronous>, transform_indices = @transform_16, window_bounds = array<i64: 2, 32>}]} {
    %c0_i32 = arith.constant 0 : i32
    %0 = arith.cmpi eq, %arg0, %c0_i32 : i32
    %1 = arith.extui %0 : i1 to i32
    %c0_i32_0 = arith.constant 0 : i32
    %2 = arith.cmpi ne, %1, %c0_i32_0 : i32
    scf.if %2 {
      %c0_101 = arith.constant 0 : index
      %c0_102 = arith.constant 0 : index
      %277 = vector.load %arg1[%c0_101, %c0_102] : memref<16x32xf32, #tpu.memory_space<vmem>>, vector<16x32xf32>
      %c0_103 = arith.constant 0 : index
      %c0_104 = arith.constant 0 : index
      %278 = vector.load %arg3[%c0_103, %c0_104] : memref<1x32xf32, #tpu.memory_space<vmem>>, vector<1x32xf32>
      %c0_105 = arith.constant 0 : index
      %c0_106 = arith.constant 0 : index
      %279 = vector.load %arg4[%c0_105, %c0_106] : memref<1x32xf32, #tpu.memory_space<vmem>>, vector<1x32xf32>
      %cst_107 = arith.constant dense<0.000000e+00> : vector<16xf32>
      %280 = vector.multi_reduction <add>, %277, %cst_107 [1] : vector<16x32xf32> to vector<16xf32>
      %281 = vector.shape_cast %280 : vector<16xf32> to vector<16x1xf32>
      %cst_108 = arith.constant 3.200000e+01 : f32
      %282 = vector.broadcast %cst_108 : f32 to vector<16x1xf32>
      %283 = arith.divf %281, %282 : vector<16x1xf32>
      %284 = vector.broadcast %283 : vector<16x1xf32> to vector<16x32xf32>
      %285 = arith.subf %277, %284 : vector<16x32xf32>
      %286 = vector.broadcast %283 : vector<16x1xf32> to vector<16x32xf32>
      %287 = arith.subf %277, %286 : vector<16x32xf32>
      %288 = arith.mulf %285, %287 : vector<16x32xf32>
      %cst_109 = arith.constant dense<0.000000e+00> : vector<16xf32>
      %289 = vector.multi_reduction <add>, %288, %cst_109 [1] : vector<16x32xf32> to vector<16xf32>
      %290 = vector.shape_cast %289 : vector<16xf32> to vector<16x1xf32>
      %cst_110 = arith.constant 3.200000e+01 : f32
      %291 = vector.broadcast %cst_110 : f32 to vector<16x1xf32>
      %292 = arith.divf %290, %291 : vector<16x1xf32>
      %293 = vector.broadcast %283 : vector<16x1xf32> to vector<16x32xf32>
      %294 = arith.subf %277, %293 : vector<16x32xf32>
      %cst_111 = arith.constant 9.99999996E-13 : f32
      %295 = vector.broadcast %cst_111 : f32 to vector<16x1xf32>
      %296 = arith.addf %292, %295 : vector<16x1xf32>
      %297 = math.rsqrt %296 : vector<16x1xf32>
      %298 = vector.broadcast %297 : vector<16x1xf32> to vector<16x32xf32>
      %299 = arith.mulf %294, %298 : vector<16x32xf32>
      %300 = vector.broadcast %278 : vector<1x32xf32> to vector<16x32xf32>
      %301 = arith.mulf %299, %300 : vector<16x32xf32>
      %302 = vector.broadcast %279 : vector<1x32xf32> to vector<16x32xf32>
      %303 = arith.addf %301, %302 : vector<16x32xf32>
      %c0_112 = arith.constant 0 : index
      %c0_113 = arith.constant 0 : index
      %304 = vector.load %arg18[%c0_112, %c0_113] : memref<16x32xf32, #tpu.memory_space<vmem>>, vector<16x32xf32>
      tpu.vector_store %arg18[%c0_112, %c0_113], %303 {strides = array<i32>} : memref<16x32xf32, #tpu.memory_space<vmem>>, vector<16x32xf32>,
    } else {
    }
    %c0 = arith.constant 0 : index
    %c0_1 = arith.constant 0 : index
    %3 = vector.load %arg18[%c0, %c0_1] : memref<16x32xf32, #tpu.memory_space<vmem>>, vector<16x32xf32>
    %c0_2 = arith.constant 0 : index
    %c0_3 = arith.constant 0 : index
    %4 = vector.load %arg2[%c0_2, %c0_3] : memref<2x8xf32, #tpu.memory_space<vmem>>, vector<2x8xf32>
    %c0_4 = arith.constant 0 : index
    %c0_5 = arith.constant 0 : index
    %c0_6 = arith.constant 0 : index
    %5 = vector.load %arg5[%c0_4, %c0_5, %c0_6] : memref<1x32x96xf32, #tpu.memory_space<vmem>>, vector<1x32x96xf32>
    %6 = vector.shape_cast %5 : vector<1x32x96xf32> to vector<32x96xf32>
    %cst = arith.constant dense<0.000000e+00> : vector<16x96xf32>
    %7 = tpu.matmul %3, %6, %cst {dimension_numbers = #tpu.dot_dimension_numbers<[1], [0], [0], [1], [0, 0, 1, 1], [], []>} : vector<16x32xf32>, vector<32x96xf32>, vector<16x96xf32> -> vector<16x96xf32>
    %c0_7 = arith.constant 0 : index
    %c0_8 = arith.constant 0 : index
    %c0_9 = arith.constant 0 : index
    %8 = vector.load %arg6[%c0_7, %c0_8, %c0_9] : memref<1x1x96xf32, #tpu.memory_space<vmem>>, vector<1x1x96xf32>
    %9 = vector.shape_cast %8 : vector<1x1x96xf32> to vector<1x96xf32>
    %10 = vector.broadcast %9 : vector<1x96xf32> to vector<16x96xf32>
    %11 = arith.addf %7, %10 : vector<16x96xf32>
    %12 = vector.extract_strided_slice %11 {offsets = [0, 0], sizes = [16, 32], strides = [1, 1]} : vector<16x96xf32> to vector<16x32xf32>
    %13 = vector.extract_strided_slice %11 {offsets = [0, 32], sizes = [16, 32], strides = [1, 1]} : vector<16x96xf32> to vector<16x32xf32>
    %14 = vector.extract_strided_slice %11 {offsets = [0, 64], sizes = [16, 32], strides = [1, 1]} : vector<16x96xf32> to vector<16x32xf32>
    %15 = vector.extract_strided_slice %4 {offsets = [0, 0], sizes = [1, 8], strides = [1, 1]} : vector<2x8xf32> to vector<1x8xf32>
    %16 = vector.extract_strided_slice %12 {offsets = [0, 0], sizes = [8, 8], strides = [1, 1]} : vector<16x32xf32> to vector<8x8xf32>
    %17 = vector.extract_strided_slice %13 {offsets = [0, 0], sizes = [8, 8], strides = [1, 1]} : vector<16x32xf32> to vector<8x8xf32>
    %18 = vector.extract_strided_slice %14 {offsets = [0, 0], sizes = [8, 8], strides = [1, 1]} : vector<16x32xf32> to vector<8x8xf32>
    %19 = tpu.transpose %17, [1, 0] : vector<8x8xf32> -> vector<8x8xf32>
    %cst_10 = arith.constant dense<0.000000e+00> : vector<8x8xf32>
    %20 = tpu.matmul %16, %19, %cst_10 {dimension_numbers = #tpu.dot_dimension_numbers<[1], [0], [0], [1], [0, 0, 1, 1], [], []>} : vector<8x8xf32>, vector<8x8xf32>, vector<8x8xf32> -> vector<8x8xf32>
    %cst_11 = arith.constant 0.353553385 : f32
    %21 = vector.broadcast %cst_11 : f32 to vector<8x8xf32>
    %22 = arith.mulf %20, %21 : vector<8x8xf32>
    %23 = vector.broadcast %15 : vector<1x8xf32> to vector<8x8xf32>
    %24 = arith.addf %22, %23 : vector<8x8xf32>
    %cst_12 = arith.constant dense<0xFF800000> : vector<8xf32>
    %25 = vector.multi_reduction <maximumf>, %24, %cst_12 [1] : vector<8x8xf32> to vector<8xf32>
    %26 = vector.shape_cast %25 : vector<8xf32> to vector<8x1xf32>
    %27 = vector.broadcast %26 : vector<8x1xf32> to vector<8x8xf32>
    %28 = arith.subf %24, %27 : vector<8x8xf32>
    %29 = math.exp %28 : vector<8x8xf32>
    %cst_13 = arith.constant dense<0.000000e+00> : vector<8xf32>
    %30 = vector.multi_reduction <add>, %29, %cst_13 [1] : vector<8x8xf32> to vector<8xf32>
    %31 = vector.shape_cast %30 : vector<8xf32> to vector<8x1xf32>
    %32 = tpu.reciprocal %31 {approx = true} : vector<8x1xf32> -> vector<8x1xf32>
    %33 = vector.broadcast %32 : vector<8x1xf32> to vector<8x8xf32>
    %34 = arith.mulf %29, %33 : vector<8x8xf32>
    %cst_14 = arith.constant dense<0.000000e+00> : vector<8x8xf32>
    %35 = tpu.matmul %34, %18, %cst_14 {dimension_numbers = #tpu.dot_dimension_numbers<[1], [0], [0], [1], [0, 0, 1, 1], [], []>} : vector<8x8xf32>, vector<8x8xf32>, vector<8x8xf32> -> vector<8x8xf32>
    %36 = vector.extract_strided_slice %12 {offsets = [0, 8], sizes = [8, 8], strides = [1, 1]} : vector<16x32xf32> to vector<8x8xf32>
    %37 = vector.extract_strided_slice %13 {offsets = [0, 8], sizes = [8, 8], strides = [1, 1]} : vector<16x32xf32> to vector<8x8xf32>
    %38 = vector.extract_strided_slice %14 {offsets = [0, 8], sizes = [8, 8], strides = [1, 1]} : vector<16x32xf32> to vector<8x8xf32>
    %39 = tpu.transpose %37, [1, 0] : vector<8x8xf32> -> vector<8x8xf32>
    %cst_15 = arith.constant dense<0.000000e+00> : vector<8x8xf32>
    %40 = tpu.matmul %36, %39, %cst_15 {dimension_numbers = #tpu.dot_dimension_numbers<[1], [0], [0], [1], [0, 0, 1, 1], [], []>} : vector<8x8xf32>, vector<8x8xf32>, vector<8x8xf32> -> vector<8x8xf32>
    %cst_16 = arith.constant 0.353553385 : f32
    %41 = vector.broadcast %cst_16 : f32 to vector<8x8xf32>
    %42 = arith.mulf %40, %41 : vector<8x8xf32>
    %43 = vector.broadcast %15 : vector<1x8xf32> to vector<8x8xf32>
    %44 = arith.addf %42, %43 : vector<8x8xf32>
    %cst_17 = arith.constant dense<0xFF800000> : vector<8xf32>
    %45 = vector.multi_reduction <maximumf>, %44, %cst_17 [1] : vector<8x8xf32> to vector<8xf32>
    %46 = vector.shape_cast %45 : vector<8xf32> to vector<8x1xf32>
    %47 = vector.broadcast %46 : vector<8x1xf32> to vector<8x8xf32>
    %48 = arith.subf %44, %47 : vector<8x8xf32>
    %49 = math.exp %48 : vector<8x8xf32>
    %cst_18 = arith.constant dense<0.000000e+00> : vector<8xf32>
    %50 = vector.multi_reduction <add>, %49, %cst_18 [1] : vector<8x8xf32> to vector<8xf32>
    %51 = vector.shape_cast %50 : vector<8xf32> to vector<8x1xf32>
    %52 = tpu.reciprocal %51 {approx = true} : vector<8x1xf32> -> vector<8x1xf32>
    %53 = vector.broadcast %52 : vector<8x1xf32> to vector<8x8xf32>
    %54 = arith.mulf %49, %53 : vector<8x8xf32>
    %cst_19 = arith.constant dense<0.000000e+00> : vector<8x8xf32>
    %55 = tpu.matmul %54, %38, %cst_19 {dimension_numbers = #tpu.dot_dimension_numbers<[1], [0], [0], [1], [0, 0, 1, 1], [], []>} : vector<8x8xf32>, vector<8x8xf32>, vector<8x8xf32> -> vector<8x8xf32>
    %56 = vector.extract_strided_slice %12 {offsets = [0, 16], sizes = [8, 8], strides = [1, 1]} : vector<16x32xf32> to vector<8x8xf32>
    %57 = vector.extract_strided_slice %13 {offsets = [0, 16], sizes = [8, 8], strides = [1, 1]} : vector<16x32xf32> to vector<8x8xf32>
    %58 = vector.extract_strided_slice %14 {offsets = [0, 16], sizes = [8, 8], strides = [1, 1]} : vector<16x32xf32> to vector<8x8xf32>
    %59 = tpu.transpose %57, [1, 0] : vector<8x8xf32> -> vector<8x8xf32>
    %cst_20 = arith.constant dense<0.000000e+00> : vector<8x8xf32>
    %60 = tpu.matmul %56, %59, %cst_20 {dimension_numbers = #tpu.dot_dimension_numbers<[1], [0], [0], [1], [0, 0, 1, 1], [], []>} : vector<8x8xf32>, vector<8x8xf32>, vector<8x8xf32> -> vector<8x8xf32>
    %cst_21 = arith.constant 0.353553385 : f32
    %61 = vector.broadcast %cst_21 : f32 to vector<8x8xf32>
    %62 = arith.mulf %60, %61 : vector<8x8xf32>
    %63 = vector.broadcast %15 : vector<1x8xf32> to vector<8x8xf32>
    %64 = arith.addf %62, %63 : vector<8x8xf32>
    %cst_22 = arith.constant dense<0xFF800000> : vector<8xf32>
    %65 = vector.multi_reduction <maximumf>, %64, %cst_22 [1] : vector<8x8xf32> to vector<8xf32>
    %66 = vector.shape_cast %65 : vector<8xf32> to vector<8x1xf32>
    %67 = vector.broadcast %66 : vector<8x1xf32> to vector<8x8xf32>
    %68 = arith.subf %64, %67 : vector<8x8xf32>
    %69 = math.exp %68 : vector<8x8xf32>
    %cst_23 = arith.constant dense<0.000000e+00> : vector<8xf32>
    %70 = vector.multi_reduction <add>, %69, %cst_23 [1] : vector<8x8xf32> to vector<8xf32>
    %71 = vector.shape_cast %70 : vector<8xf32> to vector<8x1xf32>
    %72 = tpu.reciprocal %71 {approx = true} : vector<8x1xf32> -> vector<8x1xf32>
    %73 = vector.broadcast %72 : vector<8x1xf32> to vector<8x8xf32>
    %74 = arith.mulf %69, %73 : vector<8x8xf32>
    %cst_24 = arith.constant dense<0.000000e+00> : vector<8x8xf32>
    %75 = tpu.matmul %74, %58, %cst_24 {dimension_numbers = #tpu.dot_dimension_numbers<[1], [0], [0], [1], [0, 0, 1, 1], [], []>} : vector<8x8xf32>, vector<8x8xf32>, vector<8x8xf32> -> vector<8x8xf32>
    %76 = vector.extract_strided_slice %12 {offsets = [0, 24], sizes = [8, 8], strides = [1, 1]} : vector<16x32xf32> to vector<8x8xf32>
    %77 = vector.extract_strided_slice %13 {offsets = [0, 24], sizes = [8, 8], strides = [1, 1]} : vector<16x32xf32> to vector<8x8xf32>
    %78 = vector.extract_strided_slice %14 {offsets = [0, 24], sizes = [8, 8], strides = [1, 1]} : vector<16x32xf32> to vector<8x8xf32>
    %79 = tpu.transpose %77, [1, 0] : vector<8x8xf32> -> vector<8x8xf32>
    %cst_25 = arith.constant dense<0.000000e+00> : vector<8x8xf32>
    %80 = tpu.matmul %76, %79, %cst_25 {dimension_numbers = #tpu.dot_dimension_numbers<[1], [0], [0], [1], [0, 0, 1, 1], [], []>} : vector<8x8xf32>, vector<8x8xf32>, vector<8x8xf32> -> vector<8x8xf32>
    %cst_26 = arith.constant 0.353553385 : f32
    %81 = vector.broadcast %cst_26 : f32 to vector<8x8xf32>
    %82 = arith.mulf %80, %81 : vector<8x8xf32>
    %83 = vector.broadcast %15 : vector<1x8xf32> to vector<8x8xf32>
    %84 = arith.addf %82, %83 : vector<8x8xf32>
    %cst_27 = arith.constant dense<0xFF800000> : vector<8xf32>
    %85 = vector.multi_reduction <maximumf>, %84, %cst_27 [1] : vector<8x8xf32> to vector<8xf32>
    %86 = vector.shape_cast %85 : vector<8xf32> to vector<8x1xf32>
    %87 = vector.broadcast %86 : vector<8x1xf32> to vector<8x8xf32>
    %88 = arith.subf %84, %87 : vector<8x8xf32>
    %89 = math.exp %88 : vector<8x8xf32>
    %cst_28 = arith.constant dense<0.000000e+00> : vector<8xf32>
    %90 = vector.multi_reduction <add>, %89, %cst_28 [1] : vector<8x8xf32> to vector<8xf32>
    %91 = vector.shape_cast %90 : vector<8xf32> to vector<8x1xf32>
    %92 = tpu.reciprocal %91 {approx = true} : vector<8x1xf32> -> vector<8x1xf32>
    %93 = vector.broadcast %92 : vector<8x1xf32> to vector<8x8xf32>
    %94 = arith.mulf %89, %93 : vector<8x8xf32>
    %cst_29 = arith.constant dense<0.000000e+00> : vector<8x8xf32>
    %95 = tpu.matmul %94, %78, %cst_29 {dimension_numbers = #tpu.dot_dimension_numbers<[1], [0], [0], [1], [0, 0, 1, 1], [], []>} : vector<8x8xf32>, vector<8x8xf32>, vector<8x8xf32> -> vector<8x8xf32>
    %96 = tpu.concatenate %35, %55, %75, %95 in 1 : vector<8x8xf32>, vector<8x8xf32>, vector<8x8xf32>, vector<8x8xf32> -> vector<8x32xf32>
    %97 = vector.extract_strided_slice %4 {offsets = [1, 0], sizes = [1, 8], strides = [1, 1]} : vector<2x8xf32> to vector<1x8xf32>
    %98 = vector.extract_strided_slice %12 {offsets = [8, 0], sizes = [8, 8], strides = [1, 1]} : vector<16x32xf32> to vector<8x8xf32>
    %99 = vector.extract_strided_slice %13 {offsets = [8, 0], sizes = [8, 8], strides = [1, 1]} : vector<16x32xf32> to vector<8x8xf32>
    %100 = vector.extract_strided_slice %14 {offsets = [8, 0], sizes = [8, 8], strides = [1, 1]} : vector<16x32xf32> to vector<8x8xf32>
    %101 = tpu.transpose %99, [1, 0] : vector<8x8xf32> -> vector<8x8xf32>
    %cst_30 = arith.constant dense<0.000000e+00> : vector<8x8xf32>
    %102 = tpu.matmul %98, %101, %cst_30 {dimension_numbers = #tpu.dot_dimension_numbers<[1], [0], [0], [1], [0, 0, 1, 1], [], []>} : vector<8x8xf32>, vector<8x8xf32>, vector<8x8xf32> -> vector<8x8xf32>
    %cst_31 = arith.constant 0.353553385 : f32
    %103 = vector.broadcast %cst_31 : f32 to vector<8x8xf32>
    %104 = arith.mulf %102, %103 : vector<8x8xf32>
    %105 = vector.broadcast %97 : vector<1x8xf32> to vector<8x8xf32>
    %106 = arith.addf %104, %105 : vector<8x8xf32>
    %cst_32 = arith.constant dense<0xFF800000> : vector<8xf32>
    %107 = vector.multi_reduction <maximumf>, %106, %cst_32 [1] : vector<8x8xf32> to vector<8xf32>
    %108 = vector.shape_cast %107 : vector<8xf32> to vector<8x1xf32>
    %109 = vector.broadcast %108 : vector<8x1xf32> to vector<8x8xf32>
    %110 = arith.subf %106, %109 : vector<8x8xf32>
    %111 = math.exp %110 : vector<8x8xf32>
    %cst_33 = arith.constant dense<0.000000e+00> : vector<8xf32>
    %112 = vector.multi_reduction <add>, %111, %cst_33 [1] : vector<8x8xf32> to vector<8xf32>
    %113 = vector.shape_cast %112 : vector<8xf32> to vector<8x1xf32>
    %114 = tpu.reciprocal %113 {approx = true} : vector<8x1xf32> -> vector<8x1xf32>
    %115 = vector.broadcast %114 : vector<8x1xf32> to vector<8x8xf32>
    %116 = arith.mulf %111, %115 : vector<8x8xf32>
    %cst_34 = arith.constant dense<0.000000e+00> : vector<8x8xf32>
    %117 = tpu.matmul %116, %100, %cst_34 {dimension_numbers = #tpu.dot_dimension_numbers<[1], [0], [0], [1], [0, 0, 1, 1], [], []>} : vector<8x8xf32>, vector<8x8xf32>, vector<8x8xf32> -> vector<8x8xf32>
    %118 = vector.extract_strided_slice %12 {offsets = [8, 8], sizes = [8, 8], strides = [1, 1]} : vector<16x32xf32> to vector<8x8xf32>
    %119 = vector.extract_strided_slice %13 {offsets = [8, 8], sizes = [8, 8], strides = [1, 1]} : vector<16x32xf32> to vector<8x8xf32>
    %120 = vector.extract_strided_slice %14 {offsets = [8, 8], sizes = [8, 8], strides = [1, 1]} : vector<16x32xf32> to vector<8x8xf32>
    %121 = tpu.transpose %119, [1, 0] : vector<8x8xf32> -> vector<8x8xf32>
    %cst_35 = arith.constant dense<0.000000e+00> : vector<8x8xf32>
    %122 = tpu.matmul %118, %121, %cst_35 {dimension_numbers = #tpu.dot_dimension_numbers<[1], [0], [0], [1], [0, 0, 1, 1], [], []>} : vector<8x8xf32>, vector<8x8xf32>, vector<8x8xf32> -> vector<8x8xf32>
    %cst_36 = arith.constant 0.353553385 : f32
    %123 = vector.broadcast %cst_36 : f32 to vector<8x8xf32>
    %124 = arith.mulf %122, %123 : vector<8x8xf32>
    %125 = vector.broadcast %97 : vector<1x8xf32> to vector<8x8xf32>
    %126 = arith.addf %124, %125 : vector<8x8xf32>
    %cst_37 = arith.constant dense<0xFF800000> : vector<8xf32>
    %127 = vector.multi_reduction <maximumf>, %126, %cst_37 [1] : vector<8x8xf32> to vector<8xf32>
    %128 = vector.shape_cast %127 : vector<8xf32> to vector<8x1xf32>
    %129 = vector.broadcast %128 : vector<8x1xf32> to vector<8x8xf32>
    %130 = arith.subf %126, %129 : vector<8x8xf32>
    %131 = math.exp %130 : vector<8x8xf32>
    %cst_38 = arith.constant dense<0.000000e+00> : vector<8xf32>
    %132 = vector.multi_reduction <add>, %131, %cst_38 [1] : vector<8x8xf32> to vector<8xf32>
    %133 = vector.shape_cast %132 : vector<8xf32> to vector<8x1xf32>
    %134 = tpu.reciprocal %133 {approx = true} : vector<8x1xf32> -> vector<8x1xf32>
    %135 = vector.broadcast %134 : vector<8x1xf32> to vector<8x8xf32>
    %136 = arith.mulf %131, %135 : vector<8x8xf32>
    %cst_39 = arith.constant dense<0.000000e+00> : vector<8x8xf32>
    %137 = tpu.matmul %136, %120, %cst_39 {dimension_numbers = #tpu.dot_dimension_numbers<[1], [0], [0], [1], [0, 0, 1, 1], [], []>} : vector<8x8xf32>, vector<8x8xf32>, vector<8x8xf32> -> vector<8x8xf32>
    %138 = vector.extract_strided_slice %12 {offsets = [8, 16], sizes = [8, 8], strides = [1, 1]} : vector<16x32xf32> to vector<8x8xf32>
    %139 = vector.extract_strided_slice %13 {offsets = [8, 16], sizes = [8, 8], strides = [1, 1]} : vector<16x32xf32> to vector<8x8xf32>
    %140 = vector.extract_strided_slice %14 {offsets = [8, 16], sizes = [8, 8], strides = [1, 1]} : vector<16x32xf32> to vector<8x8xf32>
    %141 = tpu.transpose %139, [1, 0] : vector<8x8xf32> -> vector<8x8xf32>
    %cst_40 = arith.constant dense<0.000000e+00> : vector<8x8xf32>
    %142 = tpu.matmul %138, %141, %cst_40 {dimension_numbers = #tpu.dot_dimension_numbers<[1], [0], [0], [1], [0, 0, 1, 1], [], []>} : vector<8x8xf32>, vector<8x8xf32>, vector<8x8xf32> -> vector<8x8xf32>
    %cst_41 = arith.constant 0.353553385 : f32
    %143 = vector.broadcast %cst_41 : f32 to vector<8x8xf32>
    %144 = arith.mulf %142, %143 : vector<8x8xf32>
    %145 = vector.broadcast %97 : vector<1x8xf32> to vector<8x8xf32>
    %146 = arith.addf %144, %145 : vector<8x8xf32>
    %cst_42 = arith.constant dense<0xFF800000> : vector<8xf32>
    %147 = vector.multi_reduction <maximumf>, %146, %cst_42 [1] : vector<8x8xf32> to vector<8xf32>
    %148 = vector.shape_cast %147 : vector<8xf32> to vector<8x1xf32>
    %149 = vector.broadcast %148 : vector<8x1xf32> to vector<8x8xf32>
    %150 = arith.subf %146, %149 : vector<8x8xf32>
    %151 = math.exp %150 : vector<8x8xf32>
    %cst_43 = arith.constant dense<0.000000e+00> : vector<8xf32>
    %152 = vector.multi_reduction <add>, %151, %cst_43 [1] : vector<8x8xf32> to vector<8xf32>
    %153 = vector.shape_cast %152 : vector<8xf32> to vector<8x1xf32>
    %154 = tpu.reciprocal %153 {approx = true} : vector<8x1xf32> -> vector<8x1xf32>
    %155 = vector.broadcast %154 : vector<8x1xf32> to vector<8x8xf32>
    %156 = arith.mulf %151, %155 : vector<8x8xf32>
    %cst_44 = arith.constant dense<0.000000e+00> : vector<8x8xf32>
    %157 = tpu.matmul %156, %140, %cst_44 {dimension_numbers = #tpu.dot_dimension_numbers<[1], [0], [0], [1], [0, 0, 1, 1], [], []>} : vector<8x8xf32>, vector<8x8xf32>, vector<8x8xf32> -> vector<8x8xf32>
    %158 = vector.extract_strided_slice %12 {offsets = [8, 24], sizes = [8, 8], strides = [1, 1]} : vector<16x32xf32> to vector<8x8xf32>
    %159 = vector.extract_strided_slice %13 {offsets = [8, 24], sizes = [8, 8], strides = [1, 1]} : vector<16x32xf32> to vector<8x8xf32>
    %160 = vector.extract_strided_slice %14 {offsets = [8, 24], sizes = [8, 8], strides = [1, 1]} : vector<16x32xf32> to vector<8x8xf32>
    %161 = tpu.transpose %159, [1, 0] : vector<8x8xf32> -> vector<8x8xf32>
    %cst_45 = arith.constant dense<0.000000e+00> : vector<8x8xf32>
    %162 = tpu.matmul %158, %161, %cst_45 {dimension_numbers = #tpu.dot_dimension_numbers<[1], [0], [0], [1], [0, 0, 1, 1], [], []>} : vector<8x8xf32>, vector<8x8xf32>, vector<8x8xf32> -> vector<8x8xf32>
    %cst_46 = arith.constant 0.353553385 : f32
    %163 = vector.broadcast %cst_46 : f32 to vector<8x8xf32>
    %164 = arith.mulf %162, %163 : vector<8x8xf32>
    %165 = vector.broadcast %97 : vector<1x8xf32> to vector<8x8xf32>
    %166 = arith.addf %164, %165 : vector<8x8xf32>
    %cst_47 = arith.constant dense<0xFF800000> : vector<8xf32>
    %167 = vector.multi_reduction <maximumf>, %166, %cst_47 [1] : vector<8x8xf32> to vector<8xf32>
    %168 = vector.shape_cast %167 : vector<8xf32> to vector<8x1xf32>
    %169 = vector.broadcast %168 : vector<8x1xf32> to vector<8x8xf32>
    %170 = arith.subf %166, %169 : vector<8x8xf32>
    %171 = math.exp %170 : vector<8x8xf32>
    %cst_48 = arith.constant dense<0.000000e+00> : vector<8xf32>
    %172 = vector.multi_reduction <add>, %171, %cst_48 [1] : vector<8x8xf32> to vector<8xf32>
    %173 = vector.shape_cast %172 : vector<8xf32> to vector<8x1xf32>
    %174 = tpu.reciprocal %173 {approx = true} : vector<8x1xf32> -> vector<8x1xf32>
    %175 = vector.broadcast %174 : vector<8x1xf32> to vector<8x8xf32>
    %176 = arith.mulf %171, %175 : vector<8x8xf32>
    %cst_49 = arith.constant dense<0.000000e+00> : vector<8x8xf32>
    %177 = tpu.matmul %176, %160, %cst_49 {dimension_numbers = #tpu.dot_dimension_numbers<[1], [0], [0], [1], [0, 0, 1, 1], [], []>} : vector<8x8xf32>, vector<8x8xf32>, vector<8x8xf32> -> vector<8x8xf32>
    %178 = tpu.concatenate %117, %137, %157, %177 in 1 : vector<8x8xf32>, vector<8x8xf32>, vector<8x8xf32>, vector<8x8xf32> -> vector<8x32xf32>
    %179 = tpu.concatenate %96, %178 in 0 : vector<8x32xf32>, vector<8x32xf32> -> vector<16x32xf32>
    %c0_50 = arith.constant 0 : index
    %c0_51 = arith.constant 0 : index
    %c0_52 = arith.constant 0 : index
    %180 = vector.load %arg7[%c0_50, %c0_51, %c0_52] : memref<1x32x32xf32, #tpu.memory_space<vmem>>, vector<1x32x32xf32>
    %181 = vector.shape_cast %180 : vector<1x32x32xf32> to vector<32x32xf32>
    %cst_53 = arith.constant dense<0.000000e+00> : vector<16x32xf32>
    %182 = tpu.matmul %179, %181, %cst_53 {dimension_numbers = #tpu.dot_dimension_numbers<[1], [0], [0], [1], [0, 0, 1, 1], [], []>} : vector<16x32xf32>, vector<32x32xf32>, vector<16x32xf32> -> vector<16x32xf32>
    %c0_54 = arith.constant 0 : index
    %c0_55 = arith.constant 0 : index
    %c0_56 = arith.constant 0 : index
    %183 = vector.load %arg8[%c0_54, %c0_55, %c0_56] : memref<1x1x32xf32, #tpu.memory_space<vmem>>, vector<1x1x32xf32>
    %184 = vector.shape_cast %183 : vector<1x1x32xf32> to vector<1x32xf32>
    %185 = vector.broadcast %184 : vector<1x32xf32> to vector<16x32xf32>
    %186 = arith.addf %182, %185 : vector<16x32xf32>
    %187 = arith.addf %186, %3 : vector<16x32xf32>
    %c0_57 = arith.constant 0 : index
    %c0_58 = arith.constant 0 : index
    %c0_59 = arith.constant 0 : index
    %188 = vector.load %arg9[%c0_57, %c0_58, %c0_59] : memref<1x1x32xf32, #tpu.memory_space<vmem>>, vector<1x1x32xf32>
    %189 = vector.shape_cast %188 : vector<1x1x32xf32> to vector<1x32xf32>
    %c0_60 = arith.constant 0 : index
    %c0_61 = arith.constant 0 : index
    %c0_62 = arith.constant 0 : index
    %190 = vector.load %arg10[%c0_60, %c0_61, %c0_62] : memref<1x1x32xf32, #tpu.memory_space<vmem>>, vector<1x1x32xf32>
    %191 = vector.shape_cast %190 : vector<1x1x32xf32> to vector<1x32xf32>
    %cst_63 = arith.constant dense<0.000000e+00> : vector<16xf32>
    %192 = vector.multi_reduction <add>, %187, %cst_63 [1] : vector<16x32xf32> to vector<16xf32>
    %193 = vector.shape_cast %192 : vector<16xf32> to vector<16x1xf32>
    %cst_64 = arith.constant 3.200000e+01 : f32
    %194 = vector.broadcast %cst_64 : f32 to vector<16x1xf32>
    %195 = arith.divf %193, %194 : vector<16x1xf32>
    %196 = vector.broadcast %195 : vector<16x1xf32> to vector<16x32xf32>
    %197 = arith.subf %187, %196 : vector<16x32xf32>
    %198 = vector.broadcast %195 : vector<16x1xf32> to vector<16x32xf32>
    %199 = arith.subf %187, %198 : vector<16x32xf32>
    %200 = arith.mulf %197, %199 : vector<16x32xf32>
    %cst_65 = arith.constant dense<0.000000e+00> : vector<16xf32>
    %201 = vector.multi_reduction <add>, %200, %cst_65 [1] : vector<16x32xf32> to vector<16xf32>
    %202 = vector.shape_cast %201 : vector<16xf32> to vector<16x1xf32>
    %cst_66 = arith.constant 3.200000e+01 : f32
    %203 = vector.broadcast %cst_66 : f32 to vector<16x1xf32>
    %204 = arith.divf %202, %203 : vector<16x1xf32>
    %205 = vector.broadcast %195 : vector<16x1xf32> to vector<16x32xf32>
    %206 = arith.subf %187, %205 : vector<16x32xf32>
    %cst_67 = arith.constant 9.99999996E-13 : f32
    %207 = vector.broadcast %cst_67 : f32 to vector<16x1xf32>
    %208 = arith.addf %204, %207 : vector<16x1xf32>
    %209 = math.rsqrt %208 : vector<16x1xf32>
    %210 = vector.broadcast %209 : vector<16x1xf32> to vector<16x32xf32>
    %211 = arith.mulf %206, %210 : vector<16x32xf32>
    %212 = vector.broadcast %189 : vector<1x32xf32> to vector<16x32xf32>
    %213 = arith.mulf %211, %212 : vector<16x32xf32>
    %214 = vector.broadcast %191 : vector<1x32xf32> to vector<16x32xf32>
    %215 = arith.addf %213, %214 : vector<16x32xf32>
    %c0_68 = arith.constant 0 : index
    %c0_69 = arith.constant 0 : index
    %c0_70 = arith.constant 0 : index
    %216 = vector.load %arg11[%c0_68, %c0_69, %c0_70] : memref<1x32x64xf32, #tpu.memory_space<vmem>>, vector<1x32x64xf32>
    %217 = vector.shape_cast %216 : vector<1x32x64xf32> to vector<32x64xf32>
    %cst_71 = arith.constant dense<0.000000e+00> : vector<16x64xf32>
    %218 = tpu.matmul %215, %217, %cst_71 {dimension_numbers = #tpu.dot_dimension_numbers<[1], [0], [0], [1], [0, 0, 1, 1], [], []>} : vector<16x32xf32>, vector<32x64xf32>, vector<16x64xf32> -> vector<16x64xf32>
    %c0_72 = arith.constant 0 : index
    %c0_73 = arith.constant 0 : index
    %c0_74 = arith.constant 0 : index
    %219 = vector.load %arg12[%c0_72, %c0_73, %c0_74] : memref<1x1x64xf32, #tpu.memory_space<vmem>>, vector<1x1x64xf32>
    %220 = vector.shape_cast %219 : vector<1x1x64xf32> to vector<1x64xf32>
    %221 = vector.broadcast %220 : vector<1x64xf32> to vector<16x64xf32>
    %222 = arith.addf %218, %221 : vector<16x64xf32>
    %223 = arith.mulf %222, %222 : vector<16x64xf32>
    %224 = arith.mulf %222, %223 : vector<16x64xf32>
    %cst_75 = arith.constant 4.471500e-02 : f32
    %225 = vector.broadcast %cst_75 : f32 to vector<16x64xf32>
    %226 = arith.mulf %225, %224 : vector<16x64xf32>
    %227 = arith.addf %222, %226 : vector<16x64xf32>
    %cst_76 = arith.constant 0.797884583 : f32
    %228 = vector.broadcast %cst_76 : f32 to vector<16x64xf32>
    %229 = arith.mulf %228, %227 : vector<16x64xf32>
    %230 = math.tanh %229 : vector<16x64xf32>
    %cst_77 = arith.constant 1.000000e+00 : f32
    %231 = vector.broadcast %cst_77 : f32 to vector<16x64xf32>
    %232 = arith.addf %231, %230 : vector<16x64xf32>
    %cst_78 = arith.constant 5.000000e-01 : f32
    %233 = vector.broadcast %cst_78 : f32 to vector<16x64xf32>
    %234 = arith.mulf %233, %232 : vector<16x64xf32>
    %235 = arith.mulf %222, %234 : vector<16x64xf32>
    %c0_79 = arith.constant 0 : index
    %c0_80 = arith.constant 0 : index
    %c0_81 = arith.constant 0 : index
    %236 = vector.load %arg13[%c0_79, %c0_80, %c0_81] : memref<1x64x32xf32, #tpu.memory_space<vmem>>, vector<1x64x32xf32>
    %237 = vector.shape_cast %236 : vector<1x64x32xf32> to vector<64x32xf32>
    %cst_82 = arith.constant dense<0.000000e+00> : vector<16x32xf32>
    %238 = tpu.matmul %235, %237, %cst_82 {dimension_numbers = #tpu.dot_dimension_numbers<[1], [0], [0], [1], [0, 0, 1, 1], [], []>} : vector<16x64xf32>, vector<64x32xf32>, vector<16x32xf32> -> vector<16x32xf32>
    %c0_83 = arith.constant 0 : index
    %c0_84 = arith.constant 0 : index
    %c0_85 = arith.constant 0 : index
    %239 = vector.load %arg14[%c0_83, %c0_84, %c0_85] : memref<1x1x32xf32, #tpu.memory_space<vmem>>, vector<1x1x32xf32>
    %240 = vector.shape_cast %239 : vector<1x1x32xf32> to vector<1x32xf32>
    %241 = vector.broadcast %240 : vector<1x32xf32> to vector<16x32xf32>
    %242 = arith.addf %238, %241 : vector<16x32xf32>
    %243 = arith.addf %242, %215 : vector<16x32xf32>
    %c0_86 = arith.constant 0 : index
    %c0_87 = arith.constant 0 : index
    %c0_88 = arith.constant 0 : index
    %244 = vector.load %arg15[%c0_86, %c0_87, %c0_88] : memref<1x1x32xf32, #tpu.memory_space<vmem>>, vector<1x1x32xf32>
    %245 = vector.shape_cast %244 : vector<1x1x32xf32> to vector<1x32xf32>
    %c0_89 = arith.constant 0 : index
    %c0_90 = arith.constant 0 : index
    %c0_91 = arith.constant 0 : index
    %246 = vector.load %arg16[%c0_89, %c0_90, %c0_91] : memref<1x1x32xf32, #tpu.memory_space<vmem>>, vector<1x1x32xf32>
    %247 = vector.shape_cast %246 : vector<1x1x32xf32> to vector<1x32xf32>
    %cst_92 = arith.constant dense<0.000000e+00> : vector<16xf32>
    %248 = vector.multi_reduction <add>, %243, %cst_92 [1] : vector<16x32xf32> to vector<16xf32>
    %249 = vector.shape_cast %248 : vector<16xf32> to vector<16x1xf32>
    %cst_93 = arith.constant 3.200000e+01 : f32
    %250 = vector.broadcast %cst_93 : f32 to vector<16x1xf32>
    %251 = arith.divf %249, %250 : vector<16x1xf32>
    %252 = vector.broadcast %251 : vector<16x1xf32> to vector<16x32xf32>
    %253 = arith.subf %243, %252 : vector<16x32xf32>
    %254 = vector.broadcast %251 : vector<16x1xf32> to vector<16x32xf32>
    %255 = arith.subf %243, %254 : vector<16x32xf32>
    %256 = arith.mulf %253, %255 : vector<16x32xf32>
    %cst_94 = arith.constant dense<0.000000e+00> : vector<16xf32>
    %257 = vector.multi_reduction <add>, %256, %cst_94 [1] : vector<16x32xf32> to vector<16xf32>
    %258 = vector.shape_cast %257 : vector<16xf32> to vector<16x1xf32>
    %cst_95 = arith.constant 3.200000e+01 : f32
    %259 = vector.broadcast %cst_95 : f32 to vector<16x1xf32>
    %260 = arith.divf %258, %259 : vector<16x1xf32>
    %261 = vector.broadcast %251 : vector<16x1xf32> to vector<16x32xf32>
    %262 = arith.subf %243, %261 : vector<16x32xf32>
    %cst_96 = arith.constant 9.99999996E-13 : f32
    %263 = vector.broadcast %cst_96 : f32 to vector<16x1xf32>
    %264 = arith.addf %260, %263 : vector<16x1xf32>
    %265 = math.rsqrt %264 : vector<16x1xf32>
    %266 = vector.broadcast %265 : vector<16x1xf32> to vector<16x32xf32>
    %267 = arith.mulf %262, %266 : vector<16x32xf32>
    %268 = vector.broadcast %245 : vector<1x32xf32> to vector<16x32xf32>
    %269 = arith.mulf %267, %268 : vector<16x32xf32>
    %270 = vector.broadcast %247 : vector<1x32xf32> to vector<16x32xf32>
    %271 = arith.addf %269, %270 : vector<16x32xf32>
    %c0_97 = arith.constant 0 : index
    %c0_98 = arith.constant 0 : index
    %272 = vector.load %arg18[%c0_97, %c0_98] : memref<16x32xf32, #tpu.memory_space<vmem>>, vector<16x32xf32>
    tpu.vector_store %arg18[%c0_97, %c0_98], %271 {strides = array<i32>} : memref<16x32xf32, #tpu.memory_space<vmem>>, vector<16x32xf32>,
    %273 = vector.extract_strided_slice %271 {offsets = [0, 0], sizes = [1, 32], strides = [1, 1]} : vector<16x32xf32> to vector<1x32xf32>
    %274 = vector.extract_strided_slice %271 {offsets = [8, 0], sizes = [1, 32], strides = [1, 1]} : vector<16x32xf32> to vector<1x32xf32>
    %275 = tpu.concatenate %273, %274 in 0 : vector<1x32xf32>, vector<1x32xf32> -> vector<2x32xf32>
    %c0_99 = arith.constant 0 : index
    %c0_100 = arith.constant 0 : index
    %276 = vector.load %arg17[%c0_99, %c0_100] : memref<2x32xf32, #tpu.memory_space<vmem>>, vector<2x32xf32>
    tpu.vector_store %arg17[%c0_99, %c0_100], %275 {strides = array<i32>} : memref<2x32xf32, #tpu.memory_space<vmem>>, vector<2x32xf32>,
    return
  }
  func.func @transform_0(%arg0: i32) -> (i32, i32) {
    %c0_i32 = arith.constant 0 : i32
    %c0_i32_0 = arith.constant 0 : i32
    %c0_i32_1 = arith.constant 0 : i32
    return %c0_i32, %c0_i32_0 : i32, i32
  }
  func.func @transform_1(%arg0: i32) -> (i32, i32) {
    %c0_i32 = arith.constant 0 : i32
    %c0_i32_0 = arith.constant 0 : i32
    %c0_i32_1 = arith.constant 0 : i32
    return %c0_i32, %c0_i32_0 : i32, i32
  }
  func.func @transform_2(%arg0: i32) -> (i32, i32) {
    %c0_i32 = arith.constant 0 : i32
    %c0_i32_0 = arith.constant 0 : i32
    %c0_i32_1 = arith.constant 0 : i32
    return %c0_i32, %c0_i32_0 : i32, i32
  }
  func.func @transform_3(%arg0: i32) -> (i32, i32) {
    %c0_i32 = arith.constant 0 : i32
    %c0_i32_0 = arith.constant 0 : i32
    %c0_i32_1 = arith.constant 0 : i32
    return %c0_i32, %c0_i32_0 : i32, i32
  }
  func.func @transform_4(%arg0: i32) -> (i32, i32, i32) {
    %c0_i32 = arith.constant 0 : i32
    %c0_i32_0 = arith.constant 0 : i32
    %c0_i32_1 = arith.constant 0 : i32
    return %arg0, %c0_i32, %c0_i32_0 : i32, i32, i32
  }
  func.func @transform_5(%arg0: i32) -> (i32, i32, i32) {
    %c0_i32 = arith.constant 0 : i32
    %c0_i32_0 = arith.constant 0 : i32
    %c0_i32_1 = arith.constant 0 : i32
    return %arg0, %c0_i32, %c0_i32_0 : i32, i32, i32
  }
  func.func @transform_6(%arg0: i32) -> (i32, i32, i32) {
    %c0_i32 = arith.constant 0 : i32
    %c0_i32_0 = arith.constant 0 : i32
    %c0_i32_1 = arith.constant 0 : i32
    return %arg0, %c0_i32, %c0_i32_0 : i32, i32, i32
  }
  func.func @transform_7(%arg0: i32) -> (i32, i32, i32) {
    %c0_i32 = arith.constant 0 : i32
    %c0_i32_0 = arith.constant 0 : i32
    %c0_i32_1 = arith.constant 0 : i32
    return %arg0, %c0_i32, %c0_i32_0 : i32, i32, i32
  }
  func.func @transform_8(%arg0: i32) -> (i32, i32, i32) {
    %c0_i32 = arith.constant 0 : i32
    %c0_i32_0 = arith.constant 0 : i32
    %c0_i32_1 = arith.constant 0 : i32
    return %arg0, %c0_i32, %c0_i32_0 : i32, i32, i32
  }
  func.func @transform_9(%arg0: i32) -> (i32, i32, i32) {
    %c0_i32 = arith.constant 0 : i32
    %c0_i32_0 = arith.constant 0 : i32
    %c0_i32_1 = arith.constant 0 : i32
    return %arg0, %c0_i32, %c0_i32_0 : i32, i32, i32
  }
  func.func @transform_10(%arg0: i32) -> (i32, i32, i32) {
    %c0_i32 = arith.constant 0 : i32
    %c0_i32_0 = arith.constant 0 : i32
    %c0_i32_1 = arith.constant 0 : i32
    return %arg0, %c0_i32, %c0_i32_0 : i32, i32, i32
  }
  func.func @transform_11(%arg0: i32) -> (i32, i32, i32) {
    %c0_i32 = arith.constant 0 : i32
    %c0_i32_0 = arith.constant 0 : i32
    %c0_i32_1 = arith.constant 0 : i32
    return %arg0, %c0_i32, %c0_i32_0 : i32, i32, i32
  }
  func.func @transform_12(%arg0: i32) -> (i32, i32, i32) {
    %c0_i32 = arith.constant 0 : i32
    %c0_i32_0 = arith.constant 0 : i32
    %c0_i32_1 = arith.constant 0 : i32
    return %arg0, %c0_i32, %c0_i32_0 : i32, i32, i32
  }
  func.func @transform_13(%arg0: i32) -> (i32, i32, i32) {
    %c0_i32 = arith.constant 0 : i32
    %c0_i32_0 = arith.constant 0 : i32
    %c0_i32_1 = arith.constant 0 : i32
    return %arg0, %c0_i32, %c0_i32_0 : i32, i32, i32
  }
  func.func @transform_14(%arg0: i32) -> (i32, i32, i32) {
    %c0_i32 = arith.constant 0 : i32
    %c0_i32_0 = arith.constant 0 : i32
    %c0_i32_1 = arith.constant 0 : i32
    return %arg0, %c0_i32, %c0_i32_0 : i32, i32, i32
  }
  func.func @transform_15(%arg0: i32) -> (i32, i32, i32) {
    %c0_i32 = arith.constant 0 : i32
    %c0_i32_0 = arith.constant 0 : i32
    %c0_i32_1 = arith.constant 0 : i32
    return %arg0, %c0_i32, %c0_i32_0 : i32, i32, i32
  }
  func.func @transform_16(%arg0: i32) -> (i32, i32) {
    %c0_i32 = arith.constant 0 : i32
    %c0_i32_0 = arith.constant 0 : i32
    %c0_i32_1 = arith.constant 0 : i32
    return %c0_i32, %c0_i32_0 : i32, i32
  }
}

</mosaic_0001>

<llo_original>
// kernel: tpu_custom_call.1
$region0: #{tpu_custom_call.1}
  #allocation0 [shape = 'u32[]', space=smem, size = 0x4, offset = 0x4, fixed_abs, tag = 'smem constant byte address 0x4 - core index']
  #allocation1 [shape = 'u32[144,128]{1,0:T(1,128)}', space=vmem, size = 0x12000, scoped, tag = 'internal scratch']
  #allocation2 [shape = 'f32[16,32]{1,0:T(8,128)}', space=vmem, size = 0x2000, scoped, tag = 'scratch operand']
  %s0 = inlined_call_operand.hbm [shape: f32[16,32], index: 0, kind: input, shape index: {}]
  %s1 = inlined_call_operand.vmem [shape: f32[2,8], index: 1, kind: input, shape index: {}]
  %s2 = inlined_call_operand.hbm [shape: f32[1,32], index: 2, kind: input, shape index: {}]
  %s3 = inlined_call_operand.hbm [shape: f32[1,32], index: 3, kind: input, shape index: {}]
  %s4 = inlined_call_operand.vmem [shape: f32[2,32,96], index: 4, kind: input, shape index: {}]
  %s5 = inlined_call_operand.vmem [shape: f32[2,1,96], index: 5, kind: input, shape index: {}]
  %s6 = inlined_call_operand.vmem [shape: f32[2,32,32], index: 6, kind: input, shape index: {}]
  %s7 = inlined_call_operand.vmem [shape: f32[2,1,32], index: 7, kind: input, shape index: {}]
  %s8 = inlined_call_operand.vmem [shape: f32[2,1,32], index: 8, kind: input, shape index: {}]
  %s9 = inlined_call_operand.vmem [shape: f32[2,1,32], index: 9, kind: input, shape index: {}]
  %s10 = inlined_call_operand.vmem [shape: f32[2,32,64], index: 10, kind: input, shape index: {}]
  %s11 = inlined_call_operand.vmem [shape: f32[2,1,64], index: 11, kind: input, shape index: {}]
  %s12 = inlined_call_operand.vmem [shape: f32[2,64,32], index: 12, kind: input, shape index: {}]
  %s13 = inlined_call_operand.vmem [shape: f32[2,1,32], index: 13, kind: input, shape index: {}]
  %s14 = inlined_call_operand.vmem [shape: f32[2,1,32], index: 14, kind: input, shape index: {}]
  %s15 = inlined_call_operand.vmem [shape: f32[2,1,32], index: 15, kind: input, shape index: {}]
  %s16 = inlined_call_operand.hbm [shape: f32[2,32], index: 16, kind: output, shape index: {}]
  %s17 = sld [smem:[#allocation0]]
  $region113: #{tpu_custom_call.1} parent=0
    _
  %s19 = ssub.s32 1, %s17
  %s20 = scalar_select 0, %s19, %s17
  $region1: #{tpu_custom_call.1} parent=0
    #allocation3 [shape = 'u8[8192]{0}', space=vmem, size = 0x2000, scoped, tag = 'input window, operand 0, single buffered']
    #allocation4 [shape = 's32[2]{0}', space=sflag, size = 0x8, scoped, tag = 'scoped memory for tpu_custom_call.1']
    #allocation5 [shape = 's32[2]{0}', space=sflag, size = 0x8, scoped, tag = 'scoped memory for tpu_custom_call.1']
    #allocation6 [shape = 'u8[512]{0}', space=vmem, size = 0x400, scoped, tag = 'input window, operand 2, single buffered']
    #allocation7 [shape = 's32[1]{0}', space=sflag, size = 0x4, scoped, tag = 'scoped memory for tpu_custom_call.1']
    #allocation8 [shape = 'u8[512]{0}', space=vmem, size = 0x400, scoped, tag = 'input window, operand 3, single buffered']
    #allocation9 [shape = 'u8[1024]{0}', space=vmem, size = 0x400, scoped, tag = 'output window, operand 0, single buffered']
    %21 = vsyncpa [#allocation4], 0
    %22 = vsyncpa [#allocation7], 0
    %23 = vsyncpa [#allocation5], 0
    loop: start=0, step=1, limit=4
    $region2: #{tpu_custom_call.1} parent=1 // loop_pre_header
      _
    $region3: #{tpu_custom_call.1} parent=1 // loop_header
      %s25 = sphi 0, %s29
      %p26 = scmp.ge.s32.totalorder %s25, 4
      %s33 = sphi 0, %s33
      %s35 = sphi 0, %s33
      %s36 = sphi 0, %s35
      %s50 = sphi 0, %s36
      %s54 = sphi 0, %s54
      %s56 = sphi 0, %s54
      %s57 = sphi 0, %s56
      %s71 = sphi 0, %s57
      %s75 = sphi 0, %s75
      %s77 = sphi 0, %s75
      %s78 = sphi 0, %s77
      %s92 = sphi 0, %s78
      %s96 = sphi 0, %s96
      %s98 = sphi 0, %s96
      %s99 = sphi 0, %s98
      %s113 = sphi 0, %s99
      %s119 = sphi 0, %s121
      %s122 = sphi 0, %s119
      %s123 = sphi 0, %s122
      %s139 = sphi 0, %s123
      %s145 = sphi 0, %s147
      %s148 = sphi 0, %s145
      %s149 = sphi 0, %s148
      %s165 = sphi 0, %s149
      %s171 = sphi 0, %s173
      %s174 = sphi 0, %s171
      %s175 = sphi 0, %s174
      %s191 = sphi 0, %s175
      %s197 = sphi 0, %s199
      %s200 = sphi 0, %s197
      %s201 = sphi 0, %s200
      %s217 = sphi 0, %s201
      %s223 = sphi 0, %s225
      %s226 = sphi 0, %s223
      %s227 = sphi 0, %s226
      %s243 = sphi 0, %s227
      %s249 = sphi 0, %s251
      %s252 = sphi 0, %s249
      %s253 = sphi 0, %s252
      %s269 = sphi 0, %s253
      %s275 = sphi 0, %s277
      %s278 = sphi 0, %s275
      %s279 = sphi 0, %s278
      %s295 = sphi 0, %s279
      %s301 = sphi 0, %s303
      %s304 = sphi 0, %s301
      %s305 = sphi 0, %s304
      %s321 = sphi 0, %s305
      %s327 = sphi 0, %s329
      %s330 = sphi 0, %s327
      %s331 = sphi 0, %s330
      %s347 = sphi 0, %s331
      %s353 = sphi 0, %s355
      %s356 = sphi 0, %s353
      %s357 = sphi 0, %s356
      %s373 = sphi 0, %s357
      %s379 = sphi 0, %s381
      %s382 = sphi 0, %s379
      %s383 = sphi 0, %s382
      %s399 = sphi 0, %s383
      %s405 = sphi 0, %s407
      %s408 = sphi 0, %s405
      %s409 = sphi 0, %s408
      %s425 = sphi 0, %s409
      %s429 = sphi 0, %s429
      %s431 = sphi 0, %s429
      %s432 = sphi 0, %s431
      %s446 = sphi 0, %s432
    $region4: #{tpu_custom_call.1} parent=1 // loop_header_branch
      %28 = sbr.rel (%p26) target = $region8
    $region5: #{tpu_custom_call.1} parent=1 // loop_body
      %s30 = ssub.s32 %s25, 1
      %s31 = ssub.s32 %s25, 2
      %s32 = sadd.s32 %s25, 1
      %s34 = sadd.s32 %s33, 1
      %p37 = scmp.eq.s32.totalorder %s25, 1
      %p38 = scmp.ne.s32.totalorder %s33, %s35
      %p39 = scmp.eq.s32.totalorder %s25, 0
      %p40 = por %p38, %p39
      %p41 = scmp.ne.s32.totalorder %s33, %s35
      %p42 = scmp.eq.s32.totalorder %s30, 1
      %p43 = por %p41, %p42
      %p44 = scmp.ne.s32.totalorder %s35, %s36
      %p45 = scmp.eq.s32.totalorder %s30, 0
      %p46 = por %p44, %p45
      %p47 = scmp.ne.s32.totalorder %s35, %s36
      %p48 = scmp.eq.s32.totalorder %s31, 1
      %p49 = por %p47, %p48
      %p51 = scmp.ne.s32.totalorder %s36, %s50
      %p52 = scmp.eq.s32.totalorder %s31, 0
      %p53 = por %p51, %p52
      %s55 = sadd.s32 %s54, 1
      %p58 = scmp.eq.s32.totalorder %s25, 1
      %p59 = scmp.ne.s32.totalorder %s54, %s56
      %p60 = scmp.eq.s32.totalorder %s25, 0
      %p61 = por %p59, %p60
      %p62 = scmp.ne.s32.totalorder %s54, %s56
      %p63 = scmp.eq.s32.totalorder %s30, 1
      %p64 = por %p62, %p63
      %p65 = scmp.ne.s32.totalorder %s56, %s57
      %p66 = scmp.eq.s32.totalorder %s30, 0
      %p67 = por %p65, %p66
      %p68 = scmp.ne.s32.totalorder %s56, %s57
      %p69 = scmp.eq.s32.totalorder %s31, 1
      %p70 = por %p68, %p69
      %p72 = scmp.ne.s32.totalorder %s57, %s71
      %p73 = scmp.eq.s32.totalorder %s31, 0
      %p74 = por %p72, %p73
      %s76 = sadd.s32 %s75, 1
      %p79 = scmp.eq.s32.totalorder %s25, 1
      %p80 = scmp.ne.s32.totalorder %s75, %s77
      %p81 = scmp.eq.s32.totalorder %s25, 0
      %p82 = por %p80, %p81
      %p83 = scmp.ne.s32.totalorder %s75, %s77
      %p84 = scmp.eq.s32.totalorder %s30, 1
      %p85 = por %p83, %p84
      %p86 = scmp.ne.s32.totalorder %s77, %s78
      %p87 = scmp.eq.s32.totalorder %s30, 0
      %p88 = por %p86, %p87
      %p89 = scmp.ne.s32.totalorder %s77, %s78
      %p90 = scmp.eq.s32.totalorder %s31, 1
      %p91 = por %p89, %p90
      %p93 = scmp.ne.s32.totalorder %s78, %s92
      %p94 = scmp.eq.s32.totalorder %s31, 0
      %p95 = por %p93, %p94
      %s97 = sadd.s32 %s96, 1
      %p100 = scmp.eq.s32.totalorder %s25, 1
      %p101 = scmp.ne.s32.totalorder %s96, %s98
      %p102 = scmp.eq.s32.totalorder %s25, 0
      %p103 = por %p101, %p102
      %p104 = scmp.ne.s32.totalorder %s96, %s98
      %p105 = scmp.eq.s32.totalorder %s30, 1
      %p106 = por %p104, %p105
      %p107 = scmp.ne.s32.totalorder %s98, %s99
      %p108 = scmp.eq.s32.totalorder %s30, 0
      %p109 = por %p107, %p108
      %p110 = scmp.ne.s32.totalorder %s98, %s99
      %p111 = scmp.eq.s32.totalorder %s31, 1
      %p112 = por %p110, %p111
      %p114 = scmp.ne.s32.totalorder %s99, %s113
      %p115 = scmp.eq.s32.totalorder %s31, 0
      %p116 = por %p114, %p115
      %s117 = ssub.s32 %s25, %s32
      %p118 = scmp.eq.s32.totalorder %s117, 0
      %s120 = sadd.s32 %s119, 1
      %s121 = scalar_select %p118, %s119, %s120
      %p124 = pneg %p118
      %p125 = scmp.eq.s32.totalorder %s25, 1
      %p126 = por %p124, %p125
      %p127 = scmp.ne.s32.totalorder %s119, %s122
      %p128 = scmp.eq.s32.totalorder %s25, 0
      %p129 = por %p127, %p128
      %p130 = scmp.ne.s32.totalorder %s119, %s122
      %p131 = scmp.eq.s32.totalorder %s30, 1
      %p132 = por %p130, %p131
      %p133 = scmp.ne.s32.totalorder %s122, %s123
      %p134 = scmp.eq.s32.totalorder %s30, 0
      %p135 = por %p133, %p134
      %p136 = scmp.ne.s32.totalorder %s122, %s123
      %p137 = scmp.eq.s32.totalorder %s31, 1
      %p138 = por %p136, %p137
      %p140 = scmp.ne.s32.totalorder %s123, %s139
      %p141 = scmp.eq.s32.totalorder %s31, 0
      %p142 = por %p140, %p141
      %s143 = ssub.s32 %s25, %s32
      %p144 = scmp.eq.s32.totalorder %s143, 0
      %s146 = sadd.s32 %s145, 1
      %s147 = scalar_select %p144, %s145, %s146
      %p150 = pneg %p144
      %p151 = scmp.eq.s32.totalorder %s25, 1
      %p152 = por %p150, %p151
      %p153 = scmp.ne.s32.totalorder %s145, %s148
      %p154 = scmp.eq.s32.totalorder %s25, 0
      %p155 = por %p153, %p154
      %p156 = scmp.ne.s32.totalorder %s145, %s148
      %p157 = scmp.eq.s32.totalorder %s30, 1
      %p158 = por %p156, %p157
      %p159 = scmp.ne.s32.totalorder %s148, %s149
      %p160 = scmp.eq.s32.totalorder %s30, 0
      %p161 = por %p159, %p160
      %p162 = scmp.ne.s32.totalorder %s148, %s149
      %p163 = scmp.eq.s32.totalorder %s31, 1
      %p164 = por %p162, %p163
      %p166 = scmp.ne.s32.totalorder %s149, %s165
      %p167 = scmp.eq.s32.totalorder %s31, 0
      %p168 = por %p166, %p167
      %s169 = ssub.s32 %s25, %s32
      %p170 = scmp.eq.s32.totalorder %s169, 0
      %s172 = sadd.s32 %s171, 1
      %s173 = scalar_select %p170, %s171, %s172
      %p176 = pneg %p170
      %p177 = scmp.eq.s32.totalorder %s25, 1
      %p178 = por %p176, %p177
      %p179 = scmp.ne.s32.totalorder %s171, %s174
      %p180 = scmp.eq.s32.totalorder %s25, 0
      %p181 = por %p179, %p180
      %p182 = scmp.ne.s32.totalorder %s171, %s174
      %p183 = scmp.eq.s32.totalorder %s30, 1
      %p184 = por %p182, %p183
      %p185 = scmp.ne.s32.totalorder %s174, %s175
      %p186 = scmp.eq.s32.totalorder %s30, 0
      %p187 = por %p185, %p186
      %p188 = scmp.ne.s32.totalorder %s174, %s175
      %p189 = scmp.eq.s32.totalorder %s31, 1
      %p190 = por %p188, %p189
      %p192 = scmp.ne.s32.totalorder %s175, %s191
      %p193 = scmp.eq.s32.totalorder %s31, 0
      %p194 = por %p192, %p193
      %s195 = ssub.s32 %s25, %s32
      %p196 = scmp.eq.s32.totalorder %s195, 0
      %s198 = sadd.s32 %s197, 1
      %s199 = scalar_select %p196, %s197, %s198
      %p202 = pneg %p196
      %p203 = scmp.eq.s32.totalorder %s25, 1
      %p204 = por %p202, %p203
      %p205 = scmp.ne.s32.totalorder %s197, %s200
      %p206 = scmp.eq.s32.totalorder %s25, 0
      %p207 = por %p205, %p206
      %p208 = scmp.ne.s32.totalorder %s197, %s200
      %p209 = scmp.eq.s32.totalorder %s30, 1
      %p210 = por %p208, %p209
      %p211 = scmp.ne.s32.totalorder %s200, %s201
      %p212 = scmp.eq.s32.totalorder %s30, 0
      %p213 = por %p211, %p212
      %p214 = scmp.ne.s32.totalorder %s200, %s201
      %p215 = scmp.eq.s32.totalorder %s31, 1
      %p216 = por %p214, %p215
      %p218 = scmp.ne.s32.totalorder %s201, %s217
      %p219 = scmp.eq.s32.totalorder %s31, 0
      %p220 = por %p218, %p219
      %s221 = ssub.s32 %s25, %s32
      %p222 = scmp.eq.s32.totalorder %s221, 0
      %s224 = sadd.s32 %s223, 1
      %s225 = scalar_select %p222, %s223, %s224
      %p228 = pneg %p222
      %p229 = scmp.eq.s32.totalorder %s25, 1
      %p230 = por %p228, %p229
      %p231 = scmp.ne.s32.totalorder %s223, %s226
      %p232 = scmp.eq.s32.totalorder %s25, 0
      %p233 = por %p231, %p232
      %p234 = scmp.ne.s32.totalorder %s223, %s226
      %p235 = scmp.eq.s32.totalorder %s30, 1
      %p236 = por %p234, %p235
      %p237 = scmp.ne.s32.totalorder %s226, %s227
      %p238 = scmp.eq.s32.totalorder %s30, 0
      %p239 = por %p237, %p238
      %p240 = scmp.ne.s32.totalorder %s226, %s227
      %p241 = scmp.eq.s32.totalorder %s31, 1
      %p242 = por %p240, %p241
      %p244 = scmp.ne.s32.totalorder %s227, %s243
      %p245 = scmp.eq.s32.totalorder %s31, 0
      %p246 = por %p244, %p245
      %s247 = ssub.s32 %s25, %s32
      %p248 = scmp.eq.s32.totalorder %s247, 0
      %s250 = sadd.s32 %s249, 1
      %s251 = scalar_select %p248, %s249, %s250
      %p254 = pneg %p248
      %p255 = scmp.eq.s32.totalorder %s25, 1
      %p256 = por %p254, %p255
      %p257 = scmp.ne.s32.totalorder %s249, %s252
      %p258 = scmp.eq.s32.totalorder %s25, 0
      %p259 = por %p257, %p258
      %p260 = scmp.ne.s32.totalorder %s249, %s252
      %p261 = scmp.eq.s32.totalorder %s30, 1
      %p262 = por %p260, %p261
      %p263 = scmp.ne.s32.totalorder %s252, %s253
      %p264 = scmp.eq.s32.totalorder %s30, 0
      %p265 = por %p263, %p264
      %p266 = scmp.ne.s32.totalorder %s252, %s253
      %p267 = scmp.eq.s32.totalorder %s31, 1
      %p268 = por %p266, %p267
      %p270 = scmp.ne.s32.totalorder %s253, %s269
      %p271 = scmp.eq.s32.totalorder %s31, 0
      %p272 = por %p270, %p271
      %s273 = ssub.s32 %s25, %s32
      %p274 = scmp.eq.s32.totalorder %s273, 0
      %s276 = sadd.s32 %s275, 1
      %s277 = scalar_select %p274, %s275, %s276
      %p280 = pneg %p274
      %p281 = scmp.eq.s32.totalorder %s25, 1
      %p282 = por %p280, %p281
      %p283 = scmp.ne.s32.totalorder %s275, %s278
      %p284 = scmp.eq.s32.totalorder %s25, 0
      %p285 = por %p283, %p284
      %p286 = scmp.ne.s32.totalorder %s275, %s278
      %p287 = scmp.eq.s32.totalorder %s30, 1
      %p288 = por %p286, %p287
      %p289 = scmp.ne.s32.totalorder %s278, %s279
      %p290 = scmp.eq.s32.totalorder %s30, 0
      %p291 = por %p289, %p290
      %p292 = scmp.ne.s32.totalorder %s278, %s279
      %p293 = scmp.eq.s32.totalorder %s31, 1
      %p294 = por %p292, %p293
      %p296 = scmp.ne.s32.totalorder %s279, %s295
      %p297 = scmp.eq.s32.totalorder %s31, 0
      %p298 = por %p296, %p297
      %s299 = ssub.s32 %s25, %s32
      %p300 = scmp.eq.s32.totalorder %s299, 0
      %s302 = sadd.s32 %s301, 1
      %s303 = scalar_select %p300, %s301, %s302
      %p306 = pneg %p300
      %p307 = scmp.eq.s32.totalorder %s25, 1
      %p308 = por %p306, %p307
      %p309 = scmp.ne.s32.totalorder %s301, %s304
      %p310 = scmp.eq.s32.totalorder %s25, 0
      %p311 = por %p309, %p310
      %p312 = scmp.ne.s32.totalorder %s301, %s304
      %p313 = scmp.eq.s32.totalorder %s30, 1
      %p314 = por %p312, %p313
      %p315 = scmp.ne.s32.totalorder %s304, %s305
      %p316 = scmp.eq.s32.totalorder %s30, 0
      %p317 = por %p315, %p316
      %p318 = scmp.ne.s32.totalorder %s304, %s305
      %p319 = scmp.eq.s32.totalorder %s31, 1
      %p320 = por %p318, %p319
      %p322 = scmp.ne.s32.totalorder %s305, %s321
      %p323 = scmp.eq.s32.totalorder %s31, 0
      %p324 = por %p322, %p323
      %s325 = ssub.s32 %s25, %s32
      %p326 = scmp.eq.s32.totalorder %s325, 0
      %s328 = sadd.s32 %s327, 1
      %s329 = scalar_select %p326, %s327, %s328
      %p332 = pneg %p326
      %p333 = scmp.eq.s32.totalorder %s25, 1
      %p334 = por %p332, %p333
      %p335 = scmp.ne.s32.totalorder %s327, %s330
      %p336 = scmp.eq.s32.totalorder %s25, 0
      %p337 = por %p335, %p336
      %p338 = scmp.ne.s32.totalorder %s327, %s330
      %p339 = scmp.eq.s32.totalorder %s30, 1
      %p340 = por %p338, %p339
      %p341 = scmp.ne.s32.totalorder %s330, %s331
      %p342 = scmp.eq.s32.totalorder %s30, 0
      %p343 = por %p341, %p342
      %p344 = scmp.ne.s32.totalorder %s330, %s331
      %p345 = scmp.eq.s32.totalorder %s31, 1
      %p346 = por %p344, %p345
      %p348 = scmp.ne.s32.totalorder %s331, %s347
      %p349 = scmp.eq.s32.totalorder %s31, 0
      %p350 = por %p348, %p349
      %s351 = ssub.s32 %s25, %s32
      %p352 = scmp.eq.s32.totalorder %s351, 0
      %s354 = sadd.s32 %s353, 1
      %s355 = scalar_select %p352, %s353, %s354
      %p358 = pneg %p352
      %p359 = scmp.eq.s32.totalorder %s25, 1
      %p360 = por %p358, %p359
      %p361 = scmp.ne.s32.totalorder %s353, %s356
      %p362 = scmp.eq.s32.totalorder %s25, 0
      %p363 = por %p361, %p362
      %p364 = scmp.ne.s32.totalorder %s353, %s356
      %p365 = scmp.eq.s32.totalorder %s30, 1
      %p366 = por %p364, %p365
      %p367 = scmp.ne.s32.totalorder %s356, %s357
      %p368 = scmp.eq.s32.totalorder %s30, 0
      %p369 = por %p367, %p368
      %p370 = scmp.ne.s32.totalorder %s356, %s357
      %p371 = scmp.eq.s32.totalorder %s31, 1
      %p372 = por %p370, %p371
      %p374 = scmp.ne.s32.totalorder %s357, %s373
      %p375 = scmp.eq.s32.totalorder %s31, 0
      %p376 = por %p374, %p375
      %s377 = ssub.s32 %s25, %s32
      %p378 = scmp.eq.s32.totalorder %s377, 0
      %s380 = sadd.s32 %s379, 1
      %s381 = scalar_select %p378, %s379, %s380
      %p384 = pneg %p378
      %p385 = scmp.eq.s32.totalorder %s25, 1
      %p386 = por %p384, %p385
      %p387 = scmp.ne.s32.totalorder %s379, %s382
      %p388 = scmp.eq.s32.totalorder %s25, 0
      %p389 = por %p387, %p388
      %p390 = scmp.ne.s32.totalorder %s379, %s382
      %p391 = scmp.eq.s32.totalorder %s30, 1
      %p392 = por %p390, %p391
      %p393 = scmp.ne.s32.totalorder %s382, %s383
      %p394 = scmp.eq.s32.totalorder %s30, 0
      %p395 = por %p393, %p394
      %p396 = scmp.ne.s32.totalorder %s382, %s383
      %p397 = scmp.eq.s32.totalorder %s31, 1
      %p398 = por %p396, %p397
      %p400 = scmp.ne.s32.totalorder %s383, %s399
      %p401 = scmp.eq.s32.totalorder %s31, 0
      %p402 = por %p400, %p401
      %s403 = ssub.s32 %s25, %s32
      %p404 = scmp.eq.s32.totalorder %s403, 0
      %s406 = sadd.s32 %s405, 1
      %s407 = scalar_select %p404, %s405, %s406
      %p410 = pneg %p404
      %p411 = scmp.eq.s32.totalorder %s25, 1
      %p412 = por %p410, %p411
      %p413 = scmp.ne.s32.totalorder %s405, %s408
      %p414 = scmp.eq.s32.totalorder %s25, 0
      %p415 = por %p413, %p414
      %p416 = scmp.ne.s32.totalorder %s405, %s408
      %p417 = scmp.eq.s32.totalorder %s30, 1
      %p418 = por %p416, %p417
      %p419 = scmp.ne.s32.totalorder %s408, %s409
      %p420 = scmp.eq.s32.totalorder %s30, 0
      %p421 = por %p419, %p420
      %p422 = scmp.ne.s32.totalorder %s408, %s409
      %p423 = scmp.eq.s32.totalorder %s31, 1
      %p424 = por %p422, %p423
      %p426 = scmp.ne.s32.totalorder %s409, %s425
      %p427 = scmp.eq.s32.totalorder %s31, 0
      %p428 = por %p426, %p427
      %s430 = sadd.s32 %s429, 1
      %p433 = scmp.eq.s32.totalorder %s25, 1
      %p434 = scmp.ne.s32.totalorder %s429, %s431
      %p435 = scmp.eq.s32.totalorder %s25, 0
      %p436 = por %p434, %p435
      %p437 = scmp.ne.s32.totalorder %s429, %s431
      %p438 = scmp.eq.s32.totalorder %s30, 1
      %p439 = por %p437, %p438
      %p440 = scmp.ne.s32.totalorder %s431, %s432
      %p441 = scmp.eq.s32.totalorder %s30, 0
      %p442 = por %p440, %p441
      %p443 = scmp.ne.s32.totalorder %s431, %s432
      %p444 = scmp.eq.s32.totalorder %s31, 1
      %p445 = por %p443, %p444
      %p447 = scmp.ne.s32.totalorder %s432, %s446
      %p448 = scmp.eq.s32.totalorder %s31, 0
      %p449 = por %p447, %p448
      %p450 = scmp.le.s32.totalorder 1, %s25
      %p451 = scmp.lt.s32.totalorder %s25, 3
      %p452 = pnand %p450, %p451
      %p453 = pneg %p452
      // Predicated region
      $region9: #{tpu_custom_call.1} parent=5 // pred_check
        _
      $region10: #{tpu_custom_call.1} parent=5 // pred_check_branch
        %455 = sbr.rel (%p452) target = $region12
      $region11: #{tpu_custom_call.1} parent=5 // pred_region
        %s456 = ssub.s32 %s25, 1
        // Predicated region
        $region13: #{tpu_custom_call.1} parent=11 // pred_check
          %p457 = pneg %p46
        $region14: #{tpu_custom_call.1} parent=11 // pred_check_branch
          %459 = sbr.rel (%p457) target = $region16
        $region15: #{tpu_custom_call.1} parent=11 // pred_region
          %s461 = ssub.s32 256, 256
          %462 = vsyncadd [#allocation4], %s461
          %s463 = sshll.u32 [#allocation3], 4
          %s464 = int_to_ptr.vmem [resolvable:$true] %s463
          %469 = dma.hbm_to_vmem [thread:$0]  %s0, 256, %s464, [#allocation4], 128, 128, 8
        $region16: #{tpu_custom_call.1} parent=11 // pred_fallthru
          _
        // Predicated region
        $region17: #{tpu_custom_call.1} parent=11 // pred_check
          %p470 = pneg %p67
        $region18: #{tpu_custom_call.1} parent=11 // pred_check_branch
          %472 = sbr.rel (%p470) target = $region20
        $region19: #{tpu_custom_call.1} parent=11 // pred_region
          _
        $region20: #{tpu_custom_call.1} parent=11 // pred_fallthru
          _
        // Predicated region
        $region21: #{tpu_custom_call.1} parent=11 // pred_check
          %p473 = pneg %p88
        $region22: #{tpu_custom_call.1} parent=11 // pred_check_branch
          %475 = sbr.rel (%p473) target = $region24
        $region23: #{tpu_custom_call.1} parent=11 // pred_region
          %s477 = ssub.s32 16, 16
          %478 = vsyncadd [#allocation7], %s477
          %s480 = sshll.u32 [#allocation6], 4
          %s481 = int_to_ptr.vmem [resolvable:$true] %s480
          %483 = dma.hbm_to_vmem [thread:$0]  %s2, 16, %s481, [#allocation7]
        $region24: #{tpu_custom_call.1} parent=11 // pred_fallthru
          _
        // Predicated region
        $region25: #{tpu_custom_call.1} parent=11 // pred_check
          %p484 = pneg %p109
        $region26: #{tpu_custom_call.1} parent=11 // pred_check_branch
          %486 = sbr.rel (%p484) target = $region28
        $region27: #{tpu_custom_call.1} parent=11 // pred_region
          %s488 = ssub.s32 16, 16
          %489 = vsyncadd [#allocation7], %s488
          %s491 = sshll.u32 [#allocation8], 4
          %s492 = int_to_ptr.vmem [resolvable:$true] %s491
          %494 = dma.hbm_to_vmem [thread:$0]  %s3, 16, %s492, [#allocation7]
        $region28: #{tpu_custom_call.1} parent=11 // pred_fallthru
          _
      $region12: #{tpu_custom_call.1} parent=5 // pred_fallthru
        _
      %p495 = scmp.lt.s32.totalorder %s25, 2
      // Predicated region
      $region29: #{tpu_custom_call.1} parent=5 // pred_check
        %p496 = pneg %p495
      $region30: #{tpu_custom_call.1} parent=5 // pred_check_branch
        %498 = sbr.rel (%p496) target = $region32
      $region31: #{tpu_custom_call.1} parent=5 // pred_region
        // Predicated region
        $region33: #{tpu_custom_call.1} parent=31 // pred_check
          %p499 = pneg %p129
        $region34: #{tpu_custom_call.1} parent=31 // pred_check_branch
          %501 = sbr.rel (%p499) target = $region36
        $region35: #{tpu_custom_call.1} parent=31 // pred_region
          %p502 = scmp.lt.s32.totalorder %s25, 1
          %s503 = scalar_select %p502, %s25, 1
          %s504 = smul.addr %s503, 4
          %s505 = smul.addr %s504, 8
          %s506 = scalar_lea.vmem %s4, %s505
        $region36: #{tpu_custom_call.1} parent=31 // pred_fallthru
          _
        // Predicated region
        $region37: #{tpu_custom_call.1} parent=31 // pred_check
          %p507 = pneg %p155
        $region38: #{tpu_custom_call.1} parent=31 // pred_check_branch
          %509 = sbr.rel (%p507) target = $region40
        $region39: #{tpu_custom_call.1} parent=31 // pred_region
          %p510 = scmp.lt.s32.totalorder %s25, 1
          %s511 = scalar_select %p510, %s25, 1
          %s512 = scalar_lea.vmem %s5, %s511
        $region40: #{tpu_custom_call.1} parent=31 // pred_fallthru
          _
        // Predicated region
        $region41: #{tpu_custom_call.1} parent=31 // pred_check
          %p513 = pneg %p181
        $region42: #{tpu_custom_call.1} parent=31 // pred_check_branch
          %515 = sbr.rel (%p513) target = $region44
        $region43: #{tpu_custom_call.1} parent=31 // pred_region
          %p516 = scmp.lt.s32.totalorder %s25, 1
          %s517 = scalar_select %p516, %s25, 1
          %s518 = smul.addr %s517, 4
          %s519 = smul.addr %s518, 8
          %s520 = scalar_lea.vmem %s6, %s519
        $region44: #{tpu_custom_call.1} parent=31 // pred_fallthru
          _
        // Predicated region
        $region45: #{tpu_custom_call.1} parent=31 // pred_check
          %p521 = pneg %p207
        $region46: #{tpu_custom_call.1} parent=31 // pred_check_branch
          %523 = sbr.rel (%p521) target = $region48
        $region47: #{tpu_custom_call.1} parent=31 // pred_region
          %p524 = scmp.lt.s32.totalorder %s25, 1
          %s525 = scalar_select %p524, %s25, 1
          %s526 = scalar_lea.vmem %s7, %s525
        $region48: #{tpu_custom_call.1} parent=31 // pred_fallthru
          _
        // Predicated region
        $region49: #{tpu_custom_call.1} parent=31 // pred_check
          %p527 = pneg %p233
        $region50: #{tpu_custom_call.1} parent=31 // pred_check_branch
          %529 = sbr.rel (%p527) target = $region52
        $region51: #{tpu_custom_call.1} parent=31 // pred_region
          %p530 = scmp.lt.s32.totalorder %s25, 1
          %s531 = scalar_select %p530, %s25, 1
          %s532 = scalar_lea.vmem %s8, %s531
        $region52: #{tpu_custom_call.1} parent=31 // pred_fallthru
          _
        // Predicated region
        $region53: #{tpu_custom_call.1} parent=31 // pred_check
          %p533 = pneg %p259
        $region54: #{tpu_custom_call.1} parent=31 // pred_check_branch
          %535 = sbr.rel (%p533) target = $region56
        $region55: #{tpu_custom_call.1} parent=31 // pred_region
          %p536 = scmp.lt.s32.totalorder %s25, 1
          %s537 = scalar_select %p536, %s25, 1
          %s538 = scalar_lea.vmem %s9, %s537
        $region56: #{tpu_custom_call.1} parent=31 // pred_fallthru
          _
        // Predicated region
        $region57: #{tpu_custom_call.1} parent=31 // pred_check
          %p539 = pneg %p285
        $region58: #{tpu_custom_call.1} parent=31 // pred_check_branch
          %541 = sbr.rel (%p539) target = $region60
        $region59: #{tpu_custom_call.1} parent=31 // pred_region
          %p542 = scmp.lt.s32.totalorder %s25, 1
          %s543 = scalar_select %p542, %s25, 1
          %s544 = smul.addr %s543, 4
          %s545 = smul.addr %s544, 8
          %s546 = scalar_lea.vmem %s10, %s545
        $region60: #{tpu_custom_call.1} parent=31 // pred_fallthru
          _
        // Predicated region
        $region61: #{tpu_custom_call.1} parent=31 // pred_check
          %p547 = pneg %p311
        $region62: #{tpu_custom_call.1} parent=31 // pred_check_branch
          %549 = sbr.rel (%p547) target = $region64
        $region63: #{tpu_custom_call.1} parent=31 // pred_region
          %p550 = scmp.lt.s32.totalorder %s25, 1
          %s551 = scalar_select %p550, %s25, 1
          %s552 = scalar_lea.vmem %s11, %s551
        $region64: #{tpu_custom_call.1} parent=31 // pred_fallthru
          _
        // Predicated region
        $region65: #{tpu_custom_call.1} parent=31 // pred_check
          %p553 = pneg %p337
        $region66: #{tpu_custom_call.1} parent=31 // pred_check_branch
          %555 = sbr.rel (%p553) target = $region68
        $region67: #{tpu_custom_call.1} parent=31 // pred_region
          %p556 = scmp.lt.s32.totalorder %s25, 1
          %s557 = scalar_select %p556, %s25, 1
          %s558 = smul.addr %s557, 8
          %s559 = smul.addr %s558, 8
          %s560 = scalar_lea.vmem %s12, %s559
        $region68: #{tpu_custom_call.1} parent=31 // pred_fallthru
          _
        // Predicated region
        $region69: #{tpu_custom_call.1} parent=31 // pred_check
          %p561 = pneg %p363
        $region70: #{tpu_custom_call.1} parent=31 // pred_check_branch
          %563 = sbr.rel (%p561) target = $region72
        $region71: #{tpu_custom_call.1} parent=31 // pred_region
          %p564 = scmp.lt.s32.totalorder %s25, 1
          %s565 = scalar_select %p564, %s25, 1
          %s566 = scalar_lea.vmem %s13, %s565
        $region72: #{tpu_custom_call.1} parent=31 // pred_fallthru
          _
        // Predicated region
        $region73: #{tpu_custom_call.1} parent=31 // pred_check
          %p567 = pneg %p389
        $region74: #{tpu_custom_call.1} parent=31 // pred_check_branch
          %569 = sbr.rel (%p567) target = $region76
        $region75: #{tpu_custom_call.1} parent=31 // pred_region
          %p570 = scmp.lt.s32.totalorder %s25, 1
          %s571 = scalar_select %p570, %s25, 1
          %s572 = scalar_lea.vmem %s14, %s571
        $region76: #{tpu_custom_call.1} parent=31 // pred_fallthru
          _
        // Predicated region
        $region77: #{tpu_custom_call.1} parent=31 // pred_check
          %p573 = pneg %p415
        $region78: #{tpu_custom_call.1} parent=31 // pred_check_branch
          %575 = sbr.rel (%p573) target = $region80
        $region79: #{tpu_custom_call.1} parent=31 // pred_region
          %p576 = scmp.lt.s32.totalorder %s25, 1
          %s577 = scalar_select %p576, %s25, 1
          %s578 = scalar_lea.vmem %s15, %s577
        $region80: #{tpu_custom_call.1} parent=31 // pred_fallthru
          _
      $region32: #{tpu_custom_call.1} parent=5 // pred_fallthru
        _
      %p579 = scmp.le.s32.totalorder 1, %s25
      %p580 = scmp.lt.s32.totalorder %s25, 3
      %p581 = pnand %p579, %p580
      %p582 = pneg %p581
      // Predicated region
      $region81: #{tpu_custom_call.1} parent=5 // pred_check
        _
      $region82: #{tpu_custom_call.1} parent=5 // pred_check_branch
        %584 = sbr.rel (%p581) target = $region84
      $region83: #{tpu_custom_call.1} parent=5 // pred_region
        %s585 = ssub.s32 %s25, 1
        // Predicated region
        $region85: #{tpu_custom_call.1} parent=83 // pred_check
          %p586 = pneg %p46
        $region86: #{tpu_custom_call.1} parent=83 // pred_check_branch
          %588 = sbr.rel (%p586) target = $region88
        $region87: #{tpu_custom_call.1} parent=83 // pred_region
          %589 = dma.done [#allocation4], 256
        $region88: #{tpu_custom_call.1} parent=83 // pred_fallthru
          _
        // Predicated region
        $region89: #{tpu_custom_call.1} parent=83 // pred_check
          %p590 = pneg %p88
        $region90: #{tpu_custom_call.1} parent=83 // pred_check_branch
          %592 = sbr.rel (%p590) target = $region92
        $region91: #{tpu_custom_call.1} parent=83 // pred_region
          %593 = dma.done [#allocation7], 16
        $region92: #{tpu_custom_call.1} parent=83 // pred_fallthru
          _
        // Predicated region
        $region93: #{tpu_custom_call.1} parent=83 // pred_check
          %p594 = pneg %p109
        $region94: #{tpu_custom_call.1} parent=83 // pred_check_branch
          %596 = sbr.rel (%p594) target = $region96
        $region95: #{tpu_custom_call.1} parent=83 // pred_region
          %597 = dma.done [#allocation7], 16
        $region96: #{tpu_custom_call.1} parent=83 // pred_fallthru
          _
        %p598 = pneg %p46
        %p599 = pneg %p43
        %p600 = pneg %p67
        %p601 = pneg %p64
        %p602 = pneg %p88
        %p603 = pneg %p85
        %p604 = pneg %p109
        %p605 = pneg %p106
        %p606 = scmp.lt.s32.totalorder %s30, 1
        %s607 = scalar_select %p606, %s30, 1
        %s608 = smul.addr %s607, 4
        %s609 = smul.addr %s608, 8
        %s610 = scalar_lea.vmem %s4, %s609
        %p611 = pneg %p135
        %p612 = pneg %p132
        %p613 = scmp.lt.s32.totalorder %s30, 1
        %s614 = scalar_select %p613, %s30, 1
        %s615 = scalar_lea.vmem %s5, %s614
        %p616 = pneg %p161
        %p617 = pneg %p158
        %p618 = scmp.lt.s32.totalorder %s30, 1
        %s619 = scalar_select %p618, %s30, 1
        %s620 = smul.addr %s619, 4
        %s621 = smul.addr %s620, 8
        %s622 = scalar_lea.vmem %s6, %s621
        %p623 = pneg %p187
        %p624 = pneg %p184
        %p625 = scmp.lt.s32.totalorder %s30, 1
        %s626 = scalar_select %p625, %s30, 1
        %s627 = scalar_lea.vmem %s7, %s626
        %p628 = pneg %p213
        %p629 = pneg %p210
        %p630 = scmp.lt.s32.totalorder %s30, 1
        %s631 = scalar_select %p630, %s30, 1
        %s632 = scalar_lea.vmem %s8, %s631
        %p633 = pneg %p239
        %p634 = pneg %p236
        %p635 = scmp.lt.s32.totalorder %s30, 1
        %s636 = scalar_select %p635, %s30, 1
        %s637 = scalar_lea.vmem %s9, %s636
        %p638 = pneg %p265
        %p639 = pneg %p262
        %p640 = scmp.lt.s32.totalorder %s30, 1
        %s641 = scalar_select %p640, %s30, 1
        %s642 = smul.addr %s641, 4
        %s643 = smul.addr %s642, 8
        %s644 = scalar_lea.vmem %s10, %s643
        %p645 = pneg %p291
        %p646 = pneg %p288
        %p647 = scmp.lt.s32.totalorder %s30, 1
        %s648 = scalar_select %p647, %s30, 1
        %s649 = scalar_lea.vmem %s11, %s648
        %p650 = pneg %p317
        %p651 = pneg %p314
        %p652 = scmp.lt.s32.totalorder %s30, 1
        %s653 = scalar_select %p652, %s30, 1
        %s654 = smul.addr %s653, 8
        %s655 = smul.addr %s654, 8
        %s656 = scalar_lea.vmem %s12, %s655
        %p657 = pneg %p343
        %p658 = pneg %p340
        %p659 = scmp.lt.s32.totalorder %s30, 1
        %s660 = scalar_select %p659, %s30, 1
        %s661 = scalar_lea.vmem %s13, %s660
        %p662 = pneg %p369
        %p663 = pneg %p366
        %p664 = scmp.lt.s32.totalorder %s30, 1
        %s665 = scalar_select %p664, %s30, 1
        %s666 = scalar_lea.vmem %s14, %s665
        %p667 = pneg %p395
        %p668 = pneg %p392
        %p669 = scmp.lt.s32.totalorder %s30, 1
        %s670 = scalar_select %p669, %s30, 1
        %s671 = scalar_lea.vmem %s15, %s670
        %p672 = pneg %p421
        %p673 = pneg %p418
        %p674 = pneg %p442
        %p675 = pneg %p439
        %p676 = scmp.lt.s32.totalorder %s30, 1
        %s677 = scalar_select %p676, %s30, 1
        %s678 = smul.addr %s677, 4
        %s679 = smul.addr %s678, 8
        %s680 = scalar_lea.vmem %s4, %s679
        %p681 = scmp.lt.s32.totalorder %s30, 1
        %s682 = scalar_select %p681, %s30, 1
        %s683 = scalar_lea.vmem %s5, %s682
        %p684 = scmp.lt.s32.totalorder %s30, 1
        %s685 = scalar_select %p684, %s30, 1
        %s686 = smul.addr %s685, 4
        %s687 = smul.addr %s686, 8
        %s688 = scalar_lea.vmem %s6, %s687
        %p689 = scmp.lt.s32.totalorder %s30, 1
        %s690 = scalar_select %p689, %s30, 1
        %s691 = scalar_lea.vmem %s7, %s690
        %p692 = scmp.lt.s32.totalorder %s30, 1
        %s693 = scalar_select %p692, %s30, 1
        %s694 = scalar_lea.vmem %s8, %s693
        %p695 = scmp.lt.s32.totalorder %s30, 1
        %s696 = scalar_select %p695, %s30, 1
        %s697 = scalar_lea.vmem %s9, %s696
        %p698 = scmp.lt.s32.totalorder %s30, 1
        %s699 = scalar_select %p698, %s30, 1
        %s700 = smul.addr %s699, 4
        %s701 = smul.addr %s700, 8
        %s702 = scalar_lea.vmem %s10, %s701
        %p703 = scmp.lt.s32.totalorder %s30, 1
        %s704 = scalar_select %p703, %s30, 1
        %s705 = scalar_lea.vmem %s11, %s704
        %p706 = scmp.lt.s32.totalorder %s30, 1
        %s707 = scalar_select %p706, %s30, 1
        %s708 = smul.addr %s707, 8
        %s709 = smul.addr %s708, 8
        %s710 = scalar_lea.vmem %s12, %s709
        %p711 = scmp.lt.s32.totalorder %s30, 1
        %s712 = scalar_select %p711, %s30, 1
        %s713 = scalar_lea.vmem %s13, %s712
        %p714 = scmp.lt.s32.totalorder %s30, 1
        %s715 = scalar_select %p714, %s30, 1
        %s716 = scalar_lea.vmem %s14, %s715
        %p717 = scmp.lt.s32.totalorder %s30, 1
        %s718 = scalar_select %p717, %s30, 1
        %s719 = scalar_lea.vmem %s15, %s718
        %p720 = scmp.eq.s32.totalorder %s30, 0
        // Predicated region
        $region97: #{tpu_custom_call.1} parent=83 // pred_check
          %p721 = pneg %p720
        $region98: #{tpu_custom_call.1} parent=83 // pred_check_branch
          %723 = sbr.rel (%p721) target = $region100
        $region99: #{tpu_custom_call.1} parent=83 // pred_region
          %v724 = vld [vmem:[#allocation3] sm:$0xff]
          %v725 = vld [vmem:[#allocation3 + $0x8] sm:$0xff]
          %v726 = vld [vmem:[#allocation6] sm:$0x1]
          %v727 = vld [vmem:[#allocation8] sm:$0x1]
          %vm728 = vcmask 261120
          %v729 = vsel %vm728, %v724, 0.0
          %730 = vadd.xlane.f32.xlu0 %v729
          %v731 = vpop.xlane.xlu0 %730
          %v732 = vsel %vm728, %v725, 0.0
          %733 = vadd.xlane.f32.xlu0 %v732
          %v734 = vpop.xlane.xlu0 %733
          %v735 = vrcp.pop 32.0
          %v736 = vmul.f32 %v731, %v735
          %v737 = vmul.f32 %v734, %v735
          %v738 = vsub.f32 %v724, %v736
          %v739 = vsub.f32 %v725, %v737
          %v740 = vmul.f32 %v738, %v738
          %v741 = vmul.f32 %v739, %v739
          %v742 = vsel %vm728, %v740, 0.0
          %743 = vadd.xlane.f32.xlu0 %v742
          %v744 = vpop.xlane.xlu0 %743
          %v745 = vsel %vm728, %v741, 0.0
          %746 = vadd.xlane.f32.xlu0 %v745
          %v747 = vpop.xlane.xlu0 %746
          %v748 = vmul.f32 %v744, %v735
          %v749 = vmul.f32 %v747, %v735
          %v750 = vadd.f32 %v748, 1e-12
          %v751 = vadd.f32 %v749, 1e-12
          %v752 = vrsqrt.pop %v750
          %v753 = vrsqrt.pop %v751
          %v754 = vmul.f32 %v738, %v752
          %v755 = vmul.f32 %v739, %v753
          %v757 = vlaneseq
          %v758 = vshrl.u32 %v757, 7
          %v759 = vsub.s32 0, %v758
          %v760 = vrot.slane %v726, %v759
          %v762 = vmul.f32 %v754, %v760
          %v763 = vmul.f32 %v755, %v760
          %v765 = vlaneseq
          %v766 = vshrl.u32 %v765, 7
          %v767 = vsub.s32 0, %v766
          %v768 = vrot.slane %v727, %v767
          %v770 = vadd.f32 %v762, %v768
          %v771 = vadd.f32 %v763, %v768
          %772 = vst.msk [vmem:[#allocation2] sm:$0xff] %vm728, %v770
          %773 = vst.msk [vmem:[#allocation2 + $0x8] sm:$0xff] %vm728, %v771
        $region100: #{tpu_custom_call.1} parent=83 // pred_fallthru
          _
        %v774 = vld [vmem:[#allocation2] sm:$0xff]
        %v775 = vld [vmem:[#allocation2 + $0x8] sm:$0xff]
        %v776 = vld [vmem:[%s1] sm:$0x3]
        %v777 = vld [vmem:[%s680] sm:$0xff]
        %v778 = vld [vmem:[%s680 + $0x8] sm:$0xff]
        %v779 = vld [vmem:[%s680 + $0x10] sm:$0xff]
        %v780 = vld [vmem:[%s680 + $0x18] sm:$0xff]
        %v781 = vld [vmem:[%s683] sm:$0x1]
        %v783 = vlaneseq
        %v784 = vshrl.u32 %v783, 7
        %v785 = vsub.s32 0, %v784
        %v786 = vrot.slane %v781, %v785
        %vm788 = vcmask 261120
        %v790 = vsel %vm788, %v774, 0
        %v793 = vsel %vm788, %v775, 0
        %795 = vmatprep.subr.mxu0 0.0
        %796 = vmatpush1.msra.mxu0 %v777
        %797 = vmatprep.subr.mxu0 0.0
        %798 = vmatpush1.msra.mxu0 %v778
        %799 = vmatprep.subr.mxu0 0.0
        %800 = vmatpush1.msra.mxu0 %v779
        %801 = vmatprep.subr.mxu0 0.0
        %802 = vmatpush1.msra.mxu0 %v780
        %803 = vmatprep.subr.mxu0 0.0
        %804 = vmatpush1.msra.mxu0 0.0
        %805 = vmatprep.subr.mxu0 0.0
        %806 = vmatpush1.msra.mxu0 0.0
        %807 = vmatprep.subr.mxu0 0.0
        %808 = vmatpush1.msra.mxu0 0.0
        %809 = vmatprep.subr.mxu0 0.0
        %810 = vmatpush1.msra.mxu0 0.0
        %811 = vmatprep.subr.mxu0 0.0
        %812 = vmatpush1.msra.mxu0 0.0
        %813 = vmatprep.subr.mxu0 0.0
        %814 = vmatpush1.msra.mxu0 0.0
        %815 = vmatprep.subr.mxu0 0.0
        %816 = vmatpush1.msra.mxu0 0.0
        %817 = vmatprep.subr.mxu0 0.0
        %818 = vmatpush1.msra.mxu0 0.0
        %819 = vmatprep.subr.mxu0 0.0
        %820 = vmatpush1.msra.mxu0 0.0
        %821 = vmatprep.subr.mxu0 0.0
        %822 = vmatpush1.msra.mxu0 0.0
        %823 = vmatprep.subr.mxu0 0.0
        %824 = vmatpush1.msra.mxu0 0.0
        %825 = vmatprep.subr.mxu0 0.0
        %826 = vmatpush1.msra.mxu0 0.0
        %827 = vmatprep.subr.mxu0 0.0
        %828 = vmatpush1.msra.mxu0 0.0
        %829 = vmatprep.subr.mxu0 0.0
        %830 = vmatpush1.msra.mxu0 0.0
        %831 = vmatprep.subr.mxu0 0.0
        %832 = vmatpush1.msra.mxu0 0.0
        %833 = vmatprep.subr.mxu0 0.0
        %834 = vmatpush1.msra.mxu0 0.0
        %835 = vmatprep.subr.mxu0 0.0
        %836 = vmatpush1.msra.mxu0 0.0
        %837 = vmatprep.subr.mxu0 0.0
        %838 = vmatpush1.msra.mxu0 0.0
        %839 = vmatprep.subr.mxu0 0.0
        %840 = vmatpush1.msra.mxu0 0.0
        %841 = vmatprep.subr.mxu0 0.0
        %842 = vmatpush1.msra.mxu0 0.0
        %843 = vmatprep.subr.mxu0 0.0
        %844 = vmatpush1.msra.mxu0 0.0
        %845 = vmatprep.subr.mxu0 0.0
        %846 = vmatpush1.msra.mxu0 0.0
        %847 = vmatprep.subr.mxu0 0.0
        %848 = vmatpush1.msra.mxu0 0.0
        %849 = vmatprep.subr.mxu0 0.0
        %850 = vmatpush1.msra.mxu0 0.0
        %851 = vmatprep.subr.mxu0 0.0
        %852 = vmatpush1.msra.mxu0 0.0
        %853 = vmatprep.subr.mxu0 0.0
        %854 = vmatpush1.msra.mxu0 0.0
        %855 = vmatprep.subr.mxu0 0.0
        %856 = vmatpush1.msra.mxu0 0.0
        %857 = vmatprep.subr.mxu0 0.0
        %858 = vmatpush1.msra.mxu0 0.0
        %859 = vmatprep.mubr.f32.mxu0 0.0
        %860 = vmatmul.mubr.f32.gmra.mrb[0].mxu0 %v790
        %v861 = vpop.f32.mrb[0].mxu0
        %v862 = vadd.f32 %v786, %v861
        %v863 = vpop.f32.mrb[0].mxu0
        %864 = vmatprep.mubr.f32.mxu0 0.0
        %865 = vmatmul.mubr.f32.gmra.mrb[0].mxu0 %v793
        %v866 = vpop.f32.mrb[0].mxu0
        %v867 = vadd.f32 %v786, %v866
        %v868 = vpop.f32.mrb[0].mxu0
        %869 = vdwg.mxu0
        %871 = vrot.lane.b32.xlu0 %v862, 96
        %v872 = vpop.permute.xlu0 %871
        %vm873 = vcmask 64512
        %v874 = vsel %vm873, %v862, 0
        %v876 = vsel %vm873, %v872, 0
        %878 = vmatprep.subr.mxu0 0.0
        %879 = vmatpush1.xpose.msra.mxu0 %v876
        %880 = vmatprep.subr.mxu0 0.0
        %881 = vmatpush1.xpose.msra.mxu0 0.0
        %882 = vmatprep.subr.mxu0 0.0
        %883 = vmatpush1.xpose.msra.mxu0 0.0
        %884 = vmatprep.subr.mxu0 0.0
        %885 = vmatpush1.xpose.msra.mxu0 0.0
        %886 = vmatprep.subr.mxu0 0.0
        %887 = vmatpush1.xpose.msra.mxu0 0.0
        %888 = vmatprep.subr.mxu0 0.0
        %889 = vmatpush1.xpose.msra.mxu0 0.0
        %890 = vmatprep.subr.mxu0 0.0
        %891 = vmatpush1.xpose.msra.mxu0 0.0
        %892 = vmatprep.subr.mxu0 0.0
        %893 = vmatpush1.xpose.msra.mxu0 0.0
        %894 = vmatprep.subr.mxu0 0.0
        %895 = vmatpush1.xpose.msra.mxu0 0.0
        %896 = vmatprep.subr.mxu0 0.0
        %897 = vmatpush1.xpose.msra.mxu0 0.0
        %898 = vmatprep.subr.mxu0 0.0
        %899 = vmatpush1.xpose.msra.mxu0 0.0
        %900 = vmatprep.subr.mxu0 0.0
        %901 = vmatpush1.xpose.msra.mxu0 0.0
        %902 = vmatprep.subr.mxu0 0.0
        %903 = vmatpush1.xpose.msra.mxu0 0.0
        %904 = vmatprep.subr.mxu0 0.0
        %905 = vmatpush1.xpose.msra.mxu0 0.0
        %906 = vmatprep.subr.mxu0 0.0
        %907 = vmatpush1.xpose.msra.mxu0 0.0
        %908 = vmatprep.subr.mxu0 0.0
        %909 = vmatpush1.xpose.msra.mxu0 0.0
        %910 = vmatprep.subr.mxu0 0.0
        %911 = vmatpush1.xpose.msra.mxu0 0.0
        %912 = vmatprep.subr.mxu0 0.0
        %913 = vmatpush1.xpose.msra.mxu0 0.0
        %914 = vmatprep.subr.mxu0 0.0
        %915 = vmatpush1.xpose.msra.mxu0 0.0
        %916 = vmatprep.subr.mxu0 0.0
        %917 = vmatpush1.xpose.msra.mxu0 0.0
        %918 = vmatprep.subr.mxu0 0.0
        %919 = vmatpush1.xpose.msra.mxu0 0.0
        %920 = vmatprep.subr.mxu0 0.0
        %921 = vmatpush1.xpose.msra.mxu0 0.0
        %922 = vmatprep.subr.mxu0 0.0
        %923 = vmatpush1.xpose.msra.mxu0 0.0
        %924 = vmatprep.subr.mxu0 0.0
        %925 = vmatpush1.xpose.msra.mxu0 0.0
        %926 = vmatprep.subr.mxu0 0.0
        %927 = vmatpush1.xpose.msra.mxu0 0.0
        %928 = vmatprep.subr.mxu0 0.0
        %929 = vmatpush1.xpose.msra.mxu0 0.0
        %930 = vmatprep.subr.mxu0 0.0
        %931 = vmatpush1.xpose.msra.mxu0 0.0
        %932 = vmatprep.subr.mxu0 0.0
        %933 = vmatpush1.xpose.msra.mxu0 0.0
        %934 = vmatprep.subr.mxu0 0.0
        %935 = vmatpush1.xpose.msra.mxu0 0.0
        %936 = vmatprep.subr.mxu0 0.0
        %937 = vmatpush1.xpose.msra.mxu0 0.0
        %938 = vmatprep.subr.mxu0 0.0
        %939 = vmatpush1.xpose.msra.mxu0 0.0
        %940 = vmatprep.subr.mxu0 0.0
        %941 = vmatpush1.xpose.msra.mxu0 0.0
        %942 = vmatprep.mubr.f32.mxu0 0.0
        %943 = vmatmul.mubr.f32.gmra.mrb[0].mxu0 %v874
        %v944 = vpop.f32.mrb[0].mxu0
        %v945 = vadd.f32 0.0, %v944
        %v946 = vpop.f32.mrb[0].mxu0
        %947 = vdwg.mxu0
        %v948 = vmul.f32 %v945, 0.35355338
        %v949 = vlaneseq
        %v950 = vshrl.u32 %v949, 7
        %v951 = vsub.s32 0, %v950
        %v952 = vrot.slane %v776, %v951
        %v953 = vadd.f32 %v948, %v952
        %v954 = vsel %vm873, %v953, -inf
        %955 = vmax.xlane.f32.xlu0 %v954
        %v956 = vpop.xlane.xlu0 %955
        %v957 = vsub.f32 %v953, %v956
        %v958 = vmul.f32 %v957, 1.442695
        %v959 = vpow.pop %v958
        %v960 = vsel %vm873, %v959, 0.0
        %961 = vadd.xlane.f32.xlu0 %v960
        %v962 = vpop.xlane.xlu0 %961
        %v963 = vrcp.pop %v962
        %v964 = vmul.f32 %v959, %v963
        %965 = vrot.lane.b32.xlu0 %v862, 64
        %v966 = vpop.permute.xlu0 %965
        %v969 = vsel %vm873, %v964, 0
        %971 = vmatprep.subr.mxu0 0.0
        %972 = vmatpush1.msra.mxu0 %v966
        %973 = vmatprep.subr.mxu0 0.0
        %974 = vmatpush1.msra.mxu0 0.0
        %975 = vmatprep.subr.mxu0 0.0
        %976 = vmatpush1.msra.mxu0 0.0
        %977 = vmatprep.subr.mxu0 0.0
        %978 = vmatpush1.msra.mxu0 0.0
        %979 = vmatprep.subr.mxu0 0.0
        %980 = vmatpush1.msra.mxu0 0.0
        %981 = vmatprep.subr.mxu0 0.0
        %982 = vmatpush1.msra.mxu0 0.0
        %983 = vmatprep.subr.mxu0 0.0
        %984 = vmatpush1.msra.mxu0 0.0
        %985 = vmatprep.subr.mxu0 0.0
        %986 = vmatpush1.msra.mxu0 0.0
        %987 = vmatprep.subr.mxu0 0.0
        %988 = vmatpush1.msra.mxu0 0.0
        %989 = vmatprep.subr.mxu0 0.0
        %990 = vmatpush1.msra.mxu0 0.0
        %991 = vmatprep.subr.mxu0 0.0
        %992 = vmatpush1.msra.mxu0 0.0
        %993 = vmatprep.subr.mxu0 0.0
        %994 = vmatpush1.msra.mxu0 0.0
        %995 = vmatprep.subr.mxu0 0.0
        %996 = vmatpush1.msra.mxu0 0.0
        %997 = vmatprep.subr.mxu0 0.0
        %998 = vmatpush1.msra.mxu0 0.0
        %999 = vmatprep.subr.mxu0 0.0
        %1000 = vmatpush1.msra.mxu0 0.0
        %1001 = vmatprep.subr.mxu0 0.0
        %1002 = vmatpush1.msra.mxu0 0.0
        %1003 = vmatprep.subr.mxu0 0.0
        %1004 = vmatpush1.msra.mxu0 0.0
        %1005 = vmatprep.subr.mxu0 0.0
        %1006 = vmatpush1.msra.mxu0 0.0
        %1007 = vmatprep.subr.mxu0 0.0
        %1008 = vmatpush1.msra.mxu0 0.0
        %1009 = vmatprep.subr.mxu0 0.0
        %1010 = vmatpush1.msra.mxu0 0.0
        %1011 = vmatprep.subr.mxu0 0.0
        %1012 = vmatpush1.msra.mxu0 0.0
        %1013 = vmatprep.subr.mxu0 0.0
        %1014 = vmatpush1.msra.mxu0 0.0
        %1015 = vmatprep.subr.mxu0 0.0
        %1016 = vmatpush1.msra.mxu0 0.0
        %1017 = vmatprep.subr.mxu0 0.0
        %1018 = vmatpush1.msra.mxu0 0.0
        %1019 = vmatprep.subr.mxu0 0.0
        %1020 = vmatpush1.msra.mxu0 0.0
        %1021 = vmatprep.subr.mxu0 0.0
        %1022 = vmatpush1.msra.mxu0 0.0
        %1023 = vmatprep.subr.mxu0 0.0
        %1024 = vmatpush1.msra.mxu0 0.0
        %1025 = vmatprep.subr.mxu0 0.0
        %1026 = vmatpush1.msra.mxu0 0.0
        %1027 = vmatprep.subr.mxu0 0.0
        %1028 = vmatpush1.msra.mxu0 0.0
        %1029 = vmatprep.subr.mxu0 0.0
        %1030 = vmatpush1.msra.mxu0 0.0
        %1031 = vmatprep.subr.mxu0 0.0
        %1032 = vmatpush1.msra.mxu0 0.0
        %1033 = vmatprep.subr.mxu0 0.0
        %1034 = vmatpush1.msra.mxu0 0.0
        %1035 = vmatprep.mubr.f32.mxu0 0.0
        %1036 = vmatmul.mubr.f32.gmra.mrb[0].mxu0 %v969
        %v1037 = vpop.f32.mrb[0].mxu0
        %v1038 = vadd.f32 0.0, %v1037
        %v1039 = vpop.f32.mrb[0].mxu0
        %1040 = vdwg.mxu0
        %1041 = vrot.lane.b32.xlu0 %v862, 120
        %v1042 = vpop.permute.xlu0 %1041
        %1043 = vrot.lane.b32.xlu0 %v862, 88
        %v1044 = vpop.permute.xlu0 %1043
        %v1045 = vsel %vm873, %v1042, 0
        %v1047 = vsel %vm873, %v1044, 0
        %1049 = vmatprep.subr.mxu0 0.0
        %1050 = vmatpush1.xpose.msra.mxu0 %v1047
        %1051 = vmatprep.subr.mxu0 0.0
        %1052 = vmatpush1.xpose.msra.mxu0 0.0
        %1053 = vmatprep.subr.mxu0 0.0
        %1054 = vmatpush1.xpose.msra.mxu0 0.0
        %1055 = vmatprep.subr.mxu0 0.0
        %1056 = vmatpush1.xpose.msra.mxu0 0.0
        %1057 = vmatprep.subr.mxu0 0.0
        %1058 = vmatpush1.xpose.msra.mxu0 0.0
        %1059 = vmatprep.subr.mxu0 0.0
        %1060 = vmatpush1.xpose.msra.mxu0 0.0
        %1061 = vmatprep.subr.mxu0 0.0
        %1062 = vmatpush1.xpose.msra.mxu0 0.0
        %1063 = vmatprep.subr.mxu0 0.0
        %1064 = vmatpush1.xpose.msra.mxu0 0.0
        %1065 = vmatprep.subr.mxu0 0.0
        %1066 = vmatpush1.xpose.msra.mxu0 0.0
        %1067 = vmatprep.subr.mxu0 0.0
        %1068 = vmatpush1.xpose.msra.mxu0 0.0
        %1069 = vmatprep.subr.mxu0 0.0
        %1070 = vmatpush1.xpose.msra.mxu0 0.0
        %1071 = vmatprep.subr.mxu0 0.0
        %1072 = vmatpush1.xpose.msra.mxu0 0.0
        %1073 = vmatprep.subr.mxu0 0.0
        %1074 = vmatpush1.xpose.msra.mxu0 0.0
        %1075 = vmatprep.subr.mxu0 0.0
        %1076 = vmatpush1.xpose.msra.mxu0 0.0
        %1077 = vmatprep.subr.mxu0 0.0
        %1078 = vmatpush1.xpose.msra.mxu0 0.0
        %1079 = vmatprep.subr.mxu0 0.0
        %1080 = vmatpush1.xpose.msra.mxu0 0.0
        %1081 = vmatprep.subr.mxu0 0.0
        %1082 = vmatpush1.xpose.msra.mxu0 0.0
        %1083 = vmatprep.subr.mxu0 0.0
        %1084 = vmatpush1.xpose.msra.mxu0 0.0
        %1085 = vmatprep.subr.mxu0 0.0
        %1086 = vmatpush1.xpose.msra.mxu0 0.0
        %1087 = vmatprep.subr.mxu0 0.0
        %1088 = vmatpush1.xpose.msra.mxu0 0.0
        %1089 = vmatprep.subr.mxu0 0.0
        %1090 = vmatpush1.xpose.msra.mxu0 0.0
        %1091 = vmatprep.subr.mxu0 0.0
        %1092 = vmatpush1.xpose.msra.mxu0 0.0
        %1093 = vmatprep.subr.mxu0 0.0
        %1094 = vmatpush1.xpose.msra.mxu0 0.0
        %1095 = vmatprep.subr.mxu0 0.0
        %1096 = vmatpush1.xpose.msra.mxu0 0.0
        %1097 = vmatprep.subr.mxu0 0.0
        %1098 = vmatpush1.xpose.msra.mxu0 0.0
        %1099 = vmatprep.subr.mxu0 0.0
        %1100 = vmatpush1.xpose.msra.mxu0 0.0
        %1101 = vmatprep.subr.mxu0 0.0
        %1102 = vmatpush1.xpose.msra.mxu0 0.0
        %1103 = vmatprep.subr.mxu0 0.0
        %1104 = vmatpush1.xpose.msra.mxu0 0.0
        %1105 = vmatprep.subr.mxu0 0.0
        %1106 = vmatpush1.xpose.msra.mxu0 0.0
        %1107 = vmatprep.subr.mxu0 0.0
        %1108 = vmatpush1.xpose.msra.mxu0 0.0
        %1109 = vmatprep.subr.mxu0 0.0
        %1110 = vmatpush1.xpose.msra.mxu0 0.0
        %1111 = vmatprep.subr.mxu0 0.0
        %1112 = vmatpush1.xpose.msra.mxu0 0.0
        %1113 = vmatprep.mubr.f32.mxu0 0.0
        %1114 = vmatmul.mubr.f32.gmra.mrb[0].mxu0 %v1045
        %v1115 = vpop.f32.mrb[0].mxu0
        %v1116 = vadd.f32 0.0, %v1115
        %v1117 = vpop.f32.mrb[0].mxu0
        %1118 = vdwg.mxu0
        %v1119 = vmul.f32 %v1116, 0.35355338
        %v1120 = vadd.f32 %v1119, %v952
        %v1121 = vsel %vm873, %v1120, -inf
        %1122 = vmax.xlane.f32.xlu0 %v1121
        %v1123 = vpop.xlane.xlu0 %1122
        %v1124 = vsub.f32 %v1120, %v1123
        %v1125 = vmul.f32 %v1124, 1.442695
        %v1126 = vpow.pop %v1125
        %v1127 = vsel %vm873, %v1126, 0.0
        %1128 = vadd.xlane.f32.xlu0 %v1127
        %v1129 = vpop.xlane.xlu0 %1128
        %v1130 = vrcp.pop %v1129
        %v1131 = vmul.f32 %v1126, %v1130
        %1132 = vrot.lane.b32.xlu0 %v862, 56
        %v1133 = vpop.permute.xlu0 %1132
        %v1136 = vsel %vm873, %v1131, 0
        %1138 = vmatprep.subr.mxu0 0.0
        %1139 = vmatpush1.msra.mxu0 %v1133
        %1140 = vmatprep.subr.mxu0 0.0
        %1141 = vmatpush1.msra.mxu0 0.0
        %1142 = vmatprep.subr.mxu0 0.0
        %1143 = vmatpush1.msra.mxu0 0.0
        %1144 = vmatprep.subr.mxu0 0.0
        %1145 = vmatpush1.msra.mxu0 0.0
        %1146 = vmatprep.subr.mxu0 0.0
        %1147 = vmatpush1.msra.mxu0 0.0
        %1148 = vmatprep.subr.mxu0 0.0
        %1149 = vmatpush1.msra.mxu0 0.0
        %1150 = vmatprep.subr.mxu0 0.0
        %1151 = vmatpush1.msra.mxu0 0.0
        %1152 = vmatprep.subr.mxu0 0.0
        %1153 = vmatpush1.msra.mxu0 0.0
        %1154 = vmatprep.subr.mxu0 0.0
        %1155 = vmatpush1.msra.mxu0 0.0
        %1156 = vmatprep.subr.mxu0 0.0
        %1157 = vmatpush1.msra.mxu0 0.0
        %1158 = vmatprep.subr.mxu0 0.0
        %1159 = vmatpush1.msra.mxu0 0.0
        %1160 = vmatprep.subr.mxu0 0.0
        %1161 = vmatpush1.msra.mxu0 0.0
        %1162 = vmatprep.subr.mxu0 0.0
        %1163 = vmatpush1.msra.mxu0 0.0
        %1164 = vmatprep.subr.mxu0 0.0
        %1165 = vmatpush1.msra.mxu0 0.0
        %1166 = vmatprep.subr.mxu0 0.0
        %1167 = vmatpush1.msra.mxu0 0.0
        %1168 = vmatprep.subr.mxu0 0.0
        %1169 = vmatpush1.msra.mxu0 0.0
        %1170 = vmatprep.subr.mxu0 0.0
        %1171 = vmatpush1.msra.mxu0 0.0
        %1172 = vmatprep.subr.mxu0 0.0
        %1173 = vmatpush1.msra.mxu0 0.0
        %1174 = vmatprep.subr.mxu0 0.0
        %1175 = vmatpush1.msra.mxu0 0.0
        %1176 = vmatprep.subr.mxu0 0.0
        %1177 = vmatpush1.msra.mxu0 0.0
        %1178 = vmatprep.subr.mxu0 0.0
        %1179 = vmatpush1.msra.mxu0 0.0
        %1180 = vmatprep.subr.mxu0 0.0
        %1181 = vmatpush1.msra.mxu0 0.0
        %1182 = vmatprep.subr.mxu0 0.0
        %1183 = vmatpush1.msra.mxu0 0.0
        %1184 = vmatprep.subr.mxu0 0.0
        %1185 = vmatpush1.msra.mxu0 0.0
        %1186 = vmatprep.subr.mxu0 0.0
        %1187 = vmatpush1.msra.mxu0 0.0
        %1188 = vmatprep.subr.mxu0 0.0
        %1189 = vmatpush1.msra.mxu0 0.0
        %1190 = vmatprep.subr.mxu0 0.0
        %1191 = vmatpush1.msra.mxu0 0.0
        %1192 = vmatprep.subr.mxu0 0.0
        %1193 = vmatpush1.msra.mxu0 0.0
        %1194 = vmatprep.subr.mxu0 0.0
        %1195 = vmatpush1.msra.mxu0 0.0
        %1196 = vmatprep.subr.mxu0 0.0
        %1197 = vmatpush1.msra.mxu0 0.0
        %1198 = vmatprep.subr.mxu0 0.0
        %1199 = vmatpush1.msra.mxu0 0.0
        %1200 = vmatprep.subr.mxu0 0.0
        %1201 = vmatpush1.msra.mxu0 0.0
        %1202 = vmatprep.mubr.f32.mxu0 0.0
        %1203 = vmatmul.mubr.f32.gmra.mrb[0].mxu0 %v1136
        %v1204 = vpop.f32.mrb[0].mxu0
        %v1205 = vadd.f32 0.0, %v1204
        %v1206 = vpop.f32.mrb[0].mxu0
        %1207 = vdwg.mxu0
        %1208 = vrot.lane.b32.xlu0 %v862, 112
        %v1209 = vpop.permute.xlu0 %1208
        %1210 = vrot.lane.b32.xlu0 %v862, 80
        %v1211 = vpop.permute.xlu0 %1210
        %v1212 = vsel %vm873, %v1209, 0
        %v1214 = vsel %vm873, %v1211, 0
        %1216 = vmatprep.subr.mxu0 0.0
        %1217 = vmatpush1.xpose.msra.mxu0 %v1214
        %1218 = vmatprep.subr.mxu0 0.0
        %1219 = vmatpush1.xpose.msra.mxu0 0.0
        %1220 = vmatprep.subr.mxu0 0.0
        %1221 = vmatpush1.xpose.msra.mxu0 0.0
        %1222 = vmatprep.subr.mxu0 0.0
        %1223 = vmatpush1.xpose.msra.mxu0 0.0
        %1224 = vmatprep.subr.mxu0 0.0
        %1225 = vmatpush1.xpose.msra.mxu0 0.0
        %1226 = vmatprep.subr.mxu0 0.0
        %1227 = vmatpush1.xpose.msra.mxu0 0.0
        %1228 = vmatprep.subr.mxu0 0.0
        %1229 = vmatpush1.xpose.msra.mxu0 0.0
        %1230 = vmatprep.subr.mxu0 0.0
        %1231 = vmatpush1.xpose.msra.mxu0 0.0
        %1232 = vmatprep.subr.mxu0 0.0
        %1233 = vmatpush1.xpose.msra.mxu0 0.0
        %1234 = vmatprep.subr.mxu0 0.0
        %1235 = vmatpush1.xpose.msra.mxu0 0.0
        %1236 = vmatprep.subr.mxu0 0.0
        %1237 = vmatpush1.xpose.msra.mxu0 0.0
        %1238 = vmatprep.subr.mxu0 0.0
        %1239 = vmatpush1.xpose.msra.mxu0 0.0
        %1240 = vmatprep.subr.mxu0 0.0
        %1241 = vmatpush1.xpose.msra.mxu0 0.0
        %1242 = vmatprep.subr.mxu0 0.0
        %1243 = vmatpush1.xpose.msra.mxu0 0.0
        %1244 = vmatprep.subr.mxu0 0.0
        %1245 = vmatpush1.xpose.msra.mxu0 0.0
        %1246 = vmatprep.subr.mxu0 0.0
        %1247 = vmatpush1.xpose.msra.mxu0 0.0
        %1248 = vmatprep.subr.mxu0 0.0
        %1249 = vmatpush1.xpose.msra.mxu0 0.0
        %1250 = vmatprep.subr.mxu0 0.0
        %1251 = vmatpush1.xpose.msra.mxu0 0.0
        %1252 = vmatprep.subr.mxu0 0.0
        %1253 = vmatpush1.xpose.msra.mxu0 0.0
        %1254 = vmatprep.subr.mxu0 0.0
        %1255 = vmatpush1.xpose.msra.mxu0 0.0
        %1256 = vmatprep.subr.mxu0 0.0
        %1257 = vmatpush1.xpose.msra.mxu0 0.0
        %1258 = vmatprep.subr.mxu0 0.0
        %1259 = vmatpush1.xpose.msra.mxu0 0.0
        %1260 = vmatprep.subr.mxu0 0.0
        %1261 = vmatpush1.xpose.msra.mxu0 0.0
        %1262 = vmatprep.subr.mxu0 0.0
        %1263 = vmatpush1.xpose.msra.mxu0 0.0
        %1264 = vmatprep.subr.mxu0 0.0
        %1265 = vmatpush1.xpose.msra.mxu0 0.0
        %1266 = vmatprep.subr.mxu0 0.0
        %1267 = vmatpush1.xpose.msra.mxu0 0.0
        %1268 = vmatprep.subr.mxu0 0.0
        %1269 = vmatpush1.xpose.msra.mxu0 0.0
        %1270 = vmatprep.subr.mxu0 0.0
        %1271 = vmatpush1.xpose.msra.mxu0 0.0
        %1272 = vmatprep.subr.mxu0 0.0
        %1273 = vmatpush1.xpose.msra.mxu0 0.0
        %1274 = vmatprep.subr.mxu0 0.0
        %1275 = vmatpush1.xpose.msra.mxu0 0.0
        %1276 = vmatprep.subr.mxu0 0.0
        %1277 = vmatpush1.xpose.msra.mxu0 0.0
        %1278 = vmatprep.subr.mxu0 0.0
        %1279 = vmatpush1.xpose.msra.mxu0 0.0
        %1280 = vmatprep.mubr.f32.mxu0 0.0
        %1281 = vmatmul.mubr.f32.gmra.mrb[0].mxu0 %v1212
        %v1282 = vpop.f32.mrb[0].mxu0
        %v1283 = vadd.f32 0.0, %v1282
        %v1284 = vpop.f32.mrb[0].mxu0
        %1285 = vdwg.mxu0
        %v1286 = vmul.f32 %v1283, 0.35355338
        %v1287 = vadd.f32 %v1286, %v952
        %v1288 = vsel %vm873, %v1287, -inf
        %1289 = vmax.xlane.f32.xlu0 %v1288
        %v1290 = vpop.xlane.xlu0 %1289
        %v1291 = vsub.f32 %v1287, %v1290
        %v1292 = vmul.f32 %v1291, 1.442695
        %v1293 = vpow.pop %v1292
        %v1294 = vsel %vm873, %v1293, 0.0
        %1295 = vadd.xlane.f32.xlu0 %v1294
        %v1296 = vpop.xlane.xlu0 %1295
        %v1297 = vrcp.pop %v1296
        %v1298 = vmul.f32 %v1293, %v1297
        %1299 = vrot.lane.b32.xlu0 %v862, 48
        %v1300 = vpop.permute.xlu0 %1299
        %v1303 = vsel %vm873, %v1298, 0
        %1305 = vmatprep.subr.mxu0 0.0
        %1306 = vmatpush1.msra.mxu0 %v1300
        %1307 = vmatprep.subr.mxu0 0.0
        %1308 = vmatpush1.msra.mxu0 0.0
        %1309 = vmatprep.subr.mxu0 0.0
        %1310 = vmatpush1.msra.mxu0 0.0
        %1311 = vmatprep.subr.mxu0 0.0
        %1312 = vmatpush1.msra.mxu0 0.0
        %1313 = vmatprep.subr.mxu0 0.0
        %1314 = vmatpush1.msra.mxu0 0.0
        %1315 = vmatprep.subr.mxu0 0.0
        %1316 = vmatpush1.msra.mxu0 0.0
        %1317 = vmatprep.subr.mxu0 0.0
        %1318 = vmatpush1.msra.mxu0 0.0
        %1319 = vmatprep.subr.mxu0 0.0
        %1320 = vmatpush1.msra.mxu0 0.0
        %1321 = vmatprep.subr.mxu0 0.0
        %1322 = vmatpush1.msra.mxu0 0.0
        %1323 = vmatprep.subr.mxu0 0.0
        %1324 = vmatpush1.msra.mxu0 0.0
        %1325 = vmatprep.subr.mxu0 0.0
        %1326 = vmatpush1.msra.mxu0 0.0
        %1327 = vmatprep.subr.mxu0 0.0
        %1328 = vmatpush1.msra.mxu0 0.0
        %1329 = vmatprep.subr.mxu0 0.0
        %1330 = vmatpush1.msra.mxu0 0.0
        %1331 = vmatprep.subr.mxu0 0.0
        %1332 = vmatpush1.msra.mxu0 0.0
        %1333 = vmatprep.subr.mxu0 0.0
        %1334 = vmatpush1.msra.mxu0 0.0
        %1335 = vmatprep.subr.mxu0 0.0
        %1336 = vmatpush1.msra.mxu0 0.0
        %1337 = vmatprep.subr.mxu0 0.0
        %1338 = vmatpush1.msra.mxu0 0.0
        %1339 = vmatprep.subr.mxu0 0.0
        %1340 = vmatpush1.msra.mxu0 0.0
        %1341 = vmatprep.subr.mxu0 0.0
        %1342 = vmatpush1.msra.mxu0 0.0
        %1343 = vmatprep.subr.mxu0 0.0
        %1344 = vmatpush1.msra.mxu0 0.0
        %1345 = vmatprep.subr.mxu0 0.0
        %1346 = vmatpush1.msra.mxu0 0.0
        %1347 = vmatprep.subr.mxu0 0.0
        %1348 = vmatpush1.msra.mxu0 0.0
        %1349 = vmatprep.subr.mxu0 0.0
        %1350 = vmatpush1.msra.mxu0 0.0
        %1351 = vmatprep.subr.mxu0 0.0
        %1352 = vmatpush1.msra.mxu0 0.0
        %1353 = vmatprep.subr.mxu0 0.0
        %1354 = vmatpush1.msra.mxu0 0.0
        %1355 = vmatprep.subr.mxu0 0.0
        %1356 = vmatpush1.msra.mxu0 0.0
        %1357 = vmatprep.subr.mxu0 0.0
        %1358 = vmatpush1.msra.mxu0 0.0
        %1359 = vmatprep.subr.mxu0 0.0
        %1360 = vmatpush1.msra.mxu0 0.0
        %1361 = vmatprep.subr.mxu0 0.0
        %1362 = vmatpush1.msra.mxu0 0.0
        %1363 = vmatprep.subr.mxu0 0.0
        %1364 = vmatpush1.msra.mxu0 0.0
        %1365 = vmatprep.subr.mxu0 0.0
        %1366 = vmatpush1.msra.mxu0 0.0
        %1367 = vmatprep.subr.mxu0 0.0
        %1368 = vmatpush1.msra.mxu0 0.0
        %1369 = vmatprep.mubr.f32.mxu0 0.0
        %1370 = vmatmul.mubr.f32.gmra.mrb[0].mxu0 %v1303
        %v1371 = vpop.f32.mrb[0].mxu0
        %v1372 = vadd.f32 0.0, %v1371
        %v1373 = vpop.f32.mrb[0].mxu0
        %1374 = vdwg.mxu0
        %1375 = vrot.lane.b32.xlu0 %v862, 104
        %v1376 = vpop.permute.xlu0 %1375
        %1377 = vrot.lane.b32.xlu0 %v862, 72
        %v1378 = vpop.permute.xlu0 %1377
        %v1379 = vsel %vm873, %v1376, 0
        %v1381 = vsel %vm873, %v1378, 0
        %1383 = vmatprep.subr.mxu0 0.0
        %1384 = vmatpush1.xpose.msra.mxu0 %v1381
        %1385 = vmatprep.subr.mxu0 0.0
        %1386 = vmatpush1.xpose.msra.mxu0 0.0
        %1387 = vmatprep.subr.mxu0 0.0
        %1388 = vmatpush1.xpose.msra.mxu0 0.0
        %1389 = vmatprep.subr.mxu0 0.0
        %1390 = vmatpush1.xpose.msra.mxu0 0.0
        %1391 = vmatprep.subr.mxu0 0.0
        %1392 = vmatpush1.xpose.msra.mxu0 0.0
        %1393 = vmatprep.subr.mxu0 0.0
        %1394 = vmatpush1.xpose.msra.mxu0 0.0
        %1395 = vmatprep.subr.mxu0 0.0
        %1396 = vmatpush1.xpose.msra.mxu0 0.0
        %1397 = vmatprep.subr.mxu0 0.0
        %1398 = vmatpush1.xpose.msra.mxu0 0.0
        %1399 = vmatprep.subr.mxu0 0.0
        %1400 = vmatpush1.xpose.msra.mxu0 0.0
        %1401 = vmatprep.subr.mxu0 0.0
        %1402 = vmatpush1.xpose.msra.mxu0 0.0
        %1403 = vmatprep.subr.mxu0 0.0
        %1404 = vmatpush1.xpose.msra.mxu0 0.0
        %1405 = vmatprep.subr.mxu0 0.0
        %1406 = vmatpush1.xpose.msra.mxu0 0.0
        %1407 = vmatprep.subr.mxu0 0.0
        %1408 = vmatpush1.xpose.msra.mxu0 0.0
        %1409 = vmatprep.subr.mxu0 0.0
        %1410 = vmatpush1.xpose.msra.mxu0 0.0
        %1411 = vmatprep.subr.mxu0 0.0
        %1412 = vmatpush1.xpose.msra.mxu0 0.0
        %1413 = vmatprep.subr.mxu0 0.0
        %1414 = vmatpush1.xpose.msra.mxu0 0.0
        %1415 = vmatprep.subr.mxu0 0.0
        %1416 = vmatpush1.xpose.msra.mxu0 0.0
        %1417 = vmatprep.subr.mxu0 0.0
        %1418 = vmatpush1.xpose.msra.mxu0 0.0
        %1419 = vmatprep.subr.mxu0 0.0
        %1420 = vmatpush1.xpose.msra.mxu0 0.0
        %1421 = vmatprep.subr.mxu0 0.0
        %1422 = vmatpush1.xpose.msra.mxu0 0.0
        %1423 = vmatprep.subr.mxu0 0.0
        %1424 = vmatpush1.xpose.msra.mxu0 0.0
        %1425 = vmatprep.subr.mxu0 0.0
        %1426 = vmatpush1.xpose.msra.mxu0 0.0
        %1427 = vmatprep.subr.mxu0 0.0
        %1428 = vmatpush1.xpose.msra.mxu0 0.0
        %1429 = vmatprep.subr.mxu0 0.0
        %1430 = vmatpush1.xpose.msra.mxu0 0.0
        %1431 = vmatprep.subr.mxu0 0.0
        %1432 = vmatpush1.xpose.msra.mxu0 0.0
        %1433 = vmatprep.subr.mxu0 0.0
        %1434 = vmatpush1.xpose.msra.mxu0 0.0
        %1435 = vmatprep.subr.mxu0 0.0
        %1436 = vmatpush1.xpose.msra.mxu0 0.0
        %1437 = vmatprep.subr.mxu0 0.0
        %1438 = vmatpush1.xpose.msra.mxu0 0.0
        %1439 = vmatprep.subr.mxu0 0.0
        %1440 = vmatpush1.xpose.msra.mxu0 0.0
        %1441 = vmatprep.subr.mxu0 0.0
        %1442 = vmatpush1.xpose.msra.mxu0 0.0
        %1443 = vmatprep.subr.mxu0 0.0
        %1444 = vmatpush1.xpose.msra.mxu0 0.0
        %1445 = vmatprep.subr.mxu0 0.0
        %1446 = vmatpush1.xpose.msra.mxu0 0.0
        %1447 = vmatprep.mubr.f32.mxu0 0.0
        %1448 = vmatmul.mubr.f32.gmra.mrb[0].mxu0 %v1379
        %v1449 = vpop.f32.mrb[0].mxu0
        %v1450 = vadd.f32 0.0, %v1449
        %v1451 = vpop.f32.mrb[0].mxu0
        %1452 = vdwg.mxu0
        %v1453 = vmul.f32 %v1450, 0.35355338
        %v1454 = vadd.f32 %v1453, %v952
        %v1455 = vsel %vm873, %v1454, -inf
        %1456 = vmax.xlane.f32.xlu0 %v1455
        %v1457 = vpop.xlane.xlu0 %1456
        %v1458 = vsub.f32 %v1454, %v1457
        %v1459 = vmul.f32 %v1458, 1.442695
        %v1460 = vpow.pop %v1459
        %v1461 = vsel %vm873, %v1460, 0.0
        %1462 = vadd.xlane.f32.xlu0 %v1461
        %v1463 = vpop.xlane.xlu0 %1462
        %v1464 = vrcp.pop %v1463
        %v1465 = vmul.f32 %v1460, %v1464
        %1466 = vrot.lane.b32.xlu0 %v862, 40
        %v1467 = vpop.permute.xlu0 %1466
        %v1470 = vsel %vm873, %v1465, 0
        %1472 = vmatprep.subr.mxu0 0.0
        %1473 = vmatpush1.msra.mxu0 %v1467
        %1474 = vmatprep.subr.mxu0 0.0
        %1475 = vmatpush1.msra.mxu0 0.0
        %1476 = vmatprep.subr.mxu0 0.0
        %1477 = vmatpush1.msra.mxu0 0.0
        %1478 = vmatprep.subr.mxu0 0.0
        %1479 = vmatpush1.msra.mxu0 0.0
        %1480 = vmatprep.subr.mxu0 0.0
        %1481 = vmatpush1.msra.mxu0 0.0
        %1482 = vmatprep.subr.mxu0 0.0
        %1483 = vmatpush1.msra.mxu0 0.0
        %1484 = vmatprep.subr.mxu0 0.0
        %1485 = vmatpush1.msra.mxu0 0.0
        %1486 = vmatprep.subr.mxu0 0.0
        %1487 = vmatpush1.msra.mxu0 0.0
        %1488 = vmatprep.subr.mxu0 0.0
        %1489 = vmatpush1.msra.mxu0 0.0
        %1490 = vmatprep.subr.mxu0 0.0
        %1491 = vmatpush1.msra.mxu0 0.0
        %1492 = vmatprep.subr.mxu0 0.0
        %1493 = vmatpush1.msra.mxu0 0.0
        %1494 = vmatprep.subr.mxu0 0.0
        %1495 = vmatpush1.msra.mxu0 0.0
        %1496 = vmatprep.subr.mxu0 0.0
        %1497 = vmatpush1.msra.mxu0 0.0
        %1498 = vmatprep.subr.mxu0 0.0
        %1499 = vmatpush1.msra.mxu0 0.0
        %1500 = vmatprep.subr.mxu0 0.0
        %1501 = vmatpush1.msra.mxu0 0.0
        %1502 = vmatprep.subr.mxu0 0.0
        %1503 = vmatpush1.msra.mxu0 0.0
        %1504 = vmatprep.subr.mxu0 0.0
        %1505 = vmatpush1.msra.mxu0 0.0
        %1506 = vmatprep.subr.mxu0 0.0
        %1507 = vmatpush1.msra.mxu0 0.0
        %1508 = vmatprep.subr.mxu0 0.0
        %1509 = vmatpush1.msra.mxu0 0.0
        %1510 = vmatprep.subr.mxu0 0.0
        %1511 = vmatpush1.msra.mxu0 0.0
        %1512 = vmatprep.subr.mxu0 0.0
        %1513 = vmatpush1.msra.mxu0 0.0
        %1514 = vmatprep.subr.mxu0 0.0
        %1515 = vmatpush1.msra.mxu0 0.0
        %1516 = vmatprep.subr.mxu0 0.0
        %1517 = vmatpush1.msra.mxu0 0.0
        %1518 = vmatprep.subr.mxu0 0.0
        %1519 = vmatpush1.msra.mxu0 0.0
        %1520 = vmatprep.subr.mxu0 0.0
        %1521 = vmatpush1.msra.mxu0 0.0
        %1522 = vmatprep.subr.mxu0 0.0
        %1523 = vmatpush1.msra.mxu0 0.0
        %1524 = vmatprep.subr.mxu0 0.0
        %1525 = vmatpush1.msra.mxu0 0.0
        %1526 = vmatprep.subr.mxu0 0.0
        %1527 = vmatpush1.msra.mxu0 0.0
        %1528 = vmatprep.subr.mxu0 0.0
        %1529 = vmatpush1.msra.mxu0 0.0
        %1530 = vmatprep.subr.mxu0 0.0
        %1531 = vmatpush1.msra.mxu0 0.0
        %1532 = vmatprep.subr.mxu0 0.0
        %1533 = vmatpush1.msra.mxu0 0.0
        %1534 = vmatprep.subr.mxu0 0.0
        %1535 = vmatpush1.msra.mxu0 0.0
        %1536 = vmatprep.mubr.f32.mxu0 0.0
        %1537 = vmatmul.mubr.f32.gmra.mrb[0].mxu0 %v1470
        %v1538 = vpop.f32.mrb[0].mxu0
        %v1539 = vadd.f32 0.0, %v1538
        %v1540 = vpop.f32.mrb[0].mxu0
        %1541 = vdwg.mxu0
        %1543 = vrot.lane.b32.xlu0 %v1205, 8
        %v1544 = vpop.permute.xlu0 %1543
        %1547 = vrot.lane.b32.xlu0 %v1372, 16
        %v1548 = vpop.permute.xlu0 %1547
        %1551 = vrot.lane.b32.xlu0 %v1539, 24
        %v1552 = vpop.permute.xlu0 %1551
        %v1554 = vsel %vm873, %v1038, %v1544
        %vm1555 = vcmask 130048
        %v1556 = vsel %vm1555, %v1554, %v1548
        %vm1557 = vcmask 195584
        %v1558 = vsel %vm1557, %v1556, %v1552
        %1560 = vrot.lane.b32.xlu0 %v867, 96
        %v1561 = vpop.permute.xlu0 %1560
        %v1562 = vsel %vm873, %v867, 0
        %v1564 = vsel %vm873, %v1561, 0
        %1566 = vmatprep.subr.mxu0 0.0
        %1567 = vmatpush1.xpose.msra.mxu0 %v1564
        %1568 = vmatprep.subr.mxu0 0.0
        %1569 = vmatpush1.xpose.msra.mxu0 0.0
        %1570 = vmatprep.subr.mxu0 0.0
        %1571 = vmatpush1.xpose.msra.mxu0 0.0
        %1572 = vmatprep.subr.mxu0 0.0
        %1573 = vmatpush1.xpose.msra.mxu0 0.0
        %1574 = vmatprep.subr.mxu0 0.0
        %1575 = vmatpush1.xpose.msra.mxu0 0.0
        %1576 = vmatprep.subr.mxu0 0.0
        %1577 = vmatpush1.xpose.msra.mxu0 0.0
        %1578 = vmatprep.subr.mxu0 0.0
        %1579 = vmatpush1.xpose.msra.mxu0 0.0
        %1580 = vmatprep.subr.mxu0 0.0
        %1581 = vmatpush1.xpose.msra.mxu0 0.0
        %1582 = vmatprep.subr.mxu0 0.0
        %1583 = vmatpush1.xpose.msra.mxu0 0.0
        %1584 = vmatprep.subr.mxu0 0.0
        %1585 = vmatpush1.xpose.msra.mxu0 0.0
        %1586 = vmatprep.subr.mxu0 0.0
        %1587 = vmatpush1.xpose.msra.mxu0 0.0
        %1588 = vmatprep.subr.mxu0 0.0
        %1589 = vmatpush1.xpose.msra.mxu0 0.0
        %1590 = vmatprep.subr.mxu0 0.0
        %1591 = vmatpush1.xpose.msra.mxu0 0.0
        %1592 = vmatprep.subr.mxu0 0.0
        %1593 = vmatpush1.xpose.msra.mxu0 0.0
        %1594 = vmatprep.subr.mxu0 0.0
        %1595 = vmatpush1.xpose.msra.mxu0 0.0
        %1596 = vmatprep.subr.mxu0 0.0
        %1597 = vmatpush1.xpose.msra.mxu0 0.0
        %1598 = vmatprep.subr.mxu0 0.0
        %1599 = vmatpush1.xpose.msra.mxu0 0.0
        %1600 = vmatprep.subr.mxu0 0.0
        %1601 = vmatpush1.xpose.msra.mxu0 0.0
        %1602 = vmatprep.subr.mxu0 0.0
        %1603 = vmatpush1.xpose.msra.mxu0 0.0
        %1604 = vmatprep.subr.mxu0 0.0
        %1605 = vmatpush1.xpose.msra.mxu0 0.0
        %1606 = vmatprep.subr.mxu0 0.0
        %1607 = vmatpush1.xpose.msra.mxu0 0.0
        %1608 = vmatprep.subr.mxu0 0.0
        %1609 = vmatpush1.xpose.msra.mxu0 0.0
        %1610 = vmatprep.subr.mxu0 0.0
        %1611 = vmatpush1.xpose.msra.mxu0 0.0
        %1612 = vmatprep.subr.mxu0 0.0
        %1613 = vmatpush1.xpose.msra.mxu0 0.0
        %1614 = vmatprep.subr.mxu0 0.0
        %1615 = vmatpush1.xpose.msra.mxu0 0.0
        %1616 = vmatprep.subr.mxu0 0.0
        %1617 = vmatpush1.xpose.msra.mxu0 0.0
        %1618 = vmatprep.subr.mxu0 0.0
        %1619 = vmatpush1.xpose.msra.mxu0 0.0
        %1620 = vmatprep.subr.mxu0 0.0
        %1621 = vmatpush1.xpose.msra.mxu0 0.0
        %1622 = vmatprep.subr.mxu0 0.0
        %1623 = vmatpush1.xpose.msra.mxu0 0.0
        %1624 = vmatprep.subr.mxu0 0.0
        %1625 = vmatpush1.xpose.msra.mxu0 0.0
        %1626 = vmatprep.subr.mxu0 0.0
        %1627 = vmatpush1.xpose.msra.mxu0 0.0
        %1628 = vmatprep.subr.mxu0 0.0
        %1629 = vmatpush1.xpose.msra.mxu0 0.0
        %1630 = vmatprep.mubr.f32.mxu0 0.0
        %1631 = vmatmul.mubr.f32.gmra.mrb[0].mxu0 %v1562
        %v1632 = vpop.f32.mrb[0].mxu0
        %v1633 = vadd.f32 0.0, %v1632
        %v1634 = vpop.f32.mrb[0].mxu0
        %1635 = vdwg.mxu0
        %v1636 = vmul.f32 %v1633, 0.35355338
        %v1637 = vlaneseq
        %v1638 = vshrl.u32 %v1637, 7
        %v1639 = vsub.s32 1, %v1638
        %v1640 = vrot.slane %v776, %v1639
        %v1641 = vadd.f32 %v1636, %v1640
        %v1642 = vsel %vm873, %v1641, -inf
        %1643 = vmax.xlane.f32.xlu0 %v1642
        %v1644 = vpop.xlane.xlu0 %1643
        %v1645 = vsub.f32 %v1641, %v1644
        %v1646 = vmul.f32 %v1645, 1.442695
        %v1647 = vpow.pop %v1646
        %v1648 = vsel %vm873, %v1647, 0.0
        %1649 = vadd.xlane.f32.xlu0 %v1648
        %v1650 = vpop.xlane.xlu0 %1649
        %v1651 = vrcp.pop %v1650
        %v1652 = vmul.f32 %v1647, %v1651
        %1653 = vrot.lane.b32.xlu0 %v867, 64
        %v1654 = vpop.permute.xlu0 %1653
        %v1657 = vsel %vm873, %v1652, 0
        %1659 = vmatprep.subr.mxu0 0.0
        %1660 = vmatpush1.msra.mxu0 %v1654
        %1661 = vmatprep.subr.mxu0 0.0
        %1662 = vmatpush1.msra.mxu0 0.0
        %1663 = vmatprep.subr.mxu0 0.0
        %1664 = vmatpush1.msra.mxu0 0.0
        %1665 = vmatprep.subr.mxu0 0.0
        %1666 = vmatpush1.msra.mxu0 0.0
        %1667 = vmatprep.subr.mxu0 0.0
        %1668 = vmatpush1.msra.mxu0 0.0
        %1669 = vmatprep.subr.mxu0 0.0
        %1670 = vmatpush1.msra.mxu0 0.0
        %1671 = vmatprep.subr.mxu0 0.0
        %1672 = vmatpush1.msra.mxu0 0.0
        %1673 = vmatprep.subr.mxu0 0.0
        %1674 = vmatpush1.msra.mxu0 0.0
        %1675 = vmatprep.subr.mxu0 0.0
        %1676 = vmatpush1.msra.mxu0 0.0
        %1677 = vmatprep.subr.mxu0 0.0
        %1678 = vmatpush1.msra.mxu0 0.0
        %1679 = vmatprep.subr.mxu0 0.0
        %1680 = vmatpush1.msra.mxu0 0.0
        %1681 = vmatprep.subr.mxu0 0.0
        %1682 = vmatpush1.msra.mxu0 0.0
        %1683 = vmatprep.subr.mxu0 0.0
        %1684 = vmatpush1.msra.mxu0 0.0
        %1685 = vmatprep.subr.mxu0 0.0
        %1686 = vmatpush1.msra.mxu0 0.0
        %1687 = vmatprep.subr.mxu0 0.0
        %1688 = vmatpush1.msra.mxu0 0.0
        %1689 = vmatprep.subr.mxu0 0.0
        %1690 = vmatpush1.msra.mxu0 0.0
        %1691 = vmatprep.subr.mxu0 0.0
        %1692 = vmatpush1.msra.mxu0 0.0
        %1693 = vmatprep.subr.mxu0 0.0
        %1694 = vmatpush1.msra.mxu0 0.0
        %1695 = vmatprep.subr.mxu0 0.0
        %1696 = vmatpush1.msra.mxu0 0.0
        %1697 = vmatprep.subr.mxu0 0.0
        %1698 = vmatpush1.msra.mxu0 0.0
        %1699 = vmatprep.subr.mxu0 0.0
        %1700 = vmatpush1.msra.mxu0 0.0
        %1701 = vmatprep.subr.mxu0 0.0
        %1702 = vmatpush1.msra.mxu0 0.0
        %1703 = vmatprep.subr.mxu0 0.0
        %1704 = vmatpush1.msra.mxu0 0.0
        %1705 = vmatprep.subr.mxu0 0.0
        %1706 = vmatpush1.msra.mxu0 0.0
        %1707 = vmatprep.subr.mxu0 0.0
        %1708 = vmatpush1.msra.mxu0 0.0
        %1709 = vmatprep.subr.mxu0 0.0
        %1710 = vmatpush1.msra.mxu0 0.0
        %1711 = vmatprep.subr.mxu0 0.0
        %1712 = vmatpush1.msra.mxu0 0.0
        %1713 = vmatprep.subr.mxu0 0.0
        %1714 = vmatpush1.msra.mxu0 0.0
        %1715 = vmatprep.subr.mxu0 0.0
        %1716 = vmatpush1.msra.mxu0 0.0
        %1717 = vmatprep.subr.mxu0 0.0
        %1718 = vmatpush1.msra.mxu0 0.0
        %1719 = vmatprep.subr.mxu0 0.0
        %1720 = vmatpush1.msra.mxu0 0.0
        %1721 = vmatprep.subr.mxu0 0.0
        %1722 = vmatpush1.msra.mxu0 0.0
        %1723 = vmatprep.mubr.f32.mxu0 0.0
        %1724 = vmatmul.mubr.f32.gmra.mrb[0].mxu0 %v1657
        %v1725 = vpop.f32.mrb[0].mxu0
        %v1726 = vadd.f32 0.0, %v1725
        %v1727 = vpop.f32.mrb[0].mxu0
        %1728 = vdwg.mxu0
        %1729 = vrot.lane.b32.xlu0 %v867, 120
        %v1730 = vpop.permute.xlu0 %1729
        %1731 = vrot.lane.b32.xlu0 %v867, 88
        %v1732 = vpop.permute.xlu0 %1731
        %v1733 = vsel %vm873, %v1730, 0
        %v1735 = vsel %vm873, %v1732, 0
        %1737 = vmatprep.subr.mxu0 0.0
        %1738 = vmatpush1.xpose.msra.mxu0 %v1735
        %1739 = vmatprep.subr.mxu0 0.0
        %1740 = vmatpush1.xpose.msra.mxu0 0.0
        %1741 = vmatprep.subr.mxu0 0.0
        %1742 = vmatpush1.xpose.msra.mxu0 0.0
        %1743 = vmatprep.subr.mxu0 0.0
        %1744 = vmatpush1.xpose.msra.mxu0 0.0
        %1745 = vmatprep.subr.mxu0 0.0
        %1746 = vmatpush1.xpose.msra.mxu0 0.0
        %1747 = vmatprep.subr.mxu0 0.0
        %1748 = vmatpush1.xpose.msra.mxu0 0.0
        %1749 = vmatprep.subr.mxu0 0.0
        %1750 = vmatpush1.xpose.msra.mxu0 0.0
        %1751 = vmatprep.subr.mxu0 0.0
        %1752 = vmatpush1.xpose.msra.mxu0 0.0
        %1753 = vmatprep.subr.mxu0 0.0
        %1754 = vmatpush1.xpose.msra.mxu0 0.0
        %1755 = vmatprep.subr.mxu0 0.0
        %1756 = vmatpush1.xpose.msra.mxu0 0.0
        %1757 = vmatprep.subr.mxu0 0.0
        %1758 = vmatpush1.xpose.msra.mxu0 0.0
        %1759 = vmatprep.subr.mxu0 0.0
        %1760 = vmatpush1.xpose.msra.mxu0 0.0
        %1761 = vmatprep.subr.mxu0 0.0
        %1762 = vmatpush1.xpose.msra.mxu0 0.0
        %1763 = vmatprep.subr.mxu0 0.0
        %1764 = vmatpush1.xpose.msra.mxu0 0.0
        %1765 = vmatprep.subr.mxu0 0.0
        %1766 = vmatpush1.xpose.msra.mxu0 0.0
        %1767 = vmatprep.subr.mxu0 0.0
        %1768 = vmatpush1.xpose.msra.mxu0 0.0
        %1769 = vmatprep.subr.mxu0 0.0
        %1770 = vmatpush1.xpose.msra.mxu0 0.0
        %1771 = vmatprep.subr.mxu0 0.0
        %1772 = vmatpush1.xpose.msra.mxu0 0.0
        %1773 = vmatprep.subr.mxu0 0.0
        %1774 = vmatpush1.xpose.msra.mxu0 0.0
        %1775 = vmatprep.subr.mxu0 0.0
        %1776 = vmatpush1.xpose.msra.mxu0 0.0
        %1777 = vmatprep.subr.mxu0 0.0
        %1778 = vmatpush1.xpose.msra.mxu0 0.0
        %1779 = vmatprep.subr.mxu0 0.0
        %1780 = vmatpush1.xpose.msra.mxu0 0.0
        %1781 = vmatprep.subr.mxu0 0.0
        %1782 = vmatpush1.xpose.msra.mxu0 0.0
        %1783 = vmatprep.subr.mxu0 0.0
        %1784 = vmatpush1.xpose.msra.mxu0 0.0
        %1785 = vmatprep.subr.mxu0 0.0
        %1786 = vmatpush1.xpose.msra.mxu0 0.0
        %1787 = vmatprep.subr.mxu0 0.0
        %1788 = vmatpush1.xpose.msra.mxu0 0.0
        %1789 = vmatprep.subr.mxu0 0.0
        %1790 = vmatpush1.xpose.msra.mxu0 0.0
        %1791 = vmatprep.subr.mxu0 0.0
        %1792 = vmatpush1.xpose.msra.mxu0 0.0
        %1793 = vmatprep.subr.mxu0 0.0
        %1794 = vmatpush1.xpose.msra.mxu0 0.0
        %1795 = vmatprep.subr.mxu0 0.0
        %1796 = vmatpush1.xpose.msra.mxu0 0.0
        %1797 = vmatprep.subr.mxu0 0.0
        %1798 = vmatpush1.xpose.msra.mxu0 0.0
        %1799 = vmatprep.subr.mxu0 0.0
        %1800 = vmatpush1.xpose.msra.mxu0 0.0
        %1801 = vmatprep.mubr.f32.mxu0 0.0
        %1802 = vmatmul.mubr.f32.gmra.mrb[0].mxu0 %v1733
        %v1803 = vpop.f32.mrb[0].mxu0
        %v1804 = vadd.f32 0.0, %v1803
        %v1805 = vpop.f32.mrb[0].mxu0
        %1806 = vdwg.mxu0
        %v1807 = vmul.f32 %v1804, 0.35355338
        %v1808 = vadd.f32 %v1807, %v1640
        %v1809 = vsel %vm873, %v1808, -inf
        %1810 = vmax.xlane.f32.xlu0 %v1809
        %v1811 = vpop.xlane.xlu0 %1810
        %v1812 = vsub.f32 %v1808, %v1811
        %v1813 = vmul.f32 %v1812, 1.442695
        %v1814 = vpow.pop %v1813
        %v1815 = vsel %vm873, %v1814, 0.0
        %1816 = vadd.xlane.f32.xlu0 %v1815
        %v1817 = vpop.xlane.xlu0 %1816
        %v1818 = vrcp.pop %v1817
        %v1819 = vmul.f32 %v1814, %v1818
        %1820 = vrot.lane.b32.xlu0 %v867, 56
        %v1821 = vpop.permute.xlu0 %1820
        %v1824 = vsel %vm873, %v1819, 0
        %1826 = vmatprep.subr.mxu0 0.0
        %1827 = vmatpush1.msra.mxu0 %v1821
        %1828 = vmatprep.subr.mxu0 0.0
        %1829 = vmatpush1.msra.mxu0 0.0
        %1830 = vmatprep.subr.mxu0 0.0
        %1831 = vmatpush1.msra.mxu0 0.0
        %1832 = vmatprep.subr.mxu0 0.0
        %1833 = vmatpush1.msra.mxu0 0.0
        %1834 = vmatprep.subr.mxu0 0.0
        %1835 = vmatpush1.msra.mxu0 0.0
        %1836 = vmatprep.subr.mxu0 0.0
        %1837 = vmatpush1.msra.mxu0 0.0
        %1838 = vmatprep.subr.mxu0 0.0
        %1839 = vmatpush1.msra.mxu0 0.0
        %1840 = vmatprep.subr.mxu0 0.0
        %1841 = vmatpush1.msra.mxu0 0.0
        %1842 = vmatprep.subr.mxu0 0.0
        %1843 = vmatpush1.msra.mxu0 0.0
        %1844 = vmatprep.subr.mxu0 0.0
        %1845 = vmatpush1.msra.mxu0 0.0
        %1846 = vmatprep.subr.mxu0 0.0
        %1847 = vmatpush1.msra.mxu0 0.0
        %1848 = vmatprep.subr.mxu0 0.0
        %1849 = vmatpush1.msra.mxu0 0.0
        %1850 = vmatprep.subr.mxu0 0.0
        %1851 = vmatpush1.msra.mxu0 0.0
        %1852 = vmatprep.subr.mxu0 0.0
        %1853 = vmatpush1.msra.mxu0 0.0
        %1854 = vmatprep.subr.mxu0 0.0
        %1855 = vmatpush1.msra.mxu0 0.0
        %1856 = vmatprep.subr.mxu0 0.0
        %1857 = vmatpush1.msra.mxu0 0.0
        %1858 = vmatprep.subr.mxu0 0.0
        %1859 = vmatpush1.msra.mxu0 0.0
        %1860 = vmatprep.subr.mxu0 0.0
        %1861 = vmatpush1.msra.mxu0 0.0
        %1862 = vmatprep.subr.mxu0 0.0
        %1863 = vmatpush1.msra.mxu0 0.0
        %1864 = vmatprep.subr.mxu0 0.0
        %1865 = vmatpush1.msra.mxu0 0.0
        %1866 = vmatprep.subr.mxu0 0.0
        %1867 = vmatpush1.msra.mxu0 0.0
        %1868 = vmatprep.subr.mxu0 0.0
        %1869 = vmatpush1.msra.mxu0 0.0
        %1870 = vmatprep.subr.mxu0 0.0
        %1871 = vmatpush1.msra.mxu0 0.0
        %1872 = vmatprep.subr.mxu0 0.0
        %1873 = vmatpush1.msra.mxu0 0.0
        %1874 = vmatprep.subr.mxu0 0.0
        %1875 = vmatpush1.msra.mxu0 0.0
        %1876 = vmatprep.subr.mxu0 0.0
        %1877 = vmatpush1.msra.mxu0 0.0
        %1878 = vmatprep.subr.mxu0 0.0
        %1879 = vmatpush1.msra.mxu0 0.0
        %1880 = vmatprep.subr.mxu0 0.0
        %1881 = vmatpush1.msra.mxu0 0.0
        %1882 = vmatprep.subr.mxu0 0.0
        %1883 = vmatpush1.msra.mxu0 0.0
        %1884 = vmatprep.subr.mxu0 0.0
        %1885 = vmatpush1.msra.mxu0 0.0
        %1886 = vmatprep.subr.mxu0 0.0
        %1887 = vmatpush1.msra.mxu0 0.0
        %1888 = vmatprep.subr.mxu0 0.0
        %1889 = vmatpush1.msra.mxu0 0.0
        %1890 = vmatprep.mubr.f32.mxu0 0.0
        %1891 = vmatmul.mubr.f32.gmra.mrb[0].mxu0 %v1824
        %v1892 = vpop.f32.mrb[0].mxu0
        %v1893 = vadd.f32 0.0, %v1892
        %v1894 = vpop.f32.mrb[0].mxu0
        %1895 = vdwg.mxu0
        %1896 = vrot.lane.b32.xlu0 %v867, 112
        %v1897 = vpop.permute.xlu0 %1896
        %1898 = vrot.lane.b32.xlu0 %v867, 80
        %v1899 = vpop.permute.xlu0 %1898
        %v1900 = vsel %vm873, %v1897, 0
        %v1902 = vsel %vm873, %v1899, 0
        %1904 = vmatprep.subr.mxu0 0.0
        %1905 = vmatpush1.xpose.msra.mxu0 %v1902
        %1906 = vmatprep.subr.mxu0 0.0
        %1907 = vmatpush1.xpose.msra.mxu0 0.0
        %1908 = vmatprep.subr.mxu0 0.0
        %1909 = vmatpush1.xpose.msra.mxu0 0.0
        %1910 = vmatprep.subr.mxu0 0.0
        %1911 = vmatpush1.xpose.msra.mxu0 0.0
        %1912 = vmatprep.subr.mxu0 0.0
        %1913 = vmatpush1.xpose.msra.mxu0 0.0
        %1914 = vmatprep.subr.mxu0 0.0
        %1915 = vmatpush1.xpose.msra.mxu0 0.0
        %1916 = vmatprep.subr.mxu0 0.0
        %1917 = vmatpush1.xpose.msra.mxu0 0.0
        %1918 = vmatprep.subr.mxu0 0.0
        %1919 = vmatpush1.xpose.msra.mxu0 0.0
        %1920 = vmatprep.subr.mxu0 0.0
        %1921 = vmatpush1.xpose.msra.mxu0 0.0
        %1922 = vmatprep.subr.mxu0 0.0
        %1923 = vmatpush1.xpose.msra.mxu0 0.0
        %1924 = vmatprep.subr.mxu0 0.0
        %1925 = vmatpush1.xpose.msra.mxu0 0.0
        %1926 = vmatprep.subr.mxu0 0.0
        %1927 = vmatpush1.xpose.msra.mxu0 0.0
        %1928 = vmatprep.subr.mxu0 0.0
        %1929 = vmatpush1.xpose.msra.mxu0 0.0
        %1930 = vmatprep.subr.mxu0 0.0
        %1931 = vmatpush1.xpose.msra.mxu0 0.0
        %1932 = vmatprep.subr.mxu0 0.0
        %1933 = vmatpush1.xpose.msra.mxu0 0.0
        %1934 = vmatprep.subr.mxu0 0.0
        %1935 = vmatpush1.xpose.msra.mxu0 0.0
        %1936 = vmatprep.subr.mxu0 0.0
        %1937 = vmatpush1.xpose.msra.mxu0 0.0
        %1938 = vmatprep.subr.mxu0 0.0
        %1939 = vmatpush1.xpose.msra.mxu0 0.0
        %1940 = vmatprep.subr.mxu0 0.0
        %1941 = vmatpush1.xpose.msra.mxu0 0.0
        %1942 = vmatprep.subr.mxu0 0.0
        %1943 = vmatpush1.xpose.msra.mxu0 0.0
        %1944 = vmatprep.subr.mxu0 0.0
        %1945 = vmatpush1.xpose.msra.mxu0 0.0
        %1946 = vmatprep.subr.mxu0 0.0
        %1947 = vmatpush1.xpose.msra.mxu0 0.0
        %1948 = vmatprep.subr.mxu0 0.0
        %1949 = vmatpush1.xpose.msra.mxu0 0.0
        %1950 = vmatprep.subr.mxu0 0.0
        %1951 = vmatpush1.xpose.msra.mxu0 0.0
        %1952 = vmatprep.subr.mxu0 0.0
        %1953 = vmatpush1.xpose.msra.mxu0 0.0
        %1954 = vmatprep.subr.mxu0 0.0
        %1955 = vmatpush1.xpose.msra.mxu0 0.0
        %1956 = vmatprep.subr.mxu0 0.0
        %1957 = vmatpush1.xpose.msra.mxu0 0.0
        %1958 = vmatprep.subr.mxu0 0.0
        %1959 = vmatpush1.xpose.msra.mxu0 0.0
        %1960 = vmatprep.subr.mxu0 0.0
        %1961 = vmatpush1.xpose.msra.mxu0 0.0
        %1962 = vmatprep.subr.mxu0 0.0
        %1963 = vmatpush1.xpose.msra.mxu0 0.0
        %1964 = vmatprep.subr.mxu0 0.0
        %1965 = vmatpush1.xpose.msra.mxu0 0.0
        %1966 = vmatprep.subr.mxu0 0.0
        %1967 = vmatpush1.xpose.msra.mxu0 0.0
        %1968 = vmatprep.mubr.f32.mxu0 0.0
        %1969 = vmatmul.mubr.f32.gmra.mrb[0].mxu0 %v1900
        %v1970 = vpop.f32.mrb[0].mxu0
        %v1971 = vadd.f32 0.0, %v1970
        %v1972 = vpop.f32.mrb[0].mxu0
        %1973 = vdwg.mxu0
        %v1974 = vmul.f32 %v1971, 0.35355338
        %v1975 = vadd.f32 %v1974, %v1640
        %v1976 = vsel %vm873, %v1975, -inf
        %1977 = vmax.xlane.f32.xlu0 %v1976
        %v1978 = vpop.xlane.xlu0 %1977
        %v1979 = vsub.f32 %v1975, %v1978
        %v1980 = vmul.f32 %v1979, 1.442695
        %v1981 = vpow.pop %v1980
        %v1982 = vsel %vm873, %v1981, 0.0
        %1983 = vadd.xlane.f32.xlu0 %v1982
        %v1984 = vpop.xlane.xlu0 %1983
        %v1985 = vrcp.pop %v1984
        %v1986 = vmul.f32 %v1981, %v1985
        %1987 = vrot.lane.b32.xlu0 %v867, 48
        %v1988 = vpop.permute.xlu0 %1987
        %v1991 = vsel %vm873, %v1986, 0
        %1993 = vmatprep.subr.mxu0 0.0
        %1994 = vmatpush1.msra.mxu0 %v1988
        %1995 = vmatprep.subr.mxu0 0.0
        %1996 = vmatpush1.msra.mxu0 0.0
        %1997 = vmatprep.subr.mxu0 0.0
        %1998 = vmatpush1.msra.mxu0 0.0
        %1999 = vmatprep.subr.mxu0 0.0
        %2000 = vmatpush1.msra.mxu0 0.0
        %2001 = vmatprep.subr.mxu0 0.0
        %2002 = vmatpush1.msra.mxu0 0.0
        %2003 = vmatprep.subr.mxu0 0.0
        %2004 = vmatpush1.msra.mxu0 0.0
        %2005 = vmatprep.subr.mxu0 0.0
        %2006 = vmatpush1.msra.mxu0 0.0
        %2007 = vmatprep.subr.mxu0 0.0
        %2008 = vmatpush1.msra.mxu0 0.0
        %2009 = vmatprep.subr.mxu0 0.0
        %2010 = vmatpush1.msra.mxu0 0.0
        %2011 = vmatprep.subr.mxu0 0.0
        %2012 = vmatpush1.msra.mxu0 0.0
        %2013 = vmatprep.subr.mxu0 0.0
        %2014 = vmatpush1.msra.mxu0 0.0
        %2015 = vmatprep.subr.mxu0 0.0
        %2016 = vmatpush1.msra.mxu0 0.0
        %2017 = vmatprep.subr.mxu0 0.0
        %2018 = vmatpush1.msra.mxu0 0.0
        %2019 = vmatprep.subr.mxu0 0.0
        %2020 = vmatpush1.msra.mxu0 0.0
        %2021 = vmatprep.subr.mxu0 0.0
        %2022 = vmatpush1.msra.mxu0 0.0
        %2023 = vmatprep.subr.mxu0 0.0
        %2024 = vmatpush1.msra.mxu0 0.0
        %2025 = vmatprep.subr.mxu0 0.0
        %2026 = vmatpush1.msra.mxu0 0.0
        %2027 = vmatprep.subr.mxu0 0.0
        %2028 = vmatpush1.msra.mxu0 0.0
        %2029 = vmatprep.subr.mxu0 0.0
        %2030 = vmatpush1.msra.mxu0 0.0
        %2031 = vmatprep.subr.mxu0 0.0
        %2032 = vmatpush1.msra.mxu0 0.0
        %2033 = vmatprep.subr.mxu0 0.0
        %2034 = vmatpush1.msra.mxu0 0.0
        %2035 = vmatprep.subr.mxu0 0.0
        %2036 = vmatpush1.msra.mxu0 0.0
        %2037 = vmatprep.subr.mxu0 0.0
        %2038 = vmatpush1.msra.mxu0 0.0
        %2039 = vmatprep.subr.mxu0 0.0
        %2040 = vmatpush1.msra.mxu0 0.0
        %2041 = vmatprep.subr.mxu0 0.0
        %2042 = vmatpush1.msra.mxu0 0.0
        %2043 = vmatprep.subr.mxu0 0.0
        %2044 = vmatpush1.msra.mxu0 0.0
        %2045 = vmatprep.subr.mxu0 0.0
        %2046 = vmatpush1.msra.mxu0 0.0
        %2047 = vmatprep.subr.mxu0 0.0
        %2048 = vmatpush1.msra.mxu0 0.0
        %2049 = vmatprep.subr.mxu0 0.0
        %2050 = vmatpush1.msra.mxu0 0.0
        %2051 = vmatprep.subr.mxu0 0.0
        %2052 = vmatpush1.msra.mxu0 0.0
        %2053 = vmatprep.subr.mxu0 0.0
        %2054 = vmatpush1.msra.mxu0 0.0
        %2055 = vmatprep.subr.mxu0 0.0
        %2056 = vmatpush1.msra.mxu0 0.0
        %2057 = vmatprep.mubr.f32.mxu0 0.0
        %2058 = vmatmul.mubr.f32.gmra.mrb[0].mxu0 %v1991
        %v2059 = vpop.f32.mrb[0].mxu0
        %v2060 = vadd.f32 0.0, %v2059
        %v2061 = vpop.f32.mrb[0].mxu0
        %2062 = vdwg.mxu0
        %2063 = vrot.lane.b32.xlu0 %v867, 104
        %v2064 = vpop.permute.xlu0 %2063
        %2065 = vrot.lane.b32.xlu0 %v867, 72
        %v2066 = vpop.permute.xlu0 %2065
        %v2067 = vsel %vm873, %v2064, 0
        %v2069 = vsel %vm873, %v2066, 0
        %2071 = vmatprep.subr.mxu0 0.0
        %2072 = vmatpush1.xpose.msra.mxu0 %v2069
        %2073 = vmatprep.subr.mxu0 0.0
        %2074 = vmatpush1.xpose.msra.mxu0 0.0
        %2075 = vmatprep.subr.mxu0 0.0
        %2076 = vmatpush1.xpose.msra.mxu0 0.0
        %2077 = vmatprep.subr.mxu0 0.0
        %2078 = vmatpush1.xpose.msra.mxu0 0.0
        %2079 = vmatprep.subr.mxu0 0.0
        %2080 = vmatpush1.xpose.msra.mxu0 0.0
        %2081 = vmatprep.subr.mxu0 0.0
        %2082 = vmatpush1.xpose.msra.mxu0 0.0
        %2083 = vmatprep.subr.mxu0 0.0
        %2084 = vmatpush1.xpose.msra.mxu0 0.0
        %2085 = vmatprep.subr.mxu0 0.0
        %2086 = vmatpush1.xpose.msra.mxu0 0.0
        %2087 = vmatprep.subr.mxu0 0.0
        %2088 = vmatpush1.xpose.msra.mxu0 0.0
        %2089 = vmatprep.subr.mxu0 0.0
        %2090 = vmatpush1.xpose.msra.mxu0 0.0
        %2091 = vmatprep.subr.mxu0 0.0
        %2092 = vmatpush1.xpose.msra.mxu0 0.0
        %2093 = vmatprep.subr.mxu0 0.0
        %2094 = vmatpush1.xpose.msra.mxu0 0.0
        %2095 = vmatprep.subr.mxu0 0.0
        %2096 = vmatpush1.xpose.msra.mxu0 0.0
        %2097 = vmatprep.subr.mxu0 0.0
        %2098 = vmatpush1.xpose.msra.mxu0 0.0
        %2099 = vmatprep.subr.mxu0 0.0
        %2100 = vmatpush1.xpose.msra.mxu0 0.0
        %2101 = vmatprep.subr.mxu0 0.0
        %2102 = vmatpush1.xpose.msra.mxu0 0.0
        %2103 = vmatprep.subr.mxu0 0.0
        %2104 = vmatpush1.xpose.msra.mxu0 0.0
        %2105 = vmatprep.subr.mxu0 0.0
        %2106 = vmatpush1.xpose.msra.mxu0 0.0
        %2107 = vmatprep.subr.mxu0 0.0
        %2108 = vmatpush1.xpose.msra.mxu0 0.0
        %2109 = vmatprep.subr.mxu0 0.0
        %2110 = vmatpush1.xpose.msra.mxu0 0.0
        %2111 = vmatprep.subr.mxu0 0.0
        %2112 = vmatpush1.xpose.msra.mxu0 0.0
        %2113 = vmatprep.subr.mxu0 0.0
        %2114 = vmatpush1.xpose.msra.mxu0 0.0
        %2115 = vmatprep.subr.mxu0 0.0
        %2116 = vmatpush1.xpose.msra.mxu0 0.0
        %2117 = vmatprep.subr.mxu0 0.0
        %2118 = vmatpush1.xpose.msra.mxu0 0.0
        %2119 = vmatprep.subr.mxu0 0.0
        %2120 = vmatpush1.xpose.msra.mxu0 0.0
        %2121 = vmatprep.subr.mxu0 0.0
        %2122 = vmatpush1.xpose.msra.mxu0 0.0
        %2123 = vmatprep.subr.mxu0 0.0
        %2124 = vmatpush1.xpose.msra.mxu0 0.0
        %2125 = vmatprep.subr.mxu0 0.0
        %2126 = vmatpush1.xpose.msra.mxu0 0.0
        %2127 = vmatprep.subr.mxu0 0.0
        %2128 = vmatpush1.xpose.msra.mxu0 0.0
        %2129 = vmatprep.subr.mxu0 0.0
        %2130 = vmatpush1.xpose.msra.mxu0 0.0
        %2131 = vmatprep.subr.mxu0 0.0
        %2132 = vmatpush1.xpose.msra.mxu0 0.0
        %2133 = vmatprep.subr.mxu0 0.0
        %2134 = vmatpush1.xpose.msra.mxu0 0.0
        %2135 = vmatprep.mubr.f32.mxu0 0.0
        %2136 = vmatmul.mubr.f32.gmra.mrb[0].mxu0 %v2067
        %v2137 = vpop.f32.mrb[0].mxu0
        %v2138 = vadd.f32 0.0, %v2137
        %v2139 = vpop.f32.mrb[0].mxu0
        %2140 = vdwg.mxu0
        %v2141 = vmul.f32 %v2138, 0.35355338
        %v2142 = vadd.f32 %v2141, %v1640
        %v2143 = vsel %vm873, %v2142, -inf
        %2144 = vmax.xlane.f32.xlu0 %v2143
        %v2145 = vpop.xlane.xlu0 %2144
        %v2146 = vsub.f32 %v2142, %v2145
        %v2147 = vmul.f32 %v2146, 1.442695
        %v2148 = vpow.pop %v2147
        %v2149 = vsel %vm873, %v2148, 0.0
        %2150 = vadd.xlane.f32.xlu0 %v2149
        %v2151 = vpop.xlane.xlu0 %2150
        %v2152 = vrcp.pop %v2151
        %v2153 = vmul.f32 %v2148, %v2152
        %2154 = vrot.lane.b32.xlu0 %v867, 40
        %v2155 = vpop.permute.xlu0 %2154
        %v2158 = vsel %vm873, %v2153, 0
        %2160 = vmatprep.subr.mxu0 0.0
        %2161 = vmatpush1.msra.mxu0 %v2155
        %2162 = vmatprep.subr.mxu0 0.0
        %2163 = vmatpush1.msra.mxu0 0.0
        %2164 = vmatprep.subr.mxu0 0.0
        %2165 = vmatpush1.msra.mxu0 0.0
        %2166 = vmatprep.subr.mxu0 0.0
        %2167 = vmatpush1.msra.mxu0 0.0
        %2168 = vmatprep.subr.mxu0 0.0
        %2169 = vmatpush1.msra.mxu0 0.0
        %2170 = vmatprep.subr.mxu0 0.0
        %2171 = vmatpush1.msra.mxu0 0.0
        %2172 = vmatprep.subr.mxu0 0.0
        %2173 = vmatpush1.msra.mxu0 0.0
        %2174 = vmatprep.subr.mxu0 0.0
        %2175 = vmatpush1.msra.mxu0 0.0
        %2176 = vmatprep.subr.mxu0 0.0
        %2177 = vmatpush1.msra.mxu0 0.0
        %2178 = vmatprep.subr.mxu0 0.0
        %2179 = vmatpush1.msra.mxu0 0.0
        %2180 = vmatprep.subr.mxu0 0.0
        %2181 = vmatpush1.msra.mxu0 0.0
        %2182 = vmatprep.subr.mxu0 0.0
        %2183 = vmatpush1.msra.mxu0 0.0
        %2184 = vmatprep.subr.mxu0 0.0
        %2185 = vmatpush1.msra.mxu0 0.0
        %2186 = vmatprep.subr.mxu0 0.0
        %2187 = vmatpush1.msra.mxu0 0.0
        %2188 = vmatprep.subr.mxu0 0.0
        %2189 = vmatpush1.msra.mxu0 0.0
        %2190 = vmatprep.subr.mxu0 0.0
        %2191 = vmatpush1.msra.mxu0 0.0
        %2192 = vmatprep.subr.mxu0 0.0
        %2193 = vmatpush1.msra.mxu0 0.0
        %2194 = vmatprep.subr.mxu0 0.0
        %2195 = vmatpush1.msra.mxu0 0.0
        %2196 = vmatprep.subr.mxu0 0.0
        %2197 = vmatpush1.msra.mxu0 0.0
        %2198 = vmatprep.subr.mxu0 0.0
        %2199 = vmatpush1.msra.mxu0 0.0
        %2200 = vmatprep.subr.mxu0 0.0
        %2201 = vmatpush1.msra.mxu0 0.0
        %2202 = vmatprep.subr.mxu0 0.0
        %2203 = vmatpush1.msra.mxu0 0.0
        %2204 = vmatprep.subr.mxu0 0.0
        %2205 = vmatpush1.msra.mxu0 0.0
        %2206 = vmatprep.subr.mxu0 0.0
        %2207 = vmatpush1.msra.mxu0 0.0
        %2208 = vmatprep.subr.mxu0 0.0
        %2209 = vmatpush1.msra.mxu0 0.0
        %2210 = vmatprep.subr.mxu0 0.0
        %2211 = vmatpush1.msra.mxu0 0.0
        %2212 = vmatprep.subr.mxu0 0.0
        %2213 = vmatpush1.msra.mxu0 0.0
        %2214 = vmatprep.subr.mxu0 0.0
        %2215 = vmatpush1.msra.mxu0 0.0
        %2216 = vmatprep.subr.mxu0 0.0
        %2217 = vmatpush1.msra.mxu0 0.0
        %2218 = vmatprep.subr.mxu0 0.0
        %2219 = vmatpush1.msra.mxu0 0.0
        %2220 = vmatprep.subr.mxu0 0.0
        %2221 = vmatpush1.msra.mxu0 0.0
        %2222 = vmatprep.subr.mxu0 0.0
        %2223 = vmatpush1.msra.mxu0 0.0
        %2224 = vmatprep.mubr.f32.mxu0 0.0
        %2225 = vmatmul.mubr.f32.gmra.mrb[0].mxu0 %v2158
        %v2226 = vpop.f32.mrb[0].mxu0
        %v2227 = vadd.f32 0.0, %v2226
        %v2228 = vpop.f32.mrb[0].mxu0
        %2229 = vdwg.mxu0
        %2231 = vrot.lane.b32.xlu0 %v1893, 8
        %v2232 = vpop.permute.xlu0 %2231
        %2235 = vrot.lane.b32.xlu0 %v2060, 16
        %v2236 = vpop.permute.xlu0 %2235
        %2239 = vrot.lane.b32.xlu0 %v2227, 24
        %v2240 = vpop.permute.xlu0 %2239
        %v2242 = vsel %vm873, %v1726, %v2232
        %v2243 = vsel %vm1555, %v2242, %v2236
        %v2244 = vsel %vm1557, %v2243, %v2240
        %v2245 = vld [vmem:[%s688] sm:$0xff]
        %v2246 = vld [vmem:[%s688 + $0x8] sm:$0xff]
        %v2247 = vld [vmem:[%s688 + $0x10] sm:$0xff]
        %v2248 = vld [vmem:[%s688 + $0x18] sm:$0xff]
        %v2249 = vld [vmem:[%s691] sm:$0x1]
        %v2251 = vlaneseq
        %v2252 = vshrl.u32 %v2251, 7
        %v2253 = vsub.s32 0, %v2252
        %v2254 = vrot.slane %v2249, %v2253
        %v2257 = vsel %vm788, %v1558, 0
        %v2260 = vsel %vm788, %v2244, 0
        %2262 = vmatprep.subr.mxu0 0.0
        %2263 = vmatpush1.msra.mxu0 %v2245
        %2264 = vmatprep.subr.mxu0 0.0
        %2265 = vmatpush1.msra.mxu0 %v2246
        %2266 = vmatprep.subr.mxu0 0.0
        %2267 = vmatpush1.msra.mxu0 %v2247
        %2268 = vmatprep.subr.mxu0 0.0
        %2269 = vmatpush1.msra.mxu0 %v2248
        %2270 = vmatprep.subr.mxu0 0.0
        %2271 = vmatpush1.msra.mxu0 0.0
        %2272 = vmatprep.subr.mxu0 0.0
        %2273 = vmatpush1.msra.mxu0 0.0
        %2274 = vmatprep.subr.mxu0 0.0
        %2275 = vmatpush1.msra.mxu0 0.0
        %2276 = vmatprep.subr.mxu0 0.0
        %2277 = vmatpush1.msra.mxu0 0.0
        %2278 = vmatprep.subr.mxu0 0.0
        %2279 = vmatpush1.msra.mxu0 0.0
        %2280 = vmatprep.subr.mxu0 0.0
        %2281 = vmatpush1.msra.mxu0 0.0
        %2282 = vmatprep.subr.mxu0 0.0
        %2283 = vmatpush1.msra.mxu0 0.0
        %2284 = vmatprep.subr.mxu0 0.0
        %2285 = vmatpush1.msra.mxu0 0.0
        %2286 = vmatprep.subr.mxu0 0.0
        %2287 = vmatpush1.msra.mxu0 0.0
        %2288 = vmatprep.subr.mxu0 0.0
        %2289 = vmatpush1.msra.mxu0 0.0
        %2290 = vmatprep.subr.mxu0 0.0
        %2291 = vmatpush1.msra.mxu0 0.0
        %2292 = vmatprep.subr.mxu0 0.0
        %2293 = vmatpush1.msra.mxu0 0.0
        %2294 = vmatprep.subr.mxu0 0.0
        %2295 = vmatpush1.msra.mxu0 0.0
        %2296 = vmatprep.subr.mxu0 0.0
        %2297 = vmatpush1.msra.mxu0 0.0
        %2298 = vmatprep.subr.mxu0 0.0
        %2299 = vmatpush1.msra.mxu0 0.0
        %2300 = vmatprep.subr.mxu0 0.0
        %2301 = vmatpush1.msra.mxu0 0.0
        %2302 = vmatprep.subr.mxu0 0.0
        %2303 = vmatpush1.msra.mxu0 0.0
        %2304 = vmatprep.subr.mxu0 0.0
        %2305 = vmatpush1.msra.mxu0 0.0
        %2306 = vmatprep.subr.mxu0 0.0
        %2307 = vmatpush1.msra.mxu0 0.0
        %2308 = vmatprep.subr.mxu0 0.0
        %2309 = vmatpush1.msra.mxu0 0.0
        %2310 = vmatprep.subr.mxu0 0.0
        %2311 = vmatpush1.msra.mxu0 0.0
        %2312 = vmatprep.subr.mxu0 0.0
        %2313 = vmatpush1.msra.mxu0 0.0
        %2314 = vmatprep.subr.mxu0 0.0
        %2315 = vmatpush1.msra.mxu0 0.0
        %2316 = vmatprep.subr.mxu0 0.0
        %2317 = vmatpush1.msra.mxu0 0.0
        %2318 = vmatprep.subr.mxu0 0.0
        %2319 = vmatpush1.msra.mxu0 0.0
        %2320 = vmatprep.subr.mxu0 0.0
        %2321 = vmatpush1.msra.mxu0 0.0
        %2322 = vmatprep.subr.mxu0 0.0
        %2323 = vmatpush1.msra.mxu0 0.0
        %2324 = vmatprep.subr.mxu0 0.0
        %2325 = vmatpush1.msra.mxu0 0.0
        %2326 = vmatprep.mubr.f32.mxu0 0.0
        %2327 = vmatmul.mubr.f32.gmra.mrb[0].mxu0 %v2257
        %v2328 = vpop.f32.mrb[0].mxu0
        %v2329 = vadd.f32 %v2254, %v2328
        %v2330 = vpop.f32.mrb[0].mxu0
        %2331 = vmatprep.mubr.f32.mxu0 0.0
        %2332 = vmatmul.mubr.f32.gmra.mrb[0].mxu0 %v2260
        %v2333 = vpop.f32.mrb[0].mxu0
        %v2334 = vadd.f32 %v2254, %v2333
        %v2335 = vpop.f32.mrb[0].mxu0
        %2336 = vdwg.mxu0
        %v2337 = vadd.f32 %v2329, %v774
        %v2338 = vadd.f32 %v2334, %v775
        %v2339 = vld [vmem:[%s694] sm:$0x1]
        %v2340 = vld [vmem:[%s697] sm:$0x1]
        %v2341 = vsel %vm788, %v2337, 0.0
        %2342 = vadd.xlane.f32.xlu0 %v2341
        %v2343 = vpop.xlane.xlu0 %2342
        %v2344 = vsel %vm788, %v2338, 0.0
        %2345 = vadd.xlane.f32.xlu0 %v2344
        %v2346 = vpop.xlane.xlu0 %2345
        %v2347 = vrcp.pop 32.0
        %v2348 = vmul.f32 %v2343, %v2347
        %v2349 = vmul.f32 %v2346, %v2347
        %v2350 = vsub.f32 %v2337, %v2348
        %v2351 = vsub.f32 %v2338, %v2349
        %v2352 = vmul.f32 %v2350, %v2350
        %v2353 = vmul.f32 %v2351, %v2351
        %v2354 = vsel %vm788, %v2352, 0.0
        %2355 = vadd.xlane.f32.xlu0 %v2354
        %v2356 = vpop.xlane.xlu0 %2355
        %v2357 = vsel %vm788, %v2353, 0.0
        %2358 = vadd.xlane.f32.xlu0 %v2357
        %v2359 = vpop.xlane.xlu0 %2358
        %v2360 = vmul.f32 %v2356, %v2347
        %v2361 = vmul.f32 %v2359, %v2347
        %v2362 = vadd.f32 %v2360, 1e-12
        %v2363 = vadd.f32 %v2361, 1e-12
        %v2364 = vrsqrt.pop %v2362
        %v2365 = vrsqrt.pop %v2363
        %v2366 = vmul.f32 %v2350, %v2364
        %v2367 = vmul.f32 %v2351, %v2365
        %v2369 = vlaneseq
        %v2370 = vshrl.u32 %v2369, 7
        %v2371 = vsub.s32 0, %v2370
        %v2372 = vrot.slane %v2339, %v2371
        %v2374 = vmul.f32 %v2366, %v2372
        %v2375 = vmul.f32 %v2367, %v2372
        %v2377 = vlaneseq
        %v2378 = vshrl.u32 %v2377, 7
        %v2379 = vsub.s32 0, %v2378
        %v2380 = vrot.slane %v2340, %v2379
        %v2382 = vadd.f32 %v2374, %v2380
        %v2383 = vadd.f32 %v2375, %v2380
        %v2384 = vld [vmem:[%s702] sm:$0xff]
        %v2385 = vld [vmem:[%s702 + $0x8] sm:$0xff]
        %v2386 = vld [vmem:[%s702 + $0x10] sm:$0xff]
        %v2387 = vld [vmem:[%s702 + $0x18] sm:$0xff]
        %v2388 = vld [vmem:[%s705] sm:$0x1]
        %v2390 = vlaneseq
        %v2391 = vshrl.u32 %v2390, 7
        %v2392 = vsub.s32 0, %v2391
        %v2393 = vrot.slane %v2388, %v2392
        %v2396 = vsel %vm788, %v2382, 0
        %v2399 = vsel %vm788, %v2383, 0
        %2401 = vmatprep.subr.mxu0 0.0
        %2402 = vmatpush1.msra.mxu0 %v2384
        %2403 = vmatprep.subr.mxu0 0.0
        %2404 = vmatpush1.msra.mxu0 %v2385
        %2405 = vmatprep.subr.mxu0 0.0
        %2406 = vmatpush1.msra.mxu0 %v2386
        %2407 = vmatprep.subr.mxu0 0.0
        %2408 = vmatpush1.msra.mxu0 %v2387
        %2409 = vmatprep.subr.mxu0 0.0
        %2410 = vmatpush1.msra.mxu0 0.0
        %2411 = vmatprep.subr.mxu0 0.0
        %2412 = vmatpush1.msra.mxu0 0.0
        %2413 = vmatprep.subr.mxu0 0.0
        %2414 = vmatpush1.msra.mxu0 0.0
        %2415 = vmatprep.subr.mxu0 0.0
        %2416 = vmatpush1.msra.mxu0 0.0
        %2417 = vmatprep.subr.mxu0 0.0
        %2418 = vmatpush1.msra.mxu0 0.0
        %2419 = vmatprep.subr.mxu0 0.0
        %2420 = vmatpush1.msra.mxu0 0.0
        %2421 = vmatprep.subr.mxu0 0.0
        %2422 = vmatpush1.msra.mxu0 0.0
        %2423 = vmatprep.subr.mxu0 0.0
        %2424 = vmatpush1.msra.mxu0 0.0
        %2425 = vmatprep.subr.mxu0 0.0
        %2426 = vmatpush1.msra.mxu0 0.0
        %2427 = vmatprep.subr.mxu0 0.0
        %2428 = vmatpush1.msra.mxu0 0.0
        %2429 = vmatprep.subr.mxu0 0.0
        %2430 = vmatpush1.msra.mxu0 0.0
        %2431 = vmatprep.subr.mxu0 0.0
        %2432 = vmatpush1.msra.mxu0 0.0
        %2433 = vmatprep.subr.mxu0 0.0
        %2434 = vmatpush1.msra.mxu0 0.0
        %2435 = vmatprep.subr.mxu0 0.0
        %2436 = vmatpush1.msra.mxu0 0.0
        %2437 = vmatprep.subr.mxu0 0.0
        %2438 = vmatpush1.msra.mxu0 0.0
        %2439 = vmatprep.subr.mxu0 0.0
        %2440 = vmatpush1.msra.mxu0 0.0
        %2441 = vmatprep.subr.mxu0 0.0
        %2442 = vmatpush1.msra.mxu0 0.0
        %2443 = vmatprep.subr.mxu0 0.0
        %2444 = vmatpush1.msra.mxu0 0.0
        %2445 = vmatprep.subr.mxu0 0.0
        %2446 = vmatpush1.msra.mxu0 0.0
        %2447 = vmatprep.subr.mxu0 0.0
        %2448 = vmatpush1.msra.mxu0 0.0
        %2449 = vmatprep.subr.mxu0 0.0
        %2450 = vmatpush1.msra.mxu0 0.0
        %2451 = vmatprep.subr.mxu0 0.0
        %2452 = vmatpush1.msra.mxu0 0.0
        %2453 = vmatprep.subr.mxu0 0.0
        %2454 = vmatpush1.msra.mxu0 0.0
        %2455 = vmatprep.subr.mxu0 0.0
        %2456 = vmatpush1.msra.mxu0 0.0
        %2457 = vmatprep.subr.mxu0 0.0
        %2458 = vmatpush1.msra.mxu0 0.0
        %2459 = vmatprep.subr.mxu0 0.0
        %2460 = vmatpush1.msra.mxu0 0.0
        %2461 = vmatprep.subr.mxu0 0.0
        %2462 = vmatpush1.msra.mxu0 0.0
        %2463 = vmatprep.subr.mxu0 0.0
        %2464 = vmatpush1.msra.mxu0 0.0
        %2465 = vmatprep.mubr.f32.mxu0 0.0
        %2466 = vmatmul.mubr.f32.gmra.mrb[0].mxu0 %v2396
        %v2467 = vpop.f32.mrb[0].mxu0
        %v2468 = vadd.f32 %v2393, %v2467
        %v2469 = vpop.f32.mrb[0].mxu0
        %2470 = vmatprep.mubr.f32.mxu0 0.0
        %2471 = vmatmul.mubr.f32.gmra.mrb[0].mxu0 %v2399
        %v2472 = vpop.f32.mrb[0].mxu0
        %v2473 = vadd.f32 %v2393, %v2472
        %v2474 = vpop.f32.mrb[0].mxu0
        %2475 = vdwg.mxu0
        %v2476 = vmul.f32 %v2468, %v2468
        %v2477 = vmul.f32 %v2473, %v2473
        %v2478 = vmul.f32 %v2468, %v2476
        %v2479 = vmul.f32 %v2473, %v2477
        %v2480 = vmul.f32 %v2478, 0.044715
        %v2481 = vmul.f32 %v2479, 0.044715
        %v2482 = vadd.f32 %v2468, %v2480
        %v2483 = vadd.f32 %v2473, %v2481
        %v2484 = vmul.f32 %v2482, 0.7978846
        %v2485 = vmul.f32 %v2483, 0.7978846
        %v2486 = vtanh.pop %v2484
        %v2487 = vtanh.pop %v2485
        %v2488 = vadd.f32 %v2486, 1.0
        %v2489 = vadd.f32 %v2487, 1.0
        %v2490 = vmul.f32 %v2488, 0.5
        %v2491 = vmul.f32 %v2489, 0.5
        %v2492 = vmul.f32 %v2468, %v2490
        %v2493 = vmul.f32 %v2473, %v2491
        %v2494 = vld [vmem:[%s710] sm:$0xff]
        %v2495 = vld [vmem:[%s710 + $0x8] sm:$0xff]
        %v2496 = vld [vmem:[%s710 + $0x10] sm:$0xff]
        %v2497 = vld [vmem:[%s710 + $0x18] sm:$0xff]
        %v2498 = vld [vmem:[%s710 + $0x20] sm:$0xff]
        %v2499 = vld [vmem:[%s710 + $0x28] sm:$0xff]
        %v2500 = vld [vmem:[%s710 + $0x30] sm:$0xff]
        %v2501 = vld [vmem:[%s710 + $0x38] sm:$0xff]
        %v2502 = vld [vmem:[%s713] sm:$0x1]
        %v2504 = vlaneseq
        %v2505 = vshrl.u32 %v2504, 7
        %v2506 = vsub.s32 0, %v2505
        %v2507 = vrot.slane %v2502, %v2506
        %vm2509 = vcmask 523264
        %v2511 = vsel %vm2509, %v2492, 0
        %v2514 = vsel %vm2509, %v2493, 0
        %2516 = vmatprep.subr.mxu0 0.0
        %2517 = vmatpush1.msra.mxu0 %v2494
        %2518 = vmatprep.subr.mxu0 0.0
        %2519 = vmatpush1.msra.mxu0 %v2495
        %2520 = vmatprep.subr.mxu0 0.0
        %2521 = vmatpush1.msra.mxu0 %v2496
        %2522 = vmatprep.subr.mxu0 0.0
        %2523 = vmatpush1.msra.mxu0 %v2497
        %2524 = vmatprep.subr.mxu0 0.0
        %2525 = vmatpush1.msra.mxu0 %v2498
        %2526 = vmatprep.subr.mxu0 0.0
        %2527 = vmatpush1.msra.mxu0 %v2499
        %2528 = vmatprep.subr.mxu0 0.0
        %2529 = vmatpush1.msra.mxu0 %v2500
        %2530 = vmatprep.subr.mxu0 0.0
        %2531 = vmatpush1.msra.mxu0 %v2501
        %2532 = vmatprep.subr.mxu0 0.0
        %2533 = vmatpush1.msra.mxu0 0.0
        %2534 = vmatprep.subr.mxu0 0.0
        %2535 = vmatpush1.msra.mxu0 0.0
        %2536 = vmatprep.subr.mxu0 0.0
        %2537 = vmatpush1.msra.mxu0 0.0
        %2538 = vmatprep.subr.mxu0 0.0
        %2539 = vmatpush1.msra.mxu0 0.0
        %2540 = vmatprep.subr.mxu0 0.0
        %2541 = vmatpush1.msra.mxu0 0.0
        %2542 = vmatprep.subr.mxu0 0.0
        %2543 = vmatpush1.msra.mxu0 0.0
        %2544 = vmatprep.subr.mxu0 0.0
        %2545 = vmatpush1.msra.mxu0 0.0
        %2546 = vmatprep.subr.mxu0 0.0
        %2547 = vmatpush1.msra.mxu0 0.0
        %2548 = vmatprep.subr.mxu0 0.0
        %2549 = vmatpush1.msra.mxu0 0.0
        %2550 = vmatprep.subr.mxu0 0.0
        %2551 = vmatpush1.msra.mxu0 0.0
        %2552 = vmatprep.subr.mxu0 0.0
        %2553 = vmatpush1.msra.mxu0 0.0
        %2554 = vmatprep.subr.mxu0 0.0
        %2555 = vmatpush1.msra.mxu0 0.0
        %2556 = vmatprep.subr.mxu0 0.0
        %2557 = vmatpush1.msra.mxu0 0.0
        %2558 = vmatprep.subr.mxu0 0.0
        %2559 = vmatpush1.msra.mxu0 0.0
        %2560 = vmatprep.subr.mxu0 0.0
        %2561 = vmatpush1.msra.mxu0 0.0
        %2562 = vmatprep.subr.mxu0 0.0
        %2563 = vmatpush1.msra.mxu0 0.0
        %2564 = vmatprep.subr.mxu0 0.0
        %2565 = vmatpush1.msra.mxu0 0.0
        %2566 = vmatprep.subr.mxu0 0.0
        %2567 = vmatpush1.msra.mxu0 0.0
        %2568 = vmatprep.subr.mxu0 0.0
        %2569 = vmatpush1.msra.mxu0 0.0
        %2570 = vmatprep.subr.mxu0 0.0
        %2571 = vmatpush1.msra.mxu0 0.0
        %2572 = vmatprep.subr.mxu0 0.0
        %2573 = vmatpush1.msra.mxu0 0.0
        %2574 = vmatprep.subr.mxu0 0.0
        %2575 = vmatpush1.msra.mxu0 0.0
        %2576 = vmatprep.subr.mxu0 0.0
        %2577 = vmatpush1.msra.mxu0 0.0
        %2578 = vmatprep.subr.mxu0 0.0
        %2579 = vmatpush1.msra.mxu0 0.0
        %2580 = vmatprep.mubr.f32.mxu0 0.0
        %2581 = vmatmul.mubr.f32.gmra.mrb[0].mxu0 %v2511
        %v2582 = vpop.f32.mrb[0].mxu0
        %v2583 = vadd.f32 %v2507, %v2582
        %v2584 = vpop.f32.mrb[0].mxu0
        %2585 = vmatprep.mubr.f32.mxu0 0.0
        %2586 = vmatmul.mubr.f32.gmra.mrb[0].mxu0 %v2514
        %v2587 = vpop.f32.mrb[0].mxu0
        %v2588 = vadd.f32 %v2507, %v2587
        %v2589 = vpop.f32.mrb[0].mxu0
        %2590 = vdwg.mxu0
        %v2591 = vadd.f32 %v2583, %v2382
        %v2592 = vadd.f32 %v2588, %v2383
        %v2593 = vld [vmem:[%s716] sm:$0x1]
        %v2594 = vld [vmem:[%s719] sm:$0x1]
        %v2595 = vsel %vm788, %v2591, 0.0
        %2596 = vadd.xlane.f32.xlu0 %v2595
        %v2597 = vpop.xlane.xlu0 %2596
        %v2598 = vsel %vm788, %v2592, 0.0
        %2599 = vadd.xlane.f32.xlu0 %v2598
        %v2600 = vpop.xlane.xlu0 %2599
        %v2601 = vmul.f32 %v2597, %v2347
        %v2602 = vmul.f32 %v2600, %v2347
        %v2603 = vsub.f32 %v2591, %v2601
        %v2604 = vsub.f32 %v2592, %v2602
        %v2605 = vmul.f32 %v2603, %v2603
        %v2606 = vmul.f32 %v2604, %v2604
        %v2607 = vsel %vm788, %v2605, 0.0
        %2608 = vadd.xlane.f32.xlu0 %v2607
        %v2609 = vpop.xlane.xlu0 %2608
        %v2610 = vsel %vm788, %v2606, 0.0
        %2611 = vadd.xlane.f32.xlu0 %v2610
        %v2612 = vpop.xlane.xlu0 %2611
        %v2613 = vmul.f32 %v2609, %v2347
        %v2614 = vmul.f32 %v2612, %v2347
        %v2615 = vadd.f32 %v2613, 1e-12
        %v2616 = vadd.f32 %v2614, 1e-12
        %v2617 = vrsqrt.pop %v2615
        %v2618 = vrsqrt.pop %v2616
        %v2619 = vmul.f32 %v2603, %v2617
        %v2620 = vmul.f32 %v2604, %v2618
        %v2622 = vlaneseq
        %v2623 = vshrl.u32 %v2622, 7
        %v2624 = vsub.s32 0, %v2623
        %v2625 = vrot.slane %v2593, %v2624
        %v2627 = vmul.f32 %v2619, %v2625
        %v2628 = vmul.f32 %v2620, %v2625
        %v2630 = vlaneseq
        %v2631 = vshrl.u32 %v2630, 7
        %v2632 = vsub.s32 0, %v2631
        %v2633 = vrot.slane %v2594, %v2632
        %v2635 = vadd.f32 %v2627, %v2633
        %v2636 = vadd.f32 %v2628, %v2633
        %2637 = vst.msk [vmem:[#allocation2] sm:$0xff] %vm788, %v2635
        %2638 = vst.msk [vmem:[#allocation2 + $0x8] sm:$0xff] %vm788, %v2636
        %v2640 = vrot.slane %v2636, 7
        %vm2642 = vcmask 1040384
        %v2643 = vsel %vm2642, %v2635, %v2640
        %vm2644 = vcmask 254976
        %2645 = vst.msk [vmem:[#allocation9] sm:$0x3] %vm2644, %v2643
        // Predicated region
        $region101: #{tpu_custom_call.1} parent=83 // pred_check
          %p2646 = pneg %p439
        $region102: #{tpu_custom_call.1} parent=83 // pred_check_branch
          %2648 = sbr.rel (%p2646) target = $region104
        $region103: #{tpu_custom_call.1} parent=83 // pred_region
          %s2650 = ssub.s32 32, 32
          %2651 = vsyncadd [#allocation5], %s2650
          %s2653 = sshll.u32 [#allocation9], 4
          %s2654 = int_to_ptr.vmem [resolvable:$true] %s2653
          %2656 = dma.vmem_to_hbm [thread:$0]  %s2654, 32, %s16, [#allocation5]
        $region104: #{tpu_custom_call.1} parent=83 // pred_fallthru
          _
        // Predicated region
        $region105: #{tpu_custom_call.1} parent=83 // pred_check
          %p2657 = pneg %p439
        $region106: #{tpu_custom_call.1} parent=83 // pred_check_branch
          %2659 = sbr.rel (%p2657) target = $region108
        $region107: #{tpu_custom_call.1} parent=83 // pred_region
          %2660 = dma.done [#allocation5], 32
        $region108: #{tpu_custom_call.1} parent=83 // pred_fallthru
          _
      $region84: #{tpu_custom_call.1} parent=5 // pred_fallthru
        _
      %p2661 = scmp.le.s32.totalorder 2, %s25
      // Predicated region
      $region109: #{tpu_custom_call.1} parent=5 // pred_check
        %p2662 = pneg %p2661
      $region110: #{tpu_custom_call.1} parent=5 // pred_check_branch
        %2664 = sbr.rel (%p2662) target = $region112
      $region111: #{tpu_custom_call.1} parent=5 // pred_region
        %s2665 = ssub.s32 %s25, 2
      $region112: #{tpu_custom_call.1} parent=5 // pred_fallthru
        _
    $region6: #{tpu_custom_call.1} parent=1 // loop_footer
      %s29 = sadd.s32 1, %s25
    $region7: #{tpu_custom_call.1} parent=1 // loop_footer_branch
      %24 = sbr.rel target = $region3
    $region8: #{tpu_custom_call.1} parent=1 // loop_exit
      _
    %2666 = vsyncpa [#allocation4], 1
    %s2667 = scalar_lea.sflag [#allocation4], 1
    %2668 = vsyncpa %s2667, 1
    %2669 = vsyncpa [#allocation7], 1
    %2670 = vsyncpa [#allocation5], 1
    %s2671 = scalar_lea.sflag [#allocation5], 1
    %2672 = vsyncpa %s2671, 1

</llo_original>
